<compile_context>
chip_gen: v7x
topology: tpu7x:2x2x1
jax: 0.10.0
libtpu: 0.0.40
codegen_flags: <defaults>
</compile_context>

<pallas_src>
import functools

import jax
import jax.numpy as jnp
from jax import lax
from jax.experimental import pallas as pl
from jax.experimental.pallas import tpu as pltpu


# ------------------------- Fused Pallas kernel ----------------------------- #

def _make_fused_kernel(T, H, C, L, CLS):
    """Embedding (as one-hot matmul) + (L+1) LSTM layers, fully VMEM-resident.

    Ref order:
      tokens (T,1) i32, xg_table (CLS,4H) bf16, w_stack (2L+1,H,4H) bf16,
      b_stack (L,4H) f32, state (2L+2,H) f32,
      y (T,C) f32, state_out (2L+2,H) f32,
      x_scr (T,H) f32 scratch.

    w_stack layout: [0..L] = W_hh of layers 0..L, [L+1..2L] = W_ih of layers 1..L
    (layer-0's W_ih + bias are folded into xg_table). Gate columns are in
    [i, f, o, g] order with i/f/o pre-scaled by 0.5 (sigmoid-via-tanh). The final
    layer (true size C) is zero-padded to H; its pad lanes stay exactly 0.
    """

    def kernel(tok_ref, table_ref, w_ref, b_ref, st_ref,
               y_ref, stout_ref, x_scr):
        # ---- layer-0 input projection via one-hot @ (embed @ W_ih0 + b0) -----
        col = lax.broadcasted_iota(jnp.int32, (T, CLS), 1)
        one_hot = jnp.where(tok_ref[...] == col, 1.0, 0.0).astype(jnp.bfloat16)

        for l in range(L + 1):                       # static unroll over layers
            if l == 0:
                xg = jnp.dot(one_hot, table_ref[...],
                             preferred_element_type=jnp.float32)      # (T, 4H)
            else:
                x = x_scr[...].astype(jnp.bfloat16)                    # (T, H)
                xg = jnp.dot(x, w_ref[L + l],
                             preferred_element_type=jnp.float32) + b_ref[l - 1:l, :]

            whh = w_ref[l]                            # (H, 4H) bf16, hoisted
            h = st_ref[l:l + 1, :]                    # (1, H) f32
            c = st_ref[L + 1 + l:L + 2 + l, :]        # (1, H) f32

            for t in range(T):                        # static unroll over time
                g = xg[t:t + 1, :] + jnp.dot(h.astype(jnp.bfloat16), whh,
                                             preferred_element_type=jnp.float32)
                tg = jnp.tanh(g)                      # single EUP pass, 4H lanes
                i_g = 0.5 * tg[:, 0 * H:1 * H] + 0.5  # = sigmoid(z_i)
                f_g = 0.5 * tg[:, 1 * H:2 * H] + 0.5  # = sigmoid(z_f)
                o_g = 0.5 * tg[:, 2 * H:3 * H] + 0.5  # = sigmoid(z_o)
                g_g = tg[:, 3 * H:4 * H]              # = tanh(z_g)
                c = f_g * c + i_g * g_g
                h = o_g * jnp.tanh(c)
                x_scr[t:t + 1, :] = h                 # next layer's input row

            stout_ref[l:l + 1, :] = h
            stout_ref[L + 1 + l:L + 2 + l, :] = c

        # Final layer wrote its (padded) h rows into x_scr: one dense store.
        y_ref[...] = x_scr[:, :C]

    return kernel


def _build_call(T, H, C, L, CLS):
    vmem = pl.BlockSpec(memory_space=pltpu.MemorySpace.VMEM)
    return pl.pallas_call(
        _make_fused_kernel(T, H, C, L, CLS),
        out_shape=(
            jax.ShapeDtypeStruct((T, C), jnp.float32),            # y
            jax.ShapeDtypeStruct((2 * L + 2, H), jnp.float32),    # packed state
        ),
        in_specs=[vmem, vmem, vmem, vmem, vmem],
        out_specs=(vmem, vmem),
        scratch_shapes=[pltpu.VMEM((T, H), jnp.float32)],
        input_output_aliases={4: 1},                  # state updated in place
    )


# ----------------------- Parameter init & preparation ---------------------- #

def init_params(key, hidden_size, num_layers, num_classes):
    """PyTorch-layout parameters: w_ih (4H, H_in), w_hh (4H, H), biases (4H,)."""
    k_embed, k_rest = jax.random.split(key)
    params = {"embed": jax.random.normal(
        k_embed, (num_classes, hidden_size), jnp.float32)}

    def lstm_weights(k, input_size, hidden):
        k1, k2, k3, k4 = jax.random.split(k, 4)
        s = 1.0 / float(hidden) ** 0.5
        return dict(
            w_ih=jax.random.uniform(k1, (4 * hidden, input_size), jnp.float32, -s, s),
            w_hh=jax.random.uniform(k2, (4 * hidden, hidden), jnp.float32, -s, s),
            b_ih=jax.random.uniform(k3, (4 * hidden,), jnp.float32, -s, s),
            b_hh=jax.random.uniform(k4, (4 * hidden,), jnp.float32, -s, s),
        )

    keys = jax.random.split(k_rest, num_layers + 1)
    params["lstm"] = [lstm_weights(keys[l], hidden_size, hidden_size)
                      for l in range(num_layers)]
    params["lstm2"] = lstm_weights(keys[-1], hidden_size, num_classes)
    return params


def _reorder_scale_gates(w, hid):
    """Columns in torch gate order [i,f,g,o] -> [i,f,o,g], with i/f/o * 0.5 so a
    single tanh implements sigmoid as 0.5*tanh(z/2)+0.5."""
    i = w[:, 0 * hid:1 * hid]
    f = w[:, 1 * hid:2 * hid]
    g = w[:, 2 * hid:3 * hid]
    o = w[:, 3 * hid:4 * hid]
    return jnp.concatenate([0.5 * i, 0.5 * f, 0.5 * o, g], axis=1)


def _pad_gate_blocks(w, hid_small, hid_big):
    """(rows, 4*hid_small) in [i,f,o,g] order -> (rows, 4*hid_big); each gate
    block placed at offset k*hid_big, zeros elsewhere."""
    rows = w.shape[0]
    out = jnp.zeros((rows, 4 * hid_big), w.dtype)
    for k in range(4):
        out = out.at[:, k * hid_big:k * hid_big + hid_small].set(
            w[:, k * hid_small:(k + 1) * hid_small])
    return out


def prepare_params(params):
    """One-time prep: transpose, fuse biases, reorder+scale gate columns,
    fold layer-0 W_ih/b into the embedding table, zero-pad the final (H->C)
    layer to H, and pack everything into 3 buffers (weights in bf16)."""
    embed = params["embed"].astype(jnp.float32)
    CLS, H = embed.shape
    L = len(params["lstm"])
    C = params["lstm2"]["w_hh"].shape[1]
    assert C <= H, "padding scheme assumes num_classes <= hidden_size"

    def prep(w, hid):
        wih_t = _reorder_scale_gates(jnp.transpose(w["w_ih"]).astype(jnp.float32), hid)
        whh_t = _reorder_scale_gates(jnp.transpose(w["w_hh"]).astype(jnp.float32), hid)
        b = _reorder_scale_gates(
            (w["b_ih"] + w["b_hh"]).astype(jnp.float32)[None, :], hid)
        return wih_t, whh_t, b

    wihs, whhs, bs = [], [], []
    for l in range(L):
        a, b_, c_ = prep(params["lstm"][l], H)
        wihs.append(a), whhs.append(b_), bs.append(c_)

    wih2, whh2, b2 = prep(params["lstm2"], C)
    wih2_p = _pad_gate_blocks(wih2, C, H)                                 # (H, 4H)
    whh2_p = jnp.concatenate(
        [_pad_gate_blocks(whh2, C, H),
         jnp.zeros((H - C, 4 * H), jnp.float32)], axis=0)                 # (H, 4H)
    b2_p = _pad_gate_blocks(b2, C, H)                                     # (1, 4H)

    # Layer-0 input projection + bias folded into the embedding table.
    table = (embed @ wihs[0] + bs[0]).astype(jnp.bfloat16)                # (CLS, 4H)

    w_slabs = whhs + [whh2_p] + wihs[1:] + [wih2_p]                       # 2L+1 slabs
    w_stack = jnp.stack(w_slabs, axis=0).astype(jnp.bfloat16)             # (2L+1,H,4H)
    b_stack = jnp.concatenate(bs[1:] + [b2_p], axis=0).astype(jnp.float32)  # (L, 4H)

    return {"table": table, "w_stack": w_stack, "b_stack": b_stack}


# ----------------------------- Model forward -------------------------------- #

def model_forward_pallas(prepped, tokens, hidden_size, num_layers, num_classes,
                         state=None):
    """Mirrors Model.forward: returns (output (1, T, num_classes), state)."""
    H, L, C = hidden_size, num_layers, num_classes
    tokens = tokens.reshape(-1).astype(jnp.int32)
    T = tokens.shape[0]
    if state is None:
        state = [
            jnp.zeros((L, 1, H), jnp.float32),
            jnp.zeros((L, 1, H), jnp.float32),
            jnp.zeros((1, 1, C), jnp.float32),
            jnp.zeros((1, 1, C), jnp.float32),
        ]

    h0 = state[0][:, 0, :]                               # (L, H)
    c0 = state[1][:, 0, :]                               # (L, H)
    h20 = state[2][0]                                    # (1, C)
    c20 = state[3][0]                                    # (1, C)
    pad = jnp.zeros((1, H - C), jnp.float32)
    st_packed = jnp.concatenate(
        [h0, jnp.concatenate([h20, pad], axis=1),
         c0, jnp.concatenate([c20, pad], axis=1)], axis=0)  # (2L+2, H)

    call = _build_call(T, H, C, L, C)                    # CLS == num_classes
    y, st_out = call(tokens[:, None], prepped["table"], prepped["w_stack"],
                     prepped["b_stack"], st_packed)

    output = y[None]                                     # (1, T, C)
    new_state = [
        st_out[0:L][:, None, :],                         # h_n stacked LSTM
        st_out[L + 1:2 * L + 1][:, None, :],             # c_n stacked LSTM
        st_out[L:L + 1, :C][None],                       # h_n lstm2
        st_out[2 * L + 1:2 * L + 2, :C][None],           # c_n lstm2
    ]
    return output, new_state


# --------------------------- Pure-JAX reference ----------------------------- #

def lstm_layer_ref(x, h0, c0, w_ih, w_hh, b_ih, b_hh):
    H = h0.shape[-1]

    def step(carry, x_t):
        h, c = carry
        gates = x_t @ w_ih.T + h @ w_hh.T + b_ih + b_hh
        i_g = jax.nn.sigmoid(gates[:, 0 * H:1 * H])
        f_g = jax.nn.sigmoid(gates[:, 1 * H:2 * H])
        g_g = jnp.tanh(gates[:, 2 * H:3 * H])
        o_g = jax.nn.sigmoid(gates[:, 3 * H:4 * H])
        c_new = f_g * c + i_g * g_g
        h_new = o_g * jnp.tanh(c_new)
        return (h_new, c_new), h_new[0]

    (h_n, c_n), ys = lax.scan(step, (h0, c0), x[:, None, :])
    return ys, h_n, c_n


def model_forward_ref(params, tokens, hidden_size, num_layers, num_classes,
                      state=None):
    tokens = tokens.reshape(-1)
    if state is None:
        state = [
            jnp.zeros((num_layers, 1, hidden_size), jnp.float32),
            jnp.zeros((num_layers, 1, hidden_size), jnp.float32),
            jnp.zeros((1, 1, num_classes), jnp.float32),
            jnp.zeros((1, 1, num_classes), jnp.float32),
        ]

    x = params["embed"][tokens]                          # (T, H)
    h_list, c_list = [], []
    for l in range(num_layers):
        w = params["lstm"][l]
        x, h_n, c_n = lstm_layer_ref(x, state[0][l], state[1][l],
                                     w["w_ih"], w["w_hh"], w["b_ih"], w["b_hh"])
        h_list.append(h_n)
        c_list.append(c_n)

    w2 = params["lstm2"]
    y, h2_n, c2_n = lstm_layer_ref(x, state[2][0], state[3][0],
                                   w2["w_ih"], w2["w_hh"], w2["b_ih"], w2["b_hh"])

    output = y[None]
    new_state = [jnp.stack(h_list, 0), jnp.stack(c_list, 0),
                 h2_n[None], c2_n[None]]
    return output, new_state


# ----------------------------------- main ----------------------------------- #

if __name__ == "__main__":
    hidden_size, num_layers, num_classes, seq_len = 32, 2, 8, 8

    key = jax.random.PRNGKey(0)
    k_params, k_tokens = jax.random.split(key)
    params = init_params(k_params, hidden_size, num_layers, num_classes)
    tokens = jax.random.randint(k_tokens, (seq_len,), 0, num_classes)

    prepped = prepare_params(params)
    fwd = jax.jit(functools.partial(model_forward_pallas,
                                    hidden_size=hidden_size,
                                    num_layers=num_layers,
                                    num_classes=num_classes))

    out, state = fwd(prepped, tokens)
    out = jax.block_until_ready(out)
    state = jax.block_until_ready(state)

    # Verify against a pure-f32 JAX LSTM reference (kernel matmuls are bf16,
    # hence the relaxed 2e-2 tolerance).
    out_ref, state_ref = model_forward_ref(params, tokens, hidden_size,
                                           num_layers, num_classes)
    assert out.shape == (1, seq_len, num_classes)
    assert jnp.allclose(out, out_ref, rtol=2e-2, atol=2e-2), \
        float(jnp.max(jnp.abs(out - out_ref)))
    for a, b in zip(state, state_ref):
        assert a.shape == b.shape
        assert jnp.allclose(a, b, rtol=2e-2, atol=2e-2), \
            float(jnp.max(jnp.abs(a - b)))

    print("KERNEL_OK")
</pallas_src>

<mosaic_0001>
module attributes {stable_mosaic.version = 11 : i64} {
  func.func @kernel(%arg0: memref<8x1xi32, #tpu.memory_space<vmem>>, %arg1: memref<8x128xbf16, #tpu.memory_space<vmem>>, %arg2: memref<5x32x128xbf16, #tpu.memory_space<vmem>>, %arg3: memref<2x128xf32, #tpu.memory_space<vmem>>, %arg4: memref<6x32xf32, #tpu.memory_space<vmem>>, %arg5: memref<8x8xf32, #tpu.memory_space<vmem>>, %arg6: memref<6x32xf32, #tpu.memory_space<vmem>>, %arg7: memref<8x32xf32, #tpu.memory_space<vmem>>) attributes {dimension_semantics = [], scalar_prefetch = 0 : i64, scratch_operands = 1 : i64, tpu.core_type = #tpu.core_type<tc>} {
    %0 = tpu.iota {dimensions = array<i32: 1>} : vector<8x8xi32>
    %c0 = arith.constant 0 : index
    %c0_0 = arith.constant 0 : index
    %1 = vector.load %arg0[%c0, %c0_0] : memref<8x1xi32, #tpu.memory_space<vmem>>, vector<8x1xi32>
    %2 = vector.broadcast %1 : vector<8x1xi32> to vector<8x8xi32>
    %3 = arith.cmpi eq, %2, %0 : vector<8x8xi32>
    %cst = arith.constant 1.000000e+00 : f32
    %cst_1 = arith.constant 0.000000e+00 : f32
    %4 = vector.broadcast %cst : f32 to vector<8x8xf32>
    %5 = vector.broadcast %cst_1 : f32 to vector<8x8xf32>
    %6 = arith.select %3, %4, %5 : vector<8x8xi1>, vector<8x8xf32>
    %7 = arith.truncf %6 : vector<8x8xf32> to vector<8x8xbf16>
    %c0_2 = arith.constant 0 : index
    %c0_3 = arith.constant 0 : index
    %8 = vector.load %arg1[%c0_2, %c0_3] : memref<8x128xbf16, #tpu.memory_space<vmem>>, vector<8x128xbf16>
    %cst_4 = arith.constant dense<0.000000e+00> : vector<8x128xf32>
    %9 = tpu.matmul %7, %8, %cst_4 {dimension_numbers = #tpu.dot_dimension_numbers<[1], [0], [0], [1], [0, 0, 1, 1], [], []>} : vector<8x8xbf16>, vector<8x128xbf16>, vector<8x128xf32> -> vector<8x128xf32>
    %c0_5 = arith.constant 0 : index
    %c0_6 = arith.constant 0 : index
    %c0_7 = arith.constant 0 : index
    %10 = vector.load %arg2[%c0_5, %c0_6, %c0_7] : memref<5x32x128xbf16, #tpu.memory_space<vmem>>, vector<1x32x128xbf16>
    %11 = vector.shape_cast %10 : vector<1x32x128xbf16> to vector<32x128xbf16>
    %c0_8 = arith.constant 0 : index
    %c0_9 = arith.constant 0 : index
    %12 = vector.load %arg4[%c0_8, %c0_9] : memref<6x32xf32, #tpu.memory_space<vmem>>, vector<1x32xf32>
    %c3 = arith.constant 3 : index
    %c0_10 = arith.constant 0 : index
    %13 = vector.load %arg4[%c3, %c0_10] : memref<6x32xf32, #tpu.memory_space<vmem>>, vector<1x32xf32>
    %14 = vector.extract_strided_slice %9 {offsets = [0, 0], sizes = [1, 128], strides = [1, 1]} : vector<8x128xf32> to vector<1x128xf32>
    %15 = arith.truncf %12 : vector<1x32xf32> to vector<1x32xbf16>
    %cst_11 = arith.constant dense<0.000000e+00> : vector<1x128xf32>
    %16 = tpu.matmul %15, %11, %cst_11 {dimension_numbers = #tpu.dot_dimension_numbers<[1], [0], [0], [1], [0, 0, 1, 1], [], []>} : vector<1x32xbf16>, vector<32x128xbf16>, vector<1x128xf32> -> vector<1x128xf32>
    %17 = arith.addf %14, %16 : vector<1x128xf32>
    %18 = math.tanh %17 : vector<1x128xf32>
    %19 = vector.extract_strided_slice %18 {offsets = [0, 0], sizes = [1, 32], strides = [1, 1]} : vector<1x128xf32> to vector<1x32xf32>
    %cst_12 = arith.constant 5.000000e-01 : f32
    %20 = vector.broadcast %cst_12 : f32 to vector<1x32xf32>
    %21 = arith.mulf %20, %19 : vector<1x32xf32>
    %cst_13 = arith.constant 5.000000e-01 : f32
    %22 = vector.broadcast %cst_13 : f32 to vector<1x32xf32>
    %23 = arith.addf %21, %22 : vector<1x32xf32>
    %24 = vector.extract_strided_slice %18 {offsets = [0, 32], sizes = [1, 32], strides = [1, 1]} : vector<1x128xf32> to vector<1x32xf32>
    %cst_14 = arith.constant 5.000000e-01 : f32
    %25 = vector.broadcast %cst_14 : f32 to vector<1x32xf32>
    %26 = arith.mulf %25, %24 : vector<1x32xf32>
    %cst_15 = arith.constant 5.000000e-01 : f32
    %27 = vector.broadcast %cst_15 : f32 to vector<1x32xf32>
    %28 = arith.addf %26, %27 : vector<1x32xf32>
    %29 = vector.extract_strided_slice %18 {offsets = [0, 64], sizes = [1, 32], strides = [1, 1]} : vector<1x128xf32> to vector<1x32xf32>
    %cst_16 = arith.constant 5.000000e-01 : f32
    %30 = vector.broadcast %cst_16 : f32 to vector<1x32xf32>
    %31 = arith.mulf %30, %29 : vector<1x32xf32>
    %cst_17 = arith.constant 5.000000e-01 : f32
    %32 = vector.broadcast %cst_17 : f32 to vector<1x32xf32>
    %33 = arith.addf %31, %32 : vector<1x32xf32>
    %34 = vector.extract_strided_slice %18 {offsets = [0, 96], sizes = [1, 32], strides = [1, 1]} : vector<1x128xf32> to vector<1x32xf32>
    %35 = arith.mulf %28, %13 : vector<1x32xf32>
    %36 = arith.mulf %23, %34 : vector<1x32xf32>
    %37 = arith.addf %35, %36 : vector<1x32xf32>
    %38 = math.tanh %37 : vector<1x32xf32>
    %39 = arith.mulf %33, %38 : vector<1x32xf32>
    %c0_18 = arith.constant 0 : index
    %c0_19 = arith.constant 0 : index
    %40 = vector.load %arg7[%c0_18, %c0_19] : memref<8x32xf32, #tpu.memory_space<vmem>>, vector<1x32xf32>
    tpu.vector_store %arg7[%c0_18, %c0_19], %39 {strides = array<i32>} : memref<8x32xf32, #tpu.memory_space<vmem>>, vector<1x32xf32>,
    %41 = vector.extract_strided_slice %9 {offsets = [1, 0], sizes = [1, 128], strides = [1, 1]} : vector<8x128xf32> to vector<1x128xf32>
    %42 = arith.truncf %39 : vector<1x32xf32> to vector<1x32xbf16>
    %cst_20 = arith.constant dense<0.000000e+00> : vector<1x128xf32>
    %43 = tpu.matmul %42, %11, %cst_20 {dimension_numbers = #tpu.dot_dimension_numbers<[1], [0], [0], [1], [0, 0, 1, 1], [], []>} : vector<1x32xbf16>, vector<32x128xbf16>, vector<1x128xf32> -> vector<1x128xf32>
    %44 = arith.addf %41, %43 : vector<1x128xf32>
    %45 = math.tanh %44 : vector<1x128xf32>
    %46 = vector.extract_strided_slice %45 {offsets = [0, 0], sizes = [1, 32], strides = [1, 1]} : vector<1x128xf32> to vector<1x32xf32>
    %cst_21 = arith.constant 5.000000e-01 : f32
    %47 = vector.broadcast %cst_21 : f32 to vector<1x32xf32>
    %48 = arith.mulf %47, %46 : vector<1x32xf32>
    %cst_22 = arith.constant 5.000000e-01 : f32
    %49 = vector.broadcast %cst_22 : f32 to vector<1x32xf32>
    %50 = arith.addf %48, %49 : vector<1x32xf32>
    %51 = vector.extract_strided_slice %45 {offsets = [0, 32], sizes = [1, 32], strides = [1, 1]} : vector<1x128xf32> to vector<1x32xf32>
    %cst_23 = arith.constant 5.000000e-01 : f32
    %52 = vector.broadcast %cst_23 : f32 to vector<1x32xf32>
    %53 = arith.mulf %52, %51 : vector<1x32xf32>
    %cst_24 = arith.constant 5.000000e-01 : f32
    %54 = vector.broadcast %cst_24 : f32 to vector<1x32xf32>
    %55 = arith.addf %53, %54 : vector<1x32xf32>
    %56 = vector.extract_strided_slice %45 {offsets = [0, 64], sizes = [1, 32], strides = [1, 1]} : vector<1x128xf32> to vector<1x32xf32>
    %cst_25 = arith.constant 5.000000e-01 : f32
    %57 = vector.broadcast %cst_25 : f32 to vector<1x32xf32>
    %58 = arith.mulf %57, %56 : vector<1x32xf32>
    %cst_26 = arith.constant 5.000000e-01 : f32
    %59 = vector.broadcast %cst_26 : f32 to vector<1x32xf32>
    %60 = arith.addf %58, %59 : vector<1x32xf32>
    %61 = vector.extract_strided_slice %45 {offsets = [0, 96], sizes = [1, 32], strides = [1, 1]} : vector<1x128xf32> to vector<1x32xf32>
    %62 = arith.mulf %55, %37 : vector<1x32xf32>
    %63 = arith.mulf %50, %61 : vector<1x32xf32>
    %64 = arith.addf %62, %63 : vector<1x32xf32>
    %65 = math.tanh %64 : vector<1x32xf32>
    %66 = arith.mulf %60, %65 : vector<1x32xf32>
    %c1 = arith.constant 1 : index
    %c0_27 = arith.constant 0 : index
    %67 = vector.load %arg7[%c1, %c0_27] : memref<8x32xf32, #tpu.memory_space<vmem>>, vector<1x32xf32>
    tpu.vector_store %arg7[%c1, %c0_27], %66 {strides = array<i32>} : memref<8x32xf32, #tpu.memory_space<vmem>>, vector<1x32xf32>,
    %68 = vector.extract_strided_slice %9 {offsets = [2, 0], sizes = [1, 128], strides = [1, 1]} : vector<8x128xf32> to vector<1x128xf32>
    %69 = arith.truncf %66 : vector<1x32xf32> to vector<1x32xbf16>
    %cst_28 = arith.constant dense<0.000000e+00> : vector<1x128xf32>
    %70 = tpu.matmul %69, %11, %cst_28 {dimension_numbers = #tpu.dot_dimension_numbers<[1], [0], [0], [1], [0, 0, 1, 1], [], []>} : vector<1x32xbf16>, vector<32x128xbf16>, vector<1x128xf32> -> vector<1x128xf32>
    %71 = arith.addf %68, %70 : vector<1x128xf32>
    %72 = math.tanh %71 : vector<1x128xf32>
    %73 = vector.extract_strided_slice %72 {offsets = [0, 0], sizes = [1, 32], strides = [1, 1]} : vector<1x128xf32> to vector<1x32xf32>
    %cst_29 = arith.constant 5.000000e-01 : f32
    %74 = vector.broadcast %cst_29 : f32 to vector<1x32xf32>
    %75 = arith.mulf %74, %73 : vector<1x32xf32>
    %cst_30 = arith.constant 5.000000e-01 : f32
    %76 = vector.broadcast %cst_30 : f32 to vector<1x32xf32>
    %77 = arith.addf %75, %76 : vector<1x32xf32>
    %78 = vector.extract_strided_slice %72 {offsets = [0, 32], sizes = [1, 32], strides = [1, 1]} : vector<1x128xf32> to vector<1x32xf32>
    %cst_31 = arith.constant 5.000000e-01 : f32
    %79 = vector.broadcast %cst_31 : f32 to vector<1x32xf32>
    %80 = arith.mulf %79, %78 : vector<1x32xf32>
    %cst_32 = arith.constant 5.000000e-01 : f32
    %81 = vector.broadcast %cst_32 : f32 to vector<1x32xf32>
    %82 = arith.addf %80, %81 : vector<1x32xf32>
    %83 = vector.extract_strided_slice %72 {offsets = [0, 64], sizes = [1, 32], strides = [1, 1]} : vector<1x128xf32> to vector<1x32xf32>
    %cst_33 = arith.constant 5.000000e-01 : f32
    %84 = vector.broadcast %cst_33 : f32 to vector<1x32xf32>
    %85 = arith.mulf %84, %83 : vector<1x32xf32>
    %cst_34 = arith.constant 5.000000e-01 : f32
    %86 = vector.broadcast %cst_34 : f32 to vector<1x32xf32>
    %87 = arith.addf %85, %86 : vector<1x32xf32>
    %88 = vector.extract_strided_slice %72 {offsets = [0, 96], sizes = [1, 32], strides = [1, 1]} : vector<1x128xf32> to vector<1x32xf32>
    %89 = arith.mulf %82, %64 : vector<1x32xf32>
    %90 = arith.mulf %77, %88 : vector<1x32xf32>
    %91 = arith.addf %89, %90 : vector<1x32xf32>
    %92 = math.tanh %91 : vector<1x32xf32>
    %93 = arith.mulf %87, %92 : vector<1x32xf32>
    %c2 = arith.constant 2 : index
    %c0_35 = arith.constant 0 : index
    %94 = vector.load %arg7[%c2, %c0_35] : memref<8x32xf32, #tpu.memory_space<vmem>>, vector<1x32xf32>
    tpu.vector_store %arg7[%c2, %c0_35], %93 {strides = array<i32>} : memref<8x32xf32, #tpu.memory_space<vmem>>, vector<1x32xf32>,
    %95 = vector.extract_strided_slice %9 {offsets = [3, 0], sizes = [1, 128], strides = [1, 1]} : vector<8x128xf32> to vector<1x128xf32>
    %96 = arith.truncf %93 : vector<1x32xf32> to vector<1x32xbf16>
    %cst_36 = arith.constant dense<0.000000e+00> : vector<1x128xf32>
    %97 = tpu.matmul %96, %11, %cst_36 {dimension_numbers = #tpu.dot_dimension_numbers<[1], [0], [0], [1], [0, 0, 1, 1], [], []>} : vector<1x32xbf16>, vector<32x128xbf16>, vector<1x128xf32> -> vector<1x128xf32>
    %98 = arith.addf %95, %97 : vector<1x128xf32>
    %99 = math.tanh %98 : vector<1x128xf32>
    %100 = vector.extract_strided_slice %99 {offsets = [0, 0], sizes = [1, 32], strides = [1, 1]} : vector<1x128xf32> to vector<1x32xf32>
    %cst_37 = arith.constant 5.000000e-01 : f32
    %101 = vector.broadcast %cst_37 : f32 to vector<1x32xf32>
    %102 = arith.mulf %101, %100 : vector<1x32xf32>
    %cst_38 = arith.constant 5.000000e-01 : f32
    %103 = vector.broadcast %cst_38 : f32 to vector<1x32xf32>
    %104 = arith.addf %102, %103 : vector<1x32xf32>
    %105 = vector.extract_strided_slice %99 {offsets = [0, 32], sizes = [1, 32], strides = [1, 1]} : vector<1x128xf32> to vector<1x32xf32>
    %cst_39 = arith.constant 5.000000e-01 : f32
    %106 = vector.broadcast %cst_39 : f32 to vector<1x32xf32>
    %107 = arith.mulf %106, %105 : vector<1x32xf32>
    %cst_40 = arith.constant 5.000000e-01 : f32
    %108 = vector.broadcast %cst_40 : f32 to vector<1x32xf32>
    %109 = arith.addf %107, %108 : vector<1x32xf32>
    %110 = vector.extract_strided_slice %99 {offsets = [0, 64], sizes = [1, 32], strides = [1, 1]} : vector<1x128xf32> to vector<1x32xf32>
    %cst_41 = arith.constant 5.000000e-01 : f32
    %111 = vector.broadcast %cst_41 : f32 to vector<1x32xf32>
    %112 = arith.mulf %111, %110 : vector<1x32xf32>
    %cst_42 = arith.constant 5.000000e-01 : f32
    %113 = vector.broadcast %cst_42 : f32 to vector<1x32xf32>
    %114 = arith.addf %112, %113 : vector<1x32xf32>
    %115 = vector.extract_strided_slice %99 {offsets = [0, 96], sizes = [1, 32], strides = [1, 1]} : vector<1x128xf32> to vector<1x32xf32>
    %116 = arith.mulf %109, %91 : vector<1x32xf32>
    %117 = arith.mulf %104, %115 : vector<1x32xf32>
    %118 = arith.addf %116, %117 : vector<1x32xf32>
    %119 = math.tanh %118 : vector<1x32xf32>
    %120 = arith.mulf %114, %119 : vector<1x32xf32>
    %c3_43 = arith.constant 3 : index
    %c0_44 = arith.constant 0 : index
    %121 = vector.load %arg7[%c3_43, %c0_44] : memref<8x32xf32, #tpu.memory_space<vmem>>, vector<1x32xf32>
    tpu.vector_store %arg7[%c3_43, %c0_44], %120 {strides = array<i32>} : memref<8x32xf32, #tpu.memory_space<vmem>>, vector<1x32xf32>,
    %122 = vector.extract_strided_slice %9 {offsets = [4, 0], sizes = [1, 128], strides = [1, 1]} : vector<8x128xf32> to vector<1x128xf32>
    %123 = arith.truncf %120 : vector<1x32xf32> to vector<1x32xbf16>
    %cst_45 = arith.constant dense<0.000000e+00> : vector<1x128xf32>
    %124 = tpu.matmul %123, %11, %cst_45 {dimension_numbers = #tpu.dot_dimension_numbers<[1], [0], [0], [1], [0, 0, 1, 1], [], []>} : vector<1x32xbf16>, vector<32x128xbf16>, vector<1x128xf32> -> vector<1x128xf32>
    %125 = arith.addf %122, %124 : vector<1x128xf32>
    %126 = math.tanh %125 : vector<1x128xf32>
    %127 = vector.extract_strided_slice %126 {offsets = [0, 0], sizes = [1, 32], strides = [1, 1]} : vector<1x128xf32> to vector<1x32xf32>
    %cst_46 = arith.constant 5.000000e-01 : f32
    %128 = vector.broadcast %cst_46 : f32 to vector<1x32xf32>
    %129 = arith.mulf %128, %127 : vector<1x32xf32>
    %cst_47 = arith.constant 5.000000e-01 : f32
    %130 = vector.broadcast %cst_47 : f32 to vector<1x32xf32>
    %131 = arith.addf %129, %130 : vector<1x32xf32>
    %132 = vector.extract_strided_slice %126 {offsets = [0, 32], sizes = [1, 32], strides = [1, 1]} : vector<1x128xf32> to vector<1x32xf32>
    %cst_48 = arith.constant 5.000000e-01 : f32
    %133 = vector.broadcast %cst_48 : f32 to vector<1x32xf32>
    %134 = arith.mulf %133, %132 : vector<1x32xf32>
    %cst_49 = arith.constant 5.000000e-01 : f32
    %135 = vector.broadcast %cst_49 : f32 to vector<1x32xf32>
    %136 = arith.addf %134, %135 : vector<1x32xf32>
    %137 = vector.extract_strided_slice %126 {offsets = [0, 64], sizes = [1, 32], strides = [1, 1]} : vector<1x128xf32> to vector<1x32xf32>
    %cst_50 = arith.constant 5.000000e-01 : f32
    %138 = vector.broadcast %cst_50 : f32 to vector<1x32xf32>
    %139 = arith.mulf %138, %137 : vector<1x32xf32>
    %cst_51 = arith.constant 5.000000e-01 : f32
    %140 = vector.broadcast %cst_51 : f32 to vector<1x32xf32>
    %141 = arith.addf %139, %140 : vector<1x32xf32>
    %142 = vector.extract_strided_slice %126 {offsets = [0, 96], sizes = [1, 32], strides = [1, 1]} : vector<1x128xf32> to vector<1x32xf32>
    %143 = arith.mulf %136, %118 : vector<1x32xf32>
    %144 = arith.mulf %131, %142 : vector<1x32xf32>
    %145 = arith.addf %143, %144 : vector<1x32xf32>
    %146 = math.tanh %145 : vector<1x32xf32>
    %147 = arith.mulf %141, %146 : vector<1x32xf32>
    %c4 = arith.constant 4 : index
    %c0_52 = arith.constant 0 : index
    %148 = vector.load %arg7[%c4, %c0_52] : memref<8x32xf32, #tpu.memory_space<vmem>>, vector<1x32xf32>
    tpu.vector_store %arg7[%c4, %c0_52], %147 {strides = array<i32>} : memref<8x32xf32, #tpu.memory_space<vmem>>, vector<1x32xf32>,
    %149 = vector.extract_strided_slice %9 {offsets = [5, 0], sizes = [1, 128], strides = [1, 1]} : vector<8x128xf32> to vector<1x128xf32>
    %150 = arith.truncf %147 : vector<1x32xf32> to vector<1x32xbf16>
    %cst_53 = arith.constant dense<0.000000e+00> : vector<1x128xf32>
    %151 = tpu.matmul %150, %11, %cst_53 {dimension_numbers = #tpu.dot_dimension_numbers<[1], [0], [0], [1], [0, 0, 1, 1], [], []>} : vector<1x32xbf16>, vector<32x128xbf16>, vector<1x128xf32> -> vector<1x128xf32>
    %152 = arith.addf %149, %151 : vector<1x128xf32>
    %153 = math.tanh %152 : vector<1x128xf32>
    %154 = vector.extract_strided_slice %153 {offsets = [0, 0], sizes = [1, 32], strides = [1, 1]} : vector<1x128xf32> to vector<1x32xf32>
    %cst_54 = arith.constant 5.000000e-01 : f32
    %155 = vector.broadcast %cst_54 : f32 to vector<1x32xf32>
    %156 = arith.mulf %155, %154 : vector<1x32xf32>
    %cst_55 = arith.constant 5.000000e-01 : f32
    %157 = vector.broadcast %cst_55 : f32 to vector<1x32xf32>
    %158 = arith.addf %156, %157 : vector<1x32xf32>
    %159 = vector.extract_strided_slice %153 {offsets = [0, 32], sizes = [1, 32], strides = [1, 1]} : vector<1x128xf32> to vector<1x32xf32>
    %cst_56 = arith.constant 5.000000e-01 : f32
    %160 = vector.broadcast %cst_56 : f32 to vector<1x32xf32>
    %161 = arith.mulf %160, %159 : vector<1x32xf32>
    %cst_57 = arith.constant 5.000000e-01 : f32
    %162 = vector.broadcast %cst_57 : f32 to vector<1x32xf32>
    %163 = arith.addf %161, %162 : vector<1x32xf32>
    %164 = vector.extract_strided_slice %153 {offsets = [0, 64], sizes = [1, 32], strides = [1, 1]} : vector<1x128xf32> to vector<1x32xf32>
    %cst_58 = arith.constant 5.000000e-01 : f32
    %165 = vector.broadcast %cst_58 : f32 to vector<1x32xf32>
    %166 = arith.mulf %165, %164 : vector<1x32xf32>
    %cst_59 = arith.constant 5.000000e-01 : f32
    %167 = vector.broadcast %cst_59 : f32 to vector<1x32xf32>
    %168 = arith.addf %166, %167 : vector<1x32xf32>
    %169 = vector.extract_strided_slice %153 {offsets = [0, 96], sizes = [1, 32], strides = [1, 1]} : vector<1x128xf32> to vector<1x32xf32>
    %170 = arith.mulf %163, %145 : vector<1x32xf32>
    %171 = arith.mulf %158, %169 : vector<1x32xf32>
    %172 = arith.addf %170, %171 : vector<1x32xf32>
    %173 = math.tanh %172 : vector<1x32xf32>
    %174 = arith.mulf %168, %173 : vector<1x32xf32>
    %c5 = arith.constant 5 : index
    %c0_60 = arith.constant 0 : index
    %175 = vector.load %arg7[%c5, %c0_60] : memref<8x32xf32, #tpu.memory_space<vmem>>, vector<1x32xf32>
    tpu.vector_store %arg7[%c5, %c0_60], %174 {strides = array<i32>} : memref<8x32xf32, #tpu.memory_space<vmem>>, vector<1x32xf32>,
    %176 = vector.extract_strided_slice %9 {offsets = [6, 0], sizes = [1, 128], strides = [1, 1]} : vector<8x128xf32> to vector<1x128xf32>
    %177 = arith.truncf %174 : vector<1x32xf32> to vector<1x32xbf16>
    %cst_61 = arith.constant dense<0.000000e+00> : vector<1x128xf32>
    %178 = tpu.matmul %177, %11, %cst_61 {dimension_numbers = #tpu.dot_dimension_numbers<[1], [0], [0], [1], [0, 0, 1, 1], [], []>} : vector<1x32xbf16>, vector<32x128xbf16>, vector<1x128xf32> -> vector<1x128xf32>
    %179 = arith.addf %176, %178 : vector<1x128xf32>
    %180 = math.tanh %179 : vector<1x128xf32>
    %181 = vector.extract_strided_slice %180 {offsets = [0, 0], sizes = [1, 32], strides = [1, 1]} : vector<1x128xf32> to vector<1x32xf32>
    %cst_62 = arith.constant 5.000000e-01 : f32
    %182 = vector.broadcast %cst_62 : f32 to vector<1x32xf32>
    %183 = arith.mulf %182, %181 : vector<1x32xf32>
    %cst_63 = arith.constant 5.000000e-01 : f32
    %184 = vector.broadcast %cst_63 : f32 to vector<1x32xf32>
    %185 = arith.addf %183, %184 : vector<1x32xf32>
    %186 = vector.extract_strided_slice %180 {offsets = [0, 32], sizes = [1, 32], strides = [1, 1]} : vector<1x128xf32> to vector<1x32xf32>
    %cst_64 = arith.constant 5.000000e-01 : f32
    %187 = vector.broadcast %cst_64 : f32 to vector<1x32xf32>
    %188 = arith.mulf %187, %186 : vector<1x32xf32>
    %cst_65 = arith.constant 5.000000e-01 : f32
    %189 = vector.broadcast %cst_65 : f32 to vector<1x32xf32>
    %190 = arith.addf %188, %189 : vector<1x32xf32>
    %191 = vector.extract_strided_slice %180 {offsets = [0, 64], sizes = [1, 32], strides = [1, 1]} : vector<1x128xf32> to vector<1x32xf32>
    %cst_66 = arith.constant 5.000000e-01 : f32
    %192 = vector.broadcast %cst_66 : f32 to vector<1x32xf32>
    %193 = arith.mulf %192, %191 : vector<1x32xf32>
    %cst_67 = arith.constant 5.000000e-01 : f32
    %194 = vector.broadcast %cst_67 : f32 to vector<1x32xf32>
    %195 = arith.addf %193, %194 : vector<1x32xf32>
    %196 = vector.extract_strided_slice %180 {offsets = [0, 96], sizes = [1, 32], strides = [1, 1]} : vector<1x128xf32> to vector<1x32xf32>
    %197 = arith.mulf %190, %172 : vector<1x32xf32>
    %198 = arith.mulf %185, %196 : vector<1x32xf32>
    %199 = arith.addf %197, %198 : vector<1x32xf32>
    %200 = math.tanh %199 : vector<1x32xf32>
    %201 = arith.mulf %195, %200 : vector<1x32xf32>
    %c6 = arith.constant 6 : index
    %c0_68 = arith.constant 0 : index
    %202 = vector.load %arg7[%c6, %c0_68] : memref<8x32xf32, #tpu.memory_space<vmem>>, vector<1x32xf32>
    tpu.vector_store %arg7[%c6, %c0_68], %201 {strides = array<i32>} : memref<8x32xf32, #tpu.memory_space<vmem>>, vector<1x32xf32>,
    %203 = vector.extract_strided_slice %9 {offsets = [7, 0], sizes = [1, 128], strides = [1, 1]} : vector<8x128xf32> to vector<1x128xf32>
    %204 = arith.truncf %201 : vector<1x32xf32> to vector<1x32xbf16>
    %cst_69 = arith.constant dense<0.000000e+00> : vector<1x128xf32>
    %205 = tpu.matmul %204, %11, %cst_69 {dimension_numbers = #tpu.dot_dimension_numbers<[1], [0], [0], [1], [0, 0, 1, 1], [], []>} : vector<1x32xbf16>, vector<32x128xbf16>, vector<1x128xf32> -> vector<1x128xf32>
    %206 = arith.addf %203, %205 : vector<1x128xf32>
    %207 = math.tanh %206 : vector<1x128xf32>
    %208 = vector.extract_strided_slice %207 {offsets = [0, 0], sizes = [1, 32], strides = [1, 1]} : vector<1x128xf32> to vector<1x32xf32>
    %cst_70 = arith.constant 5.000000e-01 : f32
    %209 = vector.broadcast %cst_70 : f32 to vector<1x32xf32>
    %210 = arith.mulf %209, %208 : vector<1x32xf32>
    %cst_71 = arith.constant 5.000000e-01 : f32
    %211 = vector.broadcast %cst_71 : f32 to vector<1x32xf32>
    %212 = arith.addf %210, %211 : vector<1x32xf32>
    %213 = vector.extract_strided_slice %207 {offsets = [0, 32], sizes = [1, 32], strides = [1, 1]} : vector<1x128xf32> to vector<1x32xf32>
    %cst_72 = arith.constant 5.000000e-01 : f32
    %214 = vector.broadcast %cst_72 : f32 to vector<1x32xf32>
    %215 = arith.mulf %214, %213 : vector<1x32xf32>
    %cst_73 = arith.constant 5.000000e-01 : f32
    %216 = vector.broadcast %cst_73 : f32 to vector<1x32xf32>
    %217 = arith.addf %215, %216 : vector<1x32xf32>
    %218 = vector.extract_strided_slice %207 {offsets = [0, 64], sizes = [1, 32], strides = [1, 1]} : vector<1x128xf32> to vector<1x32xf32>
    %cst_74 = arith.constant 5.000000e-01 : f32
    %219 = vector.broadcast %cst_74 : f32 to vector<1x32xf32>
    %220 = arith.mulf %219, %218 : vector<1x32xf32>
    %cst_75 = arith.constant 5.000000e-01 : f32
    %221 = vector.broadcast %cst_75 : f32 to vector<1x32xf32>
    %222 = arith.addf %220, %221 : vector<1x32xf32>
    %223 = vector.extract_strided_slice %207 {offsets = [0, 96], sizes = [1, 32], strides = [1, 1]} : vector<1x128xf32> to vector<1x32xf32>
    %224 = arith.mulf %217, %199 : vector<1x32xf32>
    %225 = arith.mulf %212, %223 : vector<1x32xf32>
    %226 = arith.addf %224, %225 : vector<1x32xf32>
    %227 = math.tanh %226 : vector<1x32xf32>
    %228 = arith.mulf %222, %227 : vector<1x32xf32>
    %c7 = arith.constant 7 : index
    %c0_76 = arith.constant 0 : index
    %229 = vector.load %arg7[%c7, %c0_76] : memref<8x32xf32, #tpu.memory_space<vmem>>, vector<1x32xf32>
    tpu.vector_store %arg7[%c7, %c0_76], %228 {strides = array<i32>} : memref<8x32xf32, #tpu.memory_space<vmem>>, vector<1x32xf32>,
    %c0_77 = arith.constant 0 : index
    %c0_78 = arith.constant 0 : index
    %230 = vector.load %arg6[%c0_77, %c0_78] : memref<6x32xf32, #tpu.memory_space<vmem>>, vector<1x32xf32>
    tpu.vector_store %arg6[%c0_77, %c0_78], %228 {strides = array<i32>} : memref<6x32xf32, #tpu.memory_space<vmem>>, vector<1x32xf32>,
    %c3_79 = arith.constant 3 : index
    %c0_80 = arith.constant 0 : index
    %231 = vector.load %arg6[%c3_79, %c0_80] : memref<6x32xf32, #tpu.memory_space<vmem>>, vector<1x32xf32>
    tpu.vector_store %arg6[%c3_79, %c0_80], %226 {strides = array<i32>} : memref<6x32xf32, #tpu.memory_space<vmem>>, vector<1x32xf32>,
    %c0_81 = arith.constant 0 : index
    %c0_82 = arith.constant 0 : index
    %232 = vector.load %arg7[%c0_81, %c0_82] : memref<8x32xf32, #tpu.memory_space<vmem>>, vector<8x32xf32>
    %233 = arith.truncf %232 : vector<8x32xf32> to vector<8x32xbf16>
    %c3_83 = arith.constant 3 : index
    %c0_84 = arith.constant 0 : index
    %c0_85 = arith.constant 0 : index
    %234 = vector.load %arg2[%c3_83, %c0_84, %c0_85] : memref<5x32x128xbf16, #tpu.memory_space<vmem>>, vector<1x32x128xbf16>
    %235 = vector.shape_cast %234 : vector<1x32x128xbf16> to vector<32x128xbf16>
    %cst_86 = arith.constant dense<0.000000e+00> : vector<8x128xf32>
    %236 = tpu.matmul %233, %235, %cst_86 {dimension_numbers = #tpu.dot_dimension_numbers<[1], [0], [0], [1], [0, 0, 1, 1], [], []>} : vector<8x32xbf16>, vector<32x128xbf16>, vector<8x128xf32> -> vector<8x128xf32>
    %c0_87 = arith.constant 0 : index
    %c0_88 = arith.constant 0 : index
    %237 = vector.load %arg3[%c0_87, %c0_88] : memref<2x128xf32, #tpu.memory_space<vmem>>, vector<1x128xf32>
    %238 = vector.broadcast %237 : vector<1x128xf32> to vector<8x128xf32>
    %239 = arith.addf %236, %238 : vector<8x128xf32>
    %c1_89 = arith.constant 1 : index
    %c0_90 = arith.constant 0 : index
    %c0_91 = arith.constant 0 : index
    %240 = vector.load %arg2[%c1_89, %c0_90, %c0_91] : memref<5x32x128xbf16, #tpu.memory_space<vmem>>, vector<1x32x128xbf16>
    %241 = vector.shape_cast %240 : vector<1x32x128xbf16> to vector<32x128xbf16>
    %c1_92 = arith.constant 1 : index
    %c0_93 = arith.constant 0 : index
    %242 = vector.load %arg4[%c1_92, %c0_93] : memref<6x32xf32, #tpu.memory_space<vmem>>, vector<1x32xf32>
    %c4_94 = arith.constant 4 : index
    %c0_95 = arith.constant 0 : index
    %243 = vector.load %arg4[%c4_94, %c0_95] : memref<6x32xf32, #tpu.memory_space<vmem>>, vector<1x32xf32>
    %244 = vector.extract_strided_slice %239 {offsets = [0, 0], sizes = [1, 128], strides = [1, 1]} : vector<8x128xf32> to vector<1x128xf32>
    %245 = arith.truncf %242 : vector<1x32xf32> to vector<1x32xbf16>
    %cst_96 = arith.constant dense<0.000000e+00> : vector<1x128xf32>
    %246 = tpu.matmul %245, %241, %cst_96 {dimension_numbers = #tpu.dot_dimension_numbers<[1], [0], [0], [1], [0, 0, 1, 1], [], []>} : vector<1x32xbf16>, vector<32x128xbf16>, vector<1x128xf32> -> vector<1x128xf32>
    %247 = arith.addf %244, %246 : vector<1x128xf32>
    %248 = math.tanh %247 : vector<1x128xf32>
    %249 = vector.extract_strided_slice %248 {offsets = [0, 0], sizes = [1, 32], strides = [1, 1]} : vector<1x128xf32> to vector<1x32xf32>
    %cst_97 = arith.constant 5.000000e-01 : f32
    %250 = vector.broadcast %cst_97 : f32 to vector<1x32xf32>
    %251 = arith.mulf %250, %249 : vector<1x32xf32>
    %cst_98 = arith.constant 5.000000e-01 : f32
    %252 = vector.broadcast %cst_98 : f32 to vector<1x32xf32>
    %253 = arith.addf %251, %252 : vector<1x32xf32>
    %254 = vector.extract_strided_slice %248 {offsets = [0, 32], sizes = [1, 32], strides = [1, 1]} : vector<1x128xf32> to vector<1x32xf32>
    %cst_99 = arith.constant 5.000000e-01 : f32
    %255 = vector.broadcast %cst_99 : f32 to vector<1x32xf32>
    %256 = arith.mulf %255, %254 : vector<1x32xf32>
    %cst_100 = arith.constant 5.000000e-01 : f32
    %257 = vector.broadcast %cst_100 : f32 to vector<1x32xf32>
    %258 = arith.addf %256, %257 : vector<1x32xf32>
    %259 = vector.extract_strided_slice %248 {offsets = [0, 64], sizes = [1, 32], strides = [1, 1]} : vector<1x128xf32> to vector<1x32xf32>
    %cst_101 = arith.constant 5.000000e-01 : f32
    %260 = vector.broadcast %cst_101 : f32 to vector<1x32xf32>
    %261 = arith.mulf %260, %259 : vector<1x32xf32>
    %cst_102 = arith.constant 5.000000e-01 : f32
    %262 = vector.broadcast %cst_102 : f32 to vector<1x32xf32>
    %263 = arith.addf %261, %262 : vector<1x32xf32>
    %264 = vector.extract_strided_slice %248 {offsets = [0, 96], sizes = [1, 32], strides = [1, 1]} : vector<1x128xf32> to vector<1x32xf32>
    %265 = arith.mulf %258, %243 : vector<1x32xf32>
    %266 = arith.mulf %253, %264 : vector<1x32xf32>
    %267 = arith.addf %265, %266 : vector<1x32xf32>
    %268 = math.tanh %267 : vector<1x32xf32>
    %269 = arith.mulf %263, %268 : vector<1x32xf32>
    %c0_103 = arith.constant 0 : index
    %c0_104 = arith.constant 0 : index
    %270 = vector.load %arg7[%c0_103, %c0_104] : memref<8x32xf32, #tpu.memory_space<vmem>>, vector<1x32xf32>
    tpu.vector_store %arg7[%c0_103, %c0_104], %269 {strides = array<i32>} : memref<8x32xf32, #tpu.memory_space<vmem>>, vector<1x32xf32>,
    %271 = vector.extract_strided_slice %239 {offsets = [1, 0], sizes = [1, 128], strides = [1, 1]} : vector<8x128xf32> to vector<1x128xf32>
    %272 = arith.truncf %269 : vector<1x32xf32> to vector<1x32xbf16>
    %cst_105 = arith.constant dense<0.000000e+00> : vector<1x128xf32>
    %273 = tpu.matmul %272, %241, %cst_105 {dimension_numbers = #tpu.dot_dimension_numbers<[1], [0], [0], [1], [0, 0, 1, 1], [], []>} : vector<1x32xbf16>, vector<32x128xbf16>, vector<1x128xf32> -> vector<1x128xf32>
    %274 = arith.addf %271, %273 : vector<1x128xf32>
    %275 = math.tanh %274 : vector<1x128xf32>
    %276 = vector.extract_strided_slice %275 {offsets = [0, 0], sizes = [1, 32], strides = [1, 1]} : vector<1x128xf32> to vector<1x32xf32>
    %cst_106 = arith.constant 5.000000e-01 : f32
    %277 = vector.broadcast %cst_106 : f32 to vector<1x32xf32>
    %278 = arith.mulf %277, %276 : vector<1x32xf32>
    %cst_107 = arith.constant 5.000000e-01 : f32
    %279 = vector.broadcast %cst_107 : f32 to vector<1x32xf32>
    %280 = arith.addf %278, %279 : vector<1x32xf32>
    %281 = vector.extract_strided_slice %275 {offsets = [0, 32], sizes = [1, 32], strides = [1, 1]} : vector<1x128xf32> to vector<1x32xf32>
    %cst_108 = arith.constant 5.000000e-01 : f32
    %282 = vector.broadcast %cst_108 : f32 to vector<1x32xf32>
    %283 = arith.mulf %282, %281 : vector<1x32xf32>
    %cst_109 = arith.constant 5.000000e-01 : f32
    %284 = vector.broadcast %cst_109 : f32 to vector<1x32xf32>
    %285 = arith.addf %283, %284 : vector<1x32xf32>
    %286 = vector.extract_strided_slice %275 {offsets = [0, 64], sizes = [1, 32], strides = [1, 1]} : vector<1x128xf32> to vector<1x32xf32>
    %cst_110 = arith.constant 5.000000e-01 : f32
    %287 = vector.broadcast %cst_110 : f32 to vector<1x32xf32>
    %288 = arith.mulf %287, %286 : vector<1x32xf32>
    %cst_111 = arith.constant 5.000000e-01 : f32
    %289 = vector.broadcast %cst_111 : f32 to vector<1x32xf32>
    %290 = arith.addf %288, %289 : vector<1x32xf32>
    %291 = vector.extract_strided_slice %275 {offsets = [0, 96], sizes = [1, 32], strides = [1, 1]} : vector<1x128xf32> to vector<1x32xf32>
    %292 = arith.mulf %285, %267 : vector<1x32xf32>
    %293 = arith.mulf %280, %291 : vector<1x32xf32>
    %294 = arith.addf %292, %293 : vector<1x32xf32>
    %295 = math.tanh %294 : vector<1x32xf32>
    %296 = arith.mulf %290, %295 : vector<1x32xf32>
    %c1_112 = arith.constant 1 : index
    %c0_113 = arith.constant 0 : index
    %297 = vector.load %arg7[%c1_112, %c0_113] : memref<8x32xf32, #tpu.memory_space<vmem>>, vector<1x32xf32>
    tpu.vector_store %arg7[%c1_112, %c0_113], %296 {strides = array<i32>} : memref<8x32xf32, #tpu.memory_space<vmem>>, vector<1x32xf32>,
    %298 = vector.extract_strided_slice %239 {offsets = [2, 0], sizes = [1, 128], strides = [1, 1]} : vector<8x128xf32> to vector<1x128xf32>
    %299 = arith.truncf %296 : vector<1x32xf32> to vector<1x32xbf16>
    %cst_114 = arith.constant dense<0.000000e+00> : vector<1x128xf32>
    %300 = tpu.matmul %299, %241, %cst_114 {dimension_numbers = #tpu.dot_dimension_numbers<[1], [0], [0], [1], [0, 0, 1, 1], [], []>} : vector<1x32xbf16>, vector<32x128xbf16>, vector<1x128xf32> -> vector<1x128xf32>
    %301 = arith.addf %298, %300 : vector<1x128xf32>
    %302 = math.tanh %301 : vector<1x128xf32>
    %303 = vector.extract_strided_slice %302 {offsets = [0, 0], sizes = [1, 32], strides = [1, 1]} : vector<1x128xf32> to vector<1x32xf32>
    %cst_115 = arith.constant 5.000000e-01 : f32
    %304 = vector.broadcast %cst_115 : f32 to vector<1x32xf32>
    %305 = arith.mulf %304, %303 : vector<1x32xf32>
    %cst_116 = arith.constant 5.000000e-01 : f32
    %306 = vector.broadcast %cst_116 : f32 to vector<1x32xf32>
    %307 = arith.addf %305, %306 : vector<1x32xf32>
    %308 = vector.extract_strided_slice %302 {offsets = [0, 32], sizes = [1, 32], strides = [1, 1]} : vector<1x128xf32> to vector<1x32xf32>
    %cst_117 = arith.constant 5.000000e-01 : f32
    %309 = vector.broadcast %cst_117 : f32 to vector<1x32xf32>
    %310 = arith.mulf %309, %308 : vector<1x32xf32>
    %cst_118 = arith.constant 5.000000e-01 : f32
    %311 = vector.broadcast %cst_118 : f32 to vector<1x32xf32>
    %312 = arith.addf %310, %311 : vector<1x32xf32>
    %313 = vector.extract_strided_slice %302 {offsets = [0, 64], sizes = [1, 32], strides = [1, 1]} : vector<1x128xf32> to vector<1x32xf32>
    %cst_119 = arith.constant 5.000000e-01 : f32
    %314 = vector.broadcast %cst_119 : f32 to vector<1x32xf32>
    %315 = arith.mulf %314, %313 : vector<1x32xf32>
    %cst_120 = arith.constant 5.000000e-01 : f32
    %316 = vector.broadcast %cst_120 : f32 to vector<1x32xf32>
    %317 = arith.addf %315, %316 : vector<1x32xf32>
    %318 = vector.extract_strided_slice %302 {offsets = [0, 96], sizes = [1, 32], strides = [1, 1]} : vector<1x128xf32> to vector<1x32xf32>
    %319 = arith.mulf %312, %294 : vector<1x32xf32>
    %320 = arith.mulf %307, %318 : vector<1x32xf32>
    %321 = arith.addf %319, %320 : vector<1x32xf32>
    %322 = math.tanh %321 : vector<1x32xf32>
    %323 = arith.mulf %317, %322 : vector<1x32xf32>
    %c2_121 = arith.constant 2 : index
    %c0_122 = arith.constant 0 : index
    %324 = vector.load %arg7[%c2_121, %c0_122] : memref<8x32xf32, #tpu.memory_space<vmem>>, vector<1x32xf32>
    tpu.vector_store %arg7[%c2_121, %c0_122], %323 {strides = array<i32>} : memref<8x32xf32, #tpu.memory_space<vmem>>, vector<1x32xf32>,
    %325 = vector.extract_strided_slice %239 {offsets = [3, 0], sizes = [1, 128], strides = [1, 1]} : vector<8x128xf32> to vector<1x128xf32>
    %326 = arith.truncf %323 : vector<1x32xf32> to vector<1x32xbf16>
    %cst_123 = arith.constant dense<0.000000e+00> : vector<1x128xf32>
    %327 = tpu.matmul %326, %241, %cst_123 {dimension_numbers = #tpu.dot_dimension_numbers<[1], [0], [0], [1], [0, 0, 1, 1], [], []>} : vector<1x32xbf16>, vector<32x128xbf16>, vector<1x128xf32> -> vector<1x128xf32>
    %328 = arith.addf %325, %327 : vector<1x128xf32>
    %329 = math.tanh %328 : vector<1x128xf32>
    %330 = vector.extract_strided_slice %329 {offsets = [0, 0], sizes = [1, 32], strides = [1, 1]} : vector<1x128xf32> to vector<1x32xf32>
    %cst_124 = arith.constant 5.000000e-01 : f32
    %331 = vector.broadcast %cst_124 : f32 to vector<1x32xf32>
    %332 = arith.mulf %331, %330 : vector<1x32xf32>
    %cst_125 = arith.constant 5.000000e-01 : f32
    %333 = vector.broadcast %cst_125 : f32 to vector<1x32xf32>
    %334 = arith.addf %332, %333 : vector<1x32xf32>
    %335 = vector.extract_strided_slice %329 {offsets = [0, 32], sizes = [1, 32], strides = [1, 1]} : vector<1x128xf32> to vector<1x32xf32>
    %cst_126 = arith.constant 5.000000e-01 : f32
    %336 = vector.broadcast %cst_126 : f32 to vector<1x32xf32>
    %337 = arith.mulf %336, %335 : vector<1x32xf32>
    %cst_127 = arith.constant 5.000000e-01 : f32
    %338 = vector.broadcast %cst_127 : f32 to vector<1x32xf32>
    %339 = arith.addf %337, %338 : vector<1x32xf32>
    %340 = vector.extract_strided_slice %329 {offsets = [0, 64], sizes = [1, 32], strides = [1, 1]} : vector<1x128xf32> to vector<1x32xf32>
    %cst_128 = arith.constant 5.000000e-01 : f32
    %341 = vector.broadcast %cst_128 : f32 to vector<1x32xf32>
    %342 = arith.mulf %341, %340 : vector<1x32xf32>
    %cst_129 = arith.constant 5.000000e-01 : f32
    %343 = vector.broadcast %cst_129 : f32 to vector<1x32xf32>
    %344 = arith.addf %342, %343 : vector<1x32xf32>
    %345 = vector.extract_strided_slice %329 {offsets = [0, 96], sizes = [1, 32], strides = [1, 1]} : vector<1x128xf32> to vector<1x32xf32>
    %346 = arith.mulf %339, %321 : vector<1x32xf32>
    %347 = arith.mulf %334, %345 : vector<1x32xf32>
    %348 = arith.addf %346, %347 : vector<1x32xf32>
    %349 = math.tanh %348 : vector<1x32xf32>
    %350 = arith.mulf %344, %349 : vector<1x32xf32>
    %c3_130 = arith.constant 3 : index
    %c0_131 = arith.constant 0 : index
    %351 = vector.load %arg7[%c3_130, %c0_131] : memref<8x32xf32, #tpu.memory_space<vmem>>, vector<1x32xf32>
    tpu.vector_store %arg7[%c3_130, %c0_131], %350 {strides = array<i32>} : memref<8x32xf32, #tpu.memory_space<vmem>>, vector<1x32xf32>,
    %352 = vector.extract_strided_slice %239 {offsets = [4, 0], sizes = [1, 128], strides = [1, 1]} : vector<8x128xf32> to vector<1x128xf32>
    %353 = arith.truncf %350 : vector<1x32xf32> to vector<1x32xbf16>
    %cst_132 = arith.constant dense<0.000000e+00> : vector<1x128xf32>
    %354 = tpu.matmul %353, %241, %cst_132 {dimension_numbers = #tpu.dot_dimension_numbers<[1], [0], [0], [1], [0, 0, 1, 1], [], []>} : vector<1x32xbf16>, vector<32x128xbf16>, vector<1x128xf32> -> vector<1x128xf32>
    %355 = arith.addf %352, %354 : vector<1x128xf32>
    %356 = math.tanh %355 : vector<1x128xf32>
    %357 = vector.extract_strided_slice %356 {offsets = [0, 0], sizes = [1, 32], strides = [1, 1]} : vector<1x128xf32> to vector<1x32xf32>
    %cst_133 = arith.constant 5.000000e-01 : f32
    %358 = vector.broadcast %cst_133 : f32 to vector<1x32xf32>
    %359 = arith.mulf %358, %357 : vector<1x32xf32>
    %cst_134 = arith.constant 5.000000e-01 : f32
    %360 = vector.broadcast %cst_134 : f32 to vector<1x32xf32>
    %361 = arith.addf %359, %360 : vector<1x32xf32>
    %362 = vector.extract_strided_slice %356 {offsets = [0, 32], sizes = [1, 32], strides = [1, 1]} : vector<1x128xf32> to vector<1x32xf32>
    %cst_135 = arith.constant 5.000000e-01 : f32
    %363 = vector.broadcast %cst_135 : f32 to vector<1x32xf32>
    %364 = arith.mulf %363, %362 : vector<1x32xf32>
    %cst_136 = arith.constant 5.000000e-01 : f32
    %365 = vector.broadcast %cst_136 : f32 to vector<1x32xf32>
    %366 = arith.addf %364, %365 : vector<1x32xf32>
    %367 = vector.extract_strided_slice %356 {offsets = [0, 64], sizes = [1, 32], strides = [1, 1]} : vector<1x128xf32> to vector<1x32xf32>
    %cst_137 = arith.constant 5.000000e-01 : f32
    %368 = vector.broadcast %cst_137 : f32 to vector<1x32xf32>
    %369 = arith.mulf %368, %367 : vector<1x32xf32>
    %cst_138 = arith.constant 5.000000e-01 : f32
    %370 = vector.broadcast %cst_138 : f32 to vector<1x32xf32>
    %371 = arith.addf %369, %370 : vector<1x32xf32>
    %372 = vector.extract_strided_slice %356 {offsets = [0, 96], sizes = [1, 32], strides = [1, 1]} : vector<1x128xf32> to vector<1x32xf32>
    %373 = arith.mulf %366, %348 : vector<1x32xf32>
    %374 = arith.mulf %361, %372 : vector<1x32xf32>
    %375 = arith.addf %373, %374 : vector<1x32xf32>
    %376 = math.tanh %375 : vector<1x32xf32>
    %377 = arith.mulf %371, %376 : vector<1x32xf32>
    %c4_139 = arith.constant 4 : index
    %c0_140 = arith.constant 0 : index
    %378 = vector.load %arg7[%c4_139, %c0_140] : memref<8x32xf32, #tpu.memory_space<vmem>>, vector<1x32xf32>
    tpu.vector_store %arg7[%c4_139, %c0_140], %377 {strides = array<i32>} : memref<8x32xf32, #tpu.memory_space<vmem>>, vector<1x32xf32>,
    %379 = vector.extract_strided_slice %239 {offsets = [5, 0], sizes = [1, 128], strides = [1, 1]} : vector<8x128xf32> to vector<1x128xf32>
    %380 = arith.truncf %377 : vector<1x32xf32> to vector<1x32xbf16>
    %cst_141 = arith.constant dense<0.000000e+00> : vector<1x128xf32>
    %381 = tpu.matmul %380, %241, %cst_141 {dimension_numbers = #tpu.dot_dimension_numbers<[1], [0], [0], [1], [0, 0, 1, 1], [], []>} : vector<1x32xbf16>, vector<32x128xbf16>, vector<1x128xf32> -> vector<1x128xf32>
    %382 = arith.addf %379, %381 : vector<1x128xf32>
    %383 = math.tanh %382 : vector<1x128xf32>
    %384 = vector.extract_strided_slice %383 {offsets = [0, 0], sizes = [1, 32], strides = [1, 1]} : vector<1x128xf32> to vector<1x32xf32>
    %cst_142 = arith.constant 5.000000e-01 : f32
    %385 = vector.broadcast %cst_142 : f32 to vector<1x32xf32>
    %386 = arith.mulf %385, %384 : vector<1x32xf32>
    %cst_143 = arith.constant 5.000000e-01 : f32
    %387 = vector.broadcast %cst_143 : f32 to vector<1x32xf32>
    %388 = arith.addf %386, %387 : vector<1x32xf32>
    %389 = vector.extract_strided_slice %383 {offsets = [0, 32], sizes = [1, 32], strides = [1, 1]} : vector<1x128xf32> to vector<1x32xf32>
    %cst_144 = arith.constant 5.000000e-01 : f32
    %390 = vector.broadcast %cst_144 : f32 to vector<1x32xf32>
    %391 = arith.mulf %390, %389 : vector<1x32xf32>
    %cst_145 = arith.constant 5.000000e-01 : f32
    %392 = vector.broadcast %cst_145 : f32 to vector<1x32xf32>
    %393 = arith.addf %391, %392 : vector<1x32xf32>
    %394 = vector.extract_strided_slice %383 {offsets = [0, 64], sizes = [1, 32], strides = [1, 1]} : vector<1x128xf32> to vector<1x32xf32>
    %cst_146 = arith.constant 5.000000e-01 : f32
    %395 = vector.broadcast %cst_146 : f32 to vector<1x32xf32>
    %396 = arith.mulf %395, %394 : vector<1x32xf32>
    %cst_147 = arith.constant 5.000000e-01 : f32
    %397 = vector.broadcast %cst_147 : f32 to vector<1x32xf32>
    %398 = arith.addf %396, %397 : vector<1x32xf32>
    %399 = vector.extract_strided_slice %383 {offsets = [0, 96], sizes = [1, 32], strides = [1, 1]} : vector<1x128xf32> to vector<1x32xf32>
    %400 = arith.mulf %393, %375 : vector<1x32xf32>
    %401 = arith.mulf %388, %399 : vector<1x32xf32>
    %402 = arith.addf %400, %401 : vector<1x32xf32>
    %403 = math.tanh %402 : vector<1x32xf32>
    %404 = arith.mulf %398, %403 : vector<1x32xf32>
    %c5_148 = arith.constant 5 : index
    %c0_149 = arith.constant 0 : index
    %405 = vector.load %arg7[%c5_148, %c0_149] : memref<8x32xf32, #tpu.memory_space<vmem>>, vector<1x32xf32>
    tpu.vector_store %arg7[%c5_148, %c0_149], %404 {strides = array<i32>} : memref<8x32xf32, #tpu.memory_space<vmem>>, vector<1x32xf32>,
    %406 = vector.extract_strided_slice %239 {offsets = [6, 0], sizes = [1, 128], strides = [1, 1]} : vector<8x128xf32> to vector<1x128xf32>
    %407 = arith.truncf %404 : vector<1x32xf32> to vector<1x32xbf16>
    %cst_150 = arith.constant dense<0.000000e+00> : vector<1x128xf32>
    %408 = tpu.matmul %407, %241, %cst_150 {dimension_numbers = #tpu.dot_dimension_numbers<[1], [0], [0], [1], [0, 0, 1, 1], [], []>} : vector<1x32xbf16>, vector<32x128xbf16>, vector<1x128xf32> -> vector<1x128xf32>
    %409 = arith.addf %406, %408 : vector<1x128xf32>
    %410 = math.tanh %409 : vector<1x128xf32>
    %411 = vector.extract_strided_slice %410 {offsets = [0, 0], sizes = [1, 32], strides = [1, 1]} : vector<1x128xf32> to vector<1x32xf32>
    %cst_151 = arith.constant 5.000000e-01 : f32
    %412 = vector.broadcast %cst_151 : f32 to vector<1x32xf32>
    %413 = arith.mulf %412, %411 : vector<1x32xf32>
    %cst_152 = arith.constant 5.000000e-01 : f32
    %414 = vector.broadcast %cst_152 : f32 to vector<1x32xf32>
    %415 = arith.addf %413, %414 : vector<1x32xf32>
    %416 = vector.extract_strided_slice %410 {offsets = [0, 32], sizes = [1, 32], strides = [1, 1]} : vector<1x128xf32> to vector<1x32xf32>
    %cst_153 = arith.constant 5.000000e-01 : f32
    %417 = vector.broadcast %cst_153 : f32 to vector<1x32xf32>
    %418 = arith.mulf %417, %416 : vector<1x32xf32>
    %cst_154 = arith.constant 5.000000e-01 : f32
    %419 = vector.broadcast %cst_154 : f32 to vector<1x32xf32>
    %420 = arith.addf %418, %419 : vector<1x32xf32>
    %421 = vector.extract_strided_slice %410 {offsets = [0, 64], sizes = [1, 32], strides = [1, 1]} : vector<1x128xf32> to vector<1x32xf32>
    %cst_155 = arith.constant 5.000000e-01 : f32
    %422 = vector.broadcast %cst_155 : f32 to vector<1x32xf32>
    %423 = arith.mulf %422, %421 : vector<1x32xf32>
    %cst_156 = arith.constant 5.000000e-01 : f32
    %424 = vector.broadcast %cst_156 : f32 to vector<1x32xf32>
    %425 = arith.addf %423, %424 : vector<1x32xf32>
    %426 = vector.extract_strided_slice %410 {offsets = [0, 96], sizes = [1, 32], strides = [1, 1]} : vector<1x128xf32> to vector<1x32xf32>
    %427 = arith.mulf %420, %402 : vector<1x32xf32>
    %428 = arith.mulf %415, %426 : vector<1x32xf32>
    %429 = arith.addf %427, %428 : vector<1x32xf32>
    %430 = math.tanh %429 : vector<1x32xf32>
    %431 = arith.mulf %425, %430 : vector<1x32xf32>
    %c6_157 = arith.constant 6 : index
    %c0_158 = arith.constant 0 : index
    %432 = vector.load %arg7[%c6_157, %c0_158] : memref<8x32xf32, #tpu.memory_space<vmem>>, vector<1x32xf32>
    tpu.vector_store %arg7[%c6_157, %c0_158], %431 {strides = array<i32>} : memref<8x32xf32, #tpu.memory_space<vmem>>, vector<1x32xf32>,
    %433 = vector.extract_strided_slice %239 {offsets = [7, 0], sizes = [1, 128], strides = [1, 1]} : vector<8x128xf32> to vector<1x128xf32>
    %434 = arith.truncf %431 : vector<1x32xf32> to vector<1x32xbf16>
    %cst_159 = arith.constant dense<0.000000e+00> : vector<1x128xf32>
    %435 = tpu.matmul %434, %241, %cst_159 {dimension_numbers = #tpu.dot_dimension_numbers<[1], [0], [0], [1], [0, 0, 1, 1], [], []>} : vector<1x32xbf16>, vector<32x128xbf16>, vector<1x128xf32> -> vector<1x128xf32>
    %436 = arith.addf %433, %435 : vector<1x128xf32>
    %437 = math.tanh %436 : vector<1x128xf32>
    %438 = vector.extract_strided_slice %437 {offsets = [0, 0], sizes = [1, 32], strides = [1, 1]} : vector<1x128xf32> to vector<1x32xf32>
    %cst_160 = arith.constant 5.000000e-01 : f32
    %439 = vector.broadcast %cst_160 : f32 to vector<1x32xf32>
    %440 = arith.mulf %439, %438 : vector<1x32xf32>
    %cst_161 = arith.constant 5.000000e-01 : f32
    %441 = vector.broadcast %cst_161 : f32 to vector<1x32xf32>
    %442 = arith.addf %440, %441 : vector<1x32xf32>
    %443 = vector.extract_strided_slice %437 {offsets = [0, 32], sizes = [1, 32], strides = [1, 1]} : vector<1x128xf32> to vector<1x32xf32>
    %cst_162 = arith.constant 5.000000e-01 : f32
    %444 = vector.broadcast %cst_162 : f32 to vector<1x32xf32>
    %445 = arith.mulf %444, %443 : vector<1x32xf32>
    %cst_163 = arith.constant 5.000000e-01 : f32
    %446 = vector.broadcast %cst_163 : f32 to vector<1x32xf32>
    %447 = arith.addf %445, %446 : vector<1x32xf32>
    %448 = vector.extract_strided_slice %437 {offsets = [0, 64], sizes = [1, 32], strides = [1, 1]} : vector<1x128xf32> to vector<1x32xf32>
    %cst_164 = arith.constant 5.000000e-01 : f32
    %449 = vector.broadcast %cst_164 : f32 to vector<1x32xf32>
    %450 = arith.mulf %449, %448 : vector<1x32xf32>
    %cst_165 = arith.constant 5.000000e-01 : f32
    %451 = vector.broadcast %cst_165 : f32 to vector<1x32xf32>
    %452 = arith.addf %450, %451 : vector<1x32xf32>
    %453 = vector.extract_strided_slice %437 {offsets = [0, 96], sizes = [1, 32], strides = [1, 1]} : vector<1x128xf32> to vector<1x32xf32>
    %454 = arith.mulf %447, %429 : vector<1x32xf32>
    %455 = arith.mulf %442, %453 : vector<1x32xf32>
    %456 = arith.addf %454, %455 : vector<1x32xf32>
    %457 = math.tanh %456 : vector<1x32xf32>
    %458 = arith.mulf %452, %457 : vector<1x32xf32>
    %c7_166 = arith.constant 7 : index
    %c0_167 = arith.constant 0 : index
    %459 = vector.load %arg7[%c7_166, %c0_167] : memref<8x32xf32, #tpu.memory_space<vmem>>, vector<1x32xf32>
    tpu.vector_store %arg7[%c7_166, %c0_167], %458 {strides = array<i32>} : memref<8x32xf32, #tpu.memory_space<vmem>>, vector<1x32xf32>,
    %c1_168 = arith.constant 1 : index
    %c0_169 = arith.constant 0 : index
    %460 = vector.load %arg6[%c1_168, %c0_169] : memref<6x32xf32, #tpu.memory_space<vmem>>, vector<1x32xf32>
    tpu.vector_store %arg6[%c1_168, %c0_169], %458 {strides = array<i32>} : memref<6x32xf32, #tpu.memory_space<vmem>>, vector<1x32xf32>,
    %c4_170 = arith.constant 4 : index
    %c0_171 = arith.constant 0 : index
    %461 = vector.load %arg6[%c4_170, %c0_171] : memref<6x32xf32, #tpu.memory_space<vmem>>, vector<1x32xf32>
    tpu.vector_store %arg6[%c4_170, %c0_171], %456 {strides = array<i32>} : memref<6x32xf32, #tpu.memory_space<vmem>>, vector<1x32xf32>,
    %c0_172 = arith.constant 0 : index
    %c0_173 = arith.constant 0 : index
    %462 = vector.load %arg7[%c0_172, %c0_173] : memref<8x32xf32, #tpu.memory_space<vmem>>, vector<8x32xf32>
    %463 = arith.truncf %462 : vector<8x32xf32> to vector<8x32xbf16>
    %c4_174 = arith.constant 4 : index
    %c0_175 = arith.constant 0 : index
    %c0_176 = arith.constant 0 : index
    %464 = vector.load %arg2[%c4_174, %c0_175, %c0_176] : memref<5x32x128xbf16, #tpu.memory_space<vmem>>, vector<1x32x128xbf16>
    %465 = vector.shape_cast %464 : vector<1x32x128xbf16> to vector<32x128xbf16>
    %cst_177 = arith.constant dense<0.000000e+00> : vector<8x128xf32>
    %466 = tpu.matmul %463, %465, %cst_177 {dimension_numbers = #tpu.dot_dimension_numbers<[1], [0], [0], [1], [0, 0, 1, 1], [], []>} : vector<8x32xbf16>, vector<32x128xbf16>, vector<8x128xf32> -> vector<8x128xf32>
    %c1_178 = arith.constant 1 : index
    %c0_179 = arith.constant 0 : index
    %467 = vector.load %arg3[%c1_178, %c0_179] : memref<2x128xf32, #tpu.memory_space<vmem>>, vector<1x128xf32>
    %468 = vector.broadcast %467 : vector<1x128xf32> to vector<8x128xf32>
    %469 = arith.addf %466, %468 : vector<8x128xf32>
    %c2_180 = arith.constant 2 : index
    %c0_181 = arith.constant 0 : index
    %c0_182 = arith.constant 0 : index
    %470 = vector.load %arg2[%c2_180, %c0_181, %c0_182] : memref<5x32x128xbf16, #tpu.memory_space<vmem>>, vector<1x32x128xbf16>
    %471 = vector.shape_cast %470 : vector<1x32x128xbf16> to vector<32x128xbf16>
    %c2_183 = arith.constant 2 : index
    %c0_184 = arith.constant 0 : index
    %472 = vector.load %arg4[%c2_183, %c0_184] : memref<6x32xf32, #tpu.memory_space<vmem>>, vector<1x32xf32>
    %c5_185 = arith.constant 5 : index
    %c0_186 = arith.constant 0 : index
    %473 = vector.load %arg4[%c5_185, %c0_186] : memref<6x32xf32, #tpu.memory_space<vmem>>, vector<1x32xf32>
    %474 = vector.extract_strided_slice %469 {offsets = [0, 0], sizes = [1, 128], strides = [1, 1]} : vector<8x128xf32> to vector<1x128xf32>
    %475 = arith.truncf %472 : vector<1x32xf32> to vector<1x32xbf16>
    %cst_187 = arith.constant dense<0.000000e+00> : vector<1x128xf32>
    %476 = tpu.matmul %475, %471, %cst_187 {dimension_numbers = #tpu.dot_dimension_numbers<[1], [0], [0], [1], [0, 0, 1, 1], [], []>} : vector<1x32xbf16>, vector<32x128xbf16>, vector<1x128xf32> -> vector<1x128xf32>
    %477 = arith.addf %474, %476 : vector<1x128xf32>
    %478 = math.tanh %477 : vector<1x128xf32>
    %479 = vector.extract_strided_slice %478 {offsets = [0, 0], sizes = [1, 32], strides = [1, 1]} : vector<1x128xf32> to vector<1x32xf32>
    %cst_188 = arith.constant 5.000000e-01 : f32
    %480 = vector.broadcast %cst_188 : f32 to vector<1x32xf32>
    %481 = arith.mulf %480, %479 : vector<1x32xf32>
    %cst_189 = arith.constant 5.000000e-01 : f32
    %482 = vector.broadcast %cst_189 : f32 to vector<1x32xf32>
    %483 = arith.addf %481, %482 : vector<1x32xf32>
    %484 = vector.extract_strided_slice %478 {offsets = [0, 32], sizes = [1, 32], strides = [1, 1]} : vector<1x128xf32> to vector<1x32xf32>
    %cst_190 = arith.constant 5.000000e-01 : f32
    %485 = vector.broadcast %cst_190 : f32 to vector<1x32xf32>
    %486 = arith.mulf %485, %484 : vector<1x32xf32>
    %cst_191 = arith.constant 5.000000e-01 : f32
    %487 = vector.broadcast %cst_191 : f32 to vector<1x32xf32>
    %488 = arith.addf %486, %487 : vector<1x32xf32>
    %489 = vector.extract_strided_slice %478 {offsets = [0, 64], sizes = [1, 32], strides = [1, 1]} : vector<1x128xf32> to vector<1x32xf32>
    %cst_192 = arith.constant 5.000000e-01 : f32
    %490 = vector.broadcast %cst_192 : f32 to vector<1x32xf32>
    %491 = arith.mulf %490, %489 : vector<1x32xf32>
    %cst_193 = arith.constant 5.000000e-01 : f32
    %492 = vector.broadcast %cst_193 : f32 to vector<1x32xf32>
    %493 = arith.addf %491, %492 : vector<1x32xf32>
    %494 = vector.extract_strided_slice %478 {offsets = [0, 96], sizes = [1, 32], strides = [1, 1]} : vector<1x128xf32> to vector<1x32xf32>
    %495 = arith.mulf %488, %473 : vector<1x32xf32>
    %496 = arith.mulf %483, %494 : vector<1x32xf32>
    %497 = arith.addf %495, %496 : vector<1x32xf32>
    %498 = math.tanh %497 : vector<1x32xf32>
    %499 = arith.mulf %493, %498 : vector<1x32xf32>
    %c0_194 = arith.constant 0 : index
    %c0_195 = arith.constant 0 : index
    %500 = vector.load %arg7[%c0_194, %c0_195] : memref<8x32xf32, #tpu.memory_space<vmem>>, vector<1x32xf32>
    tpu.vector_store %arg7[%c0_194, %c0_195], %499 {strides = array<i32>} : memref<8x32xf32, #tpu.memory_space<vmem>>, vector<1x32xf32>,
    %501 = vector.extract_strided_slice %469 {offsets = [1, 0], sizes = [1, 128], strides = [1, 1]} : vector<8x128xf32> to vector<1x128xf32>
    %502 = arith.truncf %499 : vector<1x32xf32> to vector<1x32xbf16>
    %cst_196 = arith.constant dense<0.000000e+00> : vector<1x128xf32>
    %503 = tpu.matmul %502, %471, %cst_196 {dimension_numbers = #tpu.dot_dimension_numbers<[1], [0], [0], [1], [0, 0, 1, 1], [], []>} : vector<1x32xbf16>, vector<32x128xbf16>, vector<1x128xf32> -> vector<1x128xf32>
    %504 = arith.addf %501, %503 : vector<1x128xf32>
    %505 = math.tanh %504 : vector<1x128xf32>
    %506 = vector.extract_strided_slice %505 {offsets = [0, 0], sizes = [1, 32], strides = [1, 1]} : vector<1x128xf32> to vector<1x32xf32>
    %cst_197 = arith.constant 5.000000e-01 : f32
    %507 = vector.broadcast %cst_197 : f32 to vector<1x32xf32>
    %508 = arith.mulf %507, %506 : vector<1x32xf32>
    %cst_198 = arith.constant 5.000000e-01 : f32
    %509 = vector.broadcast %cst_198 : f32 to vector<1x32xf32>
    %510 = arith.addf %508, %509 : vector<1x32xf32>
    %511 = vector.extract_strided_slice %505 {offsets = [0, 32], sizes = [1, 32], strides = [1, 1]} : vector<1x128xf32> to vector<1x32xf32>
    %cst_199 = arith.constant 5.000000e-01 : f32
    %512 = vector.broadcast %cst_199 : f32 to vector<1x32xf32>
    %513 = arith.mulf %512, %511 : vector<1x32xf32>
    %cst_200 = arith.constant 5.000000e-01 : f32
    %514 = vector.broadcast %cst_200 : f32 to vector<1x32xf32>
    %515 = arith.addf %513, %514 : vector<1x32xf32>
    %516 = vector.extract_strided_slice %505 {offsets = [0, 64], sizes = [1, 32], strides = [1, 1]} : vector<1x128xf32> to vector<1x32xf32>
    %cst_201 = arith.constant 5.000000e-01 : f32
    %517 = vector.broadcast %cst_201 : f32 to vector<1x32xf32>
    %518 = arith.mulf %517, %516 : vector<1x32xf32>
    %cst_202 = arith.constant 5.000000e-01 : f32
    %519 = vector.broadcast %cst_202 : f32 to vector<1x32xf32>
    %520 = arith.addf %518, %519 : vector<1x32xf32>
    %521 = vector.extract_strided_slice %505 {offsets = [0, 96], sizes = [1, 32], strides = [1, 1]} : vector<1x128xf32> to vector<1x32xf32>
    %522 = arith.mulf %515, %497 : vector<1x32xf32>
    %523 = arith.mulf %510, %521 : vector<1x32xf32>
    %524 = arith.addf %522, %523 : vector<1x32xf32>
    %525 = math.tanh %524 : vector<1x32xf32>
    %526 = arith.mulf %520, %525 : vector<1x32xf32>
    %c1_203 = arith.constant 1 : index
    %c0_204 = arith.constant 0 : index
    %527 = vector.load %arg7[%c1_203, %c0_204] : memref<8x32xf32, #tpu.memory_space<vmem>>, vector<1x32xf32>
    tpu.vector_store %arg7[%c1_203, %c0_204], %526 {strides = array<i32>} : memref<8x32xf32, #tpu.memory_space<vmem>>, vector<1x32xf32>,
    %528 = vector.extract_strided_slice %469 {offsets = [2, 0], sizes = [1, 128], strides = [1, 1]} : vector<8x128xf32> to vector<1x128xf32>
    %529 = arith.truncf %526 : vector<1x32xf32> to vector<1x32xbf16>
    %cst_205 = arith.constant dense<0.000000e+00> : vector<1x128xf32>
    %530 = tpu.matmul %529, %471, %cst_205 {dimension_numbers = #tpu.dot_dimension_numbers<[1], [0], [0], [1], [0, 0, 1, 1], [], []>} : vector<1x32xbf16>, vector<32x128xbf16>, vector<1x128xf32> -> vector<1x128xf32>
    %531 = arith.addf %528, %530 : vector<1x128xf32>
    %532 = math.tanh %531 : vector<1x128xf32>
    %533 = vector.extract_strided_slice %532 {offsets = [0, 0], sizes = [1, 32], strides = [1, 1]} : vector<1x128xf32> to vector<1x32xf32>
    %cst_206 = arith.constant 5.000000e-01 : f32
    %534 = vector.broadcast %cst_206 : f32 to vector<1x32xf32>
    %535 = arith.mulf %534, %533 : vector<1x32xf32>
    %cst_207 = arith.constant 5.000000e-01 : f32
    %536 = vector.broadcast %cst_207 : f32 to vector<1x32xf32>
    %537 = arith.addf %535, %536 : vector<1x32xf32>
    %538 = vector.extract_strided_slice %532 {offsets = [0, 32], sizes = [1, 32], strides = [1, 1]} : vector<1x128xf32> to vector<1x32xf32>
    %cst_208 = arith.constant 5.000000e-01 : f32
    %539 = vector.broadcast %cst_208 : f32 to vector<1x32xf32>
    %540 = arith.mulf %539, %538 : vector<1x32xf32>
    %cst_209 = arith.constant 5.000000e-01 : f32
    %541 = vector.broadcast %cst_209 : f32 to vector<1x32xf32>
    %542 = arith.addf %540, %541 : vector<1x32xf32>
    %543 = vector.extract_strided_slice %532 {offsets = [0, 64], sizes = [1, 32], strides = [1, 1]} : vector<1x128xf32> to vector<1x32xf32>
    %cst_210 = arith.constant 5.000000e-01 : f32
    %544 = vector.broadcast %cst_210 : f32 to vector<1x32xf32>
    %545 = arith.mulf %544, %543 : vector<1x32xf32>
    %cst_211 = arith.constant 5.000000e-01 : f32
    %546 = vector.broadcast %cst_211 : f32 to vector<1x32xf32>
    %547 = arith.addf %545, %546 : vector<1x32xf32>
    %548 = vector.extract_strided_slice %532 {offsets = [0, 96], sizes = [1, 32], strides = [1, 1]} : vector<1x128xf32> to vector<1x32xf32>
    %549 = arith.mulf %542, %524 : vector<1x32xf32>
    %550 = arith.mulf %537, %548 : vector<1x32xf32>
    %551 = arith.addf %549, %550 : vector<1x32xf32>
    %552 = math.tanh %551 : vector<1x32xf32>
    %553 = arith.mulf %547, %552 : vector<1x32xf32>
    %c2_212 = arith.constant 2 : index
    %c0_213 = arith.constant 0 : index
    %554 = vector.load %arg7[%c2_212, %c0_213] : memref<8x32xf32, #tpu.memory_space<vmem>>, vector<1x32xf32>
    tpu.vector_store %arg7[%c2_212, %c0_213], %553 {strides = array<i32>} : memref<8x32xf32, #tpu.memory_space<vmem>>, vector<1x32xf32>,
    %555 = vector.extract_strided_slice %469 {offsets = [3, 0], sizes = [1, 128], strides = [1, 1]} : vector<8x128xf32> to vector<1x128xf32>
    %556 = arith.truncf %553 : vector<1x32xf32> to vector<1x32xbf16>
    %cst_214 = arith.constant dense<0.000000e+00> : vector<1x128xf32>
    %557 = tpu.matmul %556, %471, %cst_214 {dimension_numbers = #tpu.dot_dimension_numbers<[1], [0], [0], [1], [0, 0, 1, 1], [], []>} : vector<1x32xbf16>, vector<32x128xbf16>, vector<1x128xf32> -> vector<1x128xf32>
    %558 = arith.addf %555, %557 : vector<1x128xf32>
    %559 = math.tanh %558 : vector<1x128xf32>
    %560 = vector.extract_strided_slice %559 {offsets = [0, 0], sizes = [1, 32], strides = [1, 1]} : vector<1x128xf32> to vector<1x32xf32>
    %cst_215 = arith.constant 5.000000e-01 : f32
    %561 = vector.broadcast %cst_215 : f32 to vector<1x32xf32>
    %562 = arith.mulf %561, %560 : vector<1x32xf32>
    %cst_216 = arith.constant 5.000000e-01 : f32
    %563 = vector.broadcast %cst_216 : f32 to vector<1x32xf32>
    %564 = arith.addf %562, %563 : vector<1x32xf32>
    %565 = vector.extract_strided_slice %559 {offsets = [0, 32], sizes = [1, 32], strides = [1, 1]} : vector<1x128xf32> to vector<1x32xf32>
    %cst_217 = arith.constant 5.000000e-01 : f32
    %566 = vector.broadcast %cst_217 : f32 to vector<1x32xf32>
    %567 = arith.mulf %566, %565 : vector<1x32xf32>
    %cst_218 = arith.constant 5.000000e-01 : f32
    %568 = vector.broadcast %cst_218 : f32 to vector<1x32xf32>
    %569 = arith.addf %567, %568 : vector<1x32xf32>
    %570 = vector.extract_strided_slice %559 {offsets = [0, 64], sizes = [1, 32], strides = [1, 1]} : vector<1x128xf32> to vector<1x32xf32>
    %cst_219 = arith.constant 5.000000e-01 : f32
    %571 = vector.broadcast %cst_219 : f32 to vector<1x32xf32>
    %572 = arith.mulf %571, %570 : vector<1x32xf32>
    %cst_220 = arith.constant 5.000000e-01 : f32
    %573 = vector.broadcast %cst_220 : f32 to vector<1x32xf32>
    %574 = arith.addf %572, %573 : vector<1x32xf32>
    %575 = vector.extract_strided_slice %559 {offsets = [0, 96], sizes = [1, 32], strides = [1, 1]} : vector<1x128xf32> to vector<1x32xf32>
    %576 = arith.mulf %569, %551 : vector<1x32xf32>
    %577 = arith.mulf %564, %575 : vector<1x32xf32>
    %578 = arith.addf %576, %577 : vector<1x32xf32>
    %579 = math.tanh %578 : vector<1x32xf32>
    %580 = arith.mulf %574, %579 : vector<1x32xf32>
    %c3_221 = arith.constant 3 : index
    %c0_222 = arith.constant 0 : index
    %581 = vector.load %arg7[%c3_221, %c0_222] : memref<8x32xf32, #tpu.memory_space<vmem>>, vector<1x32xf32>
    tpu.vector_store %arg7[%c3_221, %c0_222], %580 {strides = array<i32>} : memref<8x32xf32, #tpu.memory_space<vmem>>, vector<1x32xf32>,
    %582 = vector.extract_strided_slice %469 {offsets = [4, 0], sizes = [1, 128], strides = [1, 1]} : vector<8x128xf32> to vector<1x128xf32>
    %583 = arith.truncf %580 : vector<1x32xf32> to vector<1x32xbf16>
    %cst_223 = arith.constant dense<0.000000e+00> : vector<1x128xf32>
    %584 = tpu.matmul %583, %471, %cst_223 {dimension_numbers = #tpu.dot_dimension_numbers<[1], [0], [0], [1], [0, 0, 1, 1], [], []>} : vector<1x32xbf16>, vector<32x128xbf16>, vector<1x128xf32> -> vector<1x128xf32>
    %585 = arith.addf %582, %584 : vector<1x128xf32>
    %586 = math.tanh %585 : vector<1x128xf32>
    %587 = vector.extract_strided_slice %586 {offsets = [0, 0], sizes = [1, 32], strides = [1, 1]} : vector<1x128xf32> to vector<1x32xf32>
    %cst_224 = arith.constant 5.000000e-01 : f32
    %588 = vector.broadcast %cst_224 : f32 to vector<1x32xf32>
    %589 = arith.mulf %588, %587 : vector<1x32xf32>
    %cst_225 = arith.constant 5.000000e-01 : f32
    %590 = vector.broadcast %cst_225 : f32 to vector<1x32xf32>
    %591 = arith.addf %589, %590 : vector<1x32xf32>
    %592 = vector.extract_strided_slice %586 {offsets = [0, 32], sizes = [1, 32], strides = [1, 1]} : vector<1x128xf32> to vector<1x32xf32>
    %cst_226 = arith.constant 5.000000e-01 : f32
    %593 = vector.broadcast %cst_226 : f32 to vector<1x32xf32>
    %594 = arith.mulf %593, %592 : vector<1x32xf32>
    %cst_227 = arith.constant 5.000000e-01 : f32
    %595 = vector.broadcast %cst_227 : f32 to vector<1x32xf32>
    %596 = arith.addf %594, %595 : vector<1x32xf32>
    %597 = vector.extract_strided_slice %586 {offsets = [0, 64], sizes = [1, 32], strides = [1, 1]} : vector<1x128xf32> to vector<1x32xf32>
    %cst_228 = arith.constant 5.000000e-01 : f32
    %598 = vector.broadcast %cst_228 : f32 to vector<1x32xf32>
    %599 = arith.mulf %598, %597 : vector<1x32xf32>
    %cst_229 = arith.constant 5.000000e-01 : f32
    %600 = vector.broadcast %cst_229 : f32 to vector<1x32xf32>
    %601 = arith.addf %599, %600 : vector<1x32xf32>
    %602 = vector.extract_strided_slice %586 {offsets = [0, 96], sizes = [1, 32], strides = [1, 1]} : vector<1x128xf32> to vector<1x32xf32>
    %603 = arith.mulf %596, %578 : vector<1x32xf32>
    %604 = arith.mulf %591, %602 : vector<1x32xf32>
    %605 = arith.addf %603, %604 : vector<1x32xf32>
    %606 = math.tanh %605 : vector<1x32xf32>
    %607 = arith.mulf %601, %606 : vector<1x32xf32>
    %c4_230 = arith.constant 4 : index
    %c0_231 = arith.constant 0 : index
    %608 = vector.load %arg7[%c4_230, %c0_231] : memref<8x32xf32, #tpu.memory_space<vmem>>, vector<1x32xf32>
    tpu.vector_store %arg7[%c4_230, %c0_231], %607 {strides = array<i32>} : memref<8x32xf32, #tpu.memory_space<vmem>>, vector<1x32xf32>,
    %609 = vector.extract_strided_slice %469 {offsets = [5, 0], sizes = [1, 128], strides = [1, 1]} : vector<8x128xf32> to vector<1x128xf32>
    %610 = arith.truncf %607 : vector<1x32xf32> to vector<1x32xbf16>
    %cst_232 = arith.constant dense<0.000000e+00> : vector<1x128xf32>
    %611 = tpu.matmul %610, %471, %cst_232 {dimension_numbers = #tpu.dot_dimension_numbers<[1], [0], [0], [1], [0, 0, 1, 1], [], []>} : vector<1x32xbf16>, vector<32x128xbf16>, vector<1x128xf32> -> vector<1x128xf32>
    %612 = arith.addf %609, %611 : vector<1x128xf32>
    %613 = math.tanh %612 : vector<1x128xf32>
    %614 = vector.extract_strided_slice %613 {offsets = [0, 0], sizes = [1, 32], strides = [1, 1]} : vector<1x128xf32> to vector<1x32xf32>
    %cst_233 = arith.constant 5.000000e-01 : f32
    %615 = vector.broadcast %cst_233 : f32 to vector<1x32xf32>
    %616 = arith.mulf %615, %614 : vector<1x32xf32>
    %cst_234 = arith.constant 5.000000e-01 : f32
    %617 = vector.broadcast %cst_234 : f32 to vector<1x32xf32>
    %618 = arith.addf %616, %617 : vector<1x32xf32>
    %619 = vector.extract_strided_slice %613 {offsets = [0, 32], sizes = [1, 32], strides = [1, 1]} : vector<1x128xf32> to vector<1x32xf32>
    %cst_235 = arith.constant 5.000000e-01 : f32
    %620 = vector.broadcast %cst_235 : f32 to vector<1x32xf32>
    %621 = arith.mulf %620, %619 : vector<1x32xf32>
    %cst_236 = arith.constant 5.000000e-01 : f32
    %622 = vector.broadcast %cst_236 : f32 to vector<1x32xf32>
    %623 = arith.addf %621, %622 : vector<1x32xf32>
    %624 = vector.extract_strided_slice %613 {offsets = [0, 64], sizes = [1, 32], strides = [1, 1]} : vector<1x128xf32> to vector<1x32xf32>
    %cst_237 = arith.constant 5.000000e-01 : f32
    %625 = vector.broadcast %cst_237 : f32 to vector<1x32xf32>
    %626 = arith.mulf %625, %624 : vector<1x32xf32>
    %cst_238 = arith.constant 5.000000e-01 : f32
    %627 = vector.broadcast %cst_238 : f32 to vector<1x32xf32>
    %628 = arith.addf %626, %627 : vector<1x32xf32>
    %629 = vector.extract_strided_slice %613 {offsets = [0, 96], sizes = [1, 32], strides = [1, 1]} : vector<1x128xf32> to vector<1x32xf32>
    %630 = arith.mulf %623, %605 : vector<1x32xf32>
    %631 = arith.mulf %618, %629 : vector<1x32xf32>
    %632 = arith.addf %630, %631 : vector<1x32xf32>
    %633 = math.tanh %632 : vector<1x32xf32>
    %634 = arith.mulf %628, %633 : vector<1x32xf32>
    %c5_239 = arith.constant 5 : index
    %c0_240 = arith.constant 0 : index
    %635 = vector.load %arg7[%c5_239, %c0_240] : memref<8x32xf32, #tpu.memory_space<vmem>>, vector<1x32xf32>
    tpu.vector_store %arg7[%c5_239, %c0_240], %634 {strides = array<i32>} : memref<8x32xf32, #tpu.memory_space<vmem>>, vector<1x32xf32>,
    %636 = vector.extract_strided_slice %469 {offsets = [6, 0], sizes = [1, 128], strides = [1, 1]} : vector<8x128xf32> to vector<1x128xf32>
    %637 = arith.truncf %634 : vector<1x32xf32> to vector<1x32xbf16>
    %cst_241 = arith.constant dense<0.000000e+00> : vector<1x128xf32>
    %638 = tpu.matmul %637, %471, %cst_241 {dimension_numbers = #tpu.dot_dimension_numbers<[1], [0], [0], [1], [0, 0, 1, 1], [], []>} : vector<1x32xbf16>, vector<32x128xbf16>, vector<1x128xf32> -> vector<1x128xf32>
    %639 = arith.addf %636, %638 : vector<1x128xf32>
    %640 = math.tanh %639 : vector<1x128xf32>
    %641 = vector.extract_strided_slice %640 {offsets = [0, 0], sizes = [1, 32], strides = [1, 1]} : vector<1x128xf32> to vector<1x32xf32>
    %cst_242 = arith.constant 5.000000e-01 : f32
    %642 = vector.broadcast %cst_242 : f32 to vector<1x32xf32>
    %643 = arith.mulf %642, %641 : vector<1x32xf32>
    %cst_243 = arith.constant 5.000000e-01 : f32
    %644 = vector.broadcast %cst_243 : f32 to vector<1x32xf32>
    %645 = arith.addf %643, %644 : vector<1x32xf32>
    %646 = vector.extract_strided_slice %640 {offsets = [0, 32], sizes = [1, 32], strides = [1, 1]} : vector<1x128xf32> to vector<1x32xf32>
    %cst_244 = arith.constant 5.000000e-01 : f32
    %647 = vector.broadcast %cst_244 : f32 to vector<1x32xf32>
    %648 = arith.mulf %647, %646 : vector<1x32xf32>
    %cst_245 = arith.constant 5.000000e-01 : f32
    %649 = vector.broadcast %cst_245 : f32 to vector<1x32xf32>
    %650 = arith.addf %648, %649 : vector<1x32xf32>
    %651 = vector.extract_strided_slice %640 {offsets = [0, 64], sizes = [1, 32], strides = [1, 1]} : vector<1x128xf32> to vector<1x32xf32>
    %cst_246 = arith.constant 5.000000e-01 : f32
    %652 = vector.broadcast %cst_246 : f32 to vector<1x32xf32>
    %653 = arith.mulf %652, %651 : vector<1x32xf32>
    %cst_247 = arith.constant 5.000000e-01 : f32
    %654 = vector.broadcast %cst_247 : f32 to vector<1x32xf32>
    %655 = arith.addf %653, %654 : vector<1x32xf32>
    %656 = vector.extract_strided_slice %640 {offsets = [0, 96], sizes = [1, 32], strides = [1, 1]} : vector<1x128xf32> to vector<1x32xf32>
    %657 = arith.mulf %650, %632 : vector<1x32xf32>
    %658 = arith.mulf %645, %656 : vector<1x32xf32>
    %659 = arith.addf %657, %658 : vector<1x32xf32>
    %660 = math.tanh %659 : vector<1x32xf32>
    %661 = arith.mulf %655, %660 : vector<1x32xf32>
    %c6_248 = arith.constant 6 : index
    %c0_249 = arith.constant 0 : index
    %662 = vector.load %arg7[%c6_248, %c0_249] : memref<8x32xf32, #tpu.memory_space<vmem>>, vector<1x32xf32>
    tpu.vector_store %arg7[%c6_248, %c0_249], %661 {strides = array<i32>} : memref<8x32xf32, #tpu.memory_space<vmem>>, vector<1x32xf32>,
    %663 = vector.extract_strided_slice %469 {offsets = [7, 0], sizes = [1, 128], strides = [1, 1]} : vector<8x128xf32> to vector<1x128xf32>
    %664 = arith.truncf %661 : vector<1x32xf32> to vector<1x32xbf16>
    %cst_250 = arith.constant dense<0.000000e+00> : vector<1x128xf32>
    %665 = tpu.matmul %664, %471, %cst_250 {dimension_numbers = #tpu.dot_dimension_numbers<[1], [0], [0], [1], [0, 0, 1, 1], [], []>} : vector<1x32xbf16>, vector<32x128xbf16>, vector<1x128xf32> -> vector<1x128xf32>
    %666 = arith.addf %663, %665 : vector<1x128xf32>
    %667 = math.tanh %666 : vector<1x128xf32>
    %668 = vector.extract_strided_slice %667 {offsets = [0, 0], sizes = [1, 32], strides = [1, 1]} : vector<1x128xf32> to vector<1x32xf32>
    %cst_251 = arith.constant 5.000000e-01 : f32
    %669 = vector.broadcast %cst_251 : f32 to vector<1x32xf32>
    %670 = arith.mulf %669, %668 : vector<1x32xf32>
    %cst_252 = arith.constant 5.000000e-01 : f32
    %671 = vector.broadcast %cst_252 : f32 to vector<1x32xf32>
    %672 = arith.addf %670, %671 : vector<1x32xf32>
    %673 = vector.extract_strided_slice %667 {offsets = [0, 32], sizes = [1, 32], strides = [1, 1]} : vector<1x128xf32> to vector<1x32xf32>
    %cst_253 = arith.constant 5.000000e-01 : f32
    %674 = vector.broadcast %cst_253 : f32 to vector<1x32xf32>
    %675 = arith.mulf %674, %673 : vector<1x32xf32>
    %cst_254 = arith.constant 5.000000e-01 : f32
    %676 = vector.broadcast %cst_254 : f32 to vector<1x32xf32>
    %677 = arith.addf %675, %676 : vector<1x32xf32>
    %678 = vector.extract_strided_slice %667 {offsets = [0, 64], sizes = [1, 32], strides = [1, 1]} : vector<1x128xf32> to vector<1x32xf32>
    %cst_255 = arith.constant 5.000000e-01 : f32
    %679 = vector.broadcast %cst_255 : f32 to vector<1x32xf32>
    %680 = arith.mulf %679, %678 : vector<1x32xf32>
    %cst_256 = arith.constant 5.000000e-01 : f32
    %681 = vector.broadcast %cst_256 : f32 to vector<1x32xf32>
    %682 = arith.addf %680, %681 : vector<1x32xf32>
    %683 = vector.extract_strided_slice %667 {offsets = [0, 96], sizes = [1, 32], strides = [1, 1]} : vector<1x128xf32> to vector<1x32xf32>
    %684 = arith.mulf %677, %659 : vector<1x32xf32>
    %685 = arith.mulf %672, %683 : vector<1x32xf32>
    %686 = arith.addf %684, %685 : vector<1x32xf32>
    %687 = math.tanh %686 : vector<1x32xf32>
    %688 = arith.mulf %682, %687 : vector<1x32xf32>
    %c7_257 = arith.constant 7 : index
    %c0_258 = arith.constant 0 : index
    %689 = vector.load %arg7[%c7_257, %c0_258] : memref<8x32xf32, #tpu.memory_space<vmem>>, vector<1x32xf32>
    tpu.vector_store %arg7[%c7_257, %c0_258], %688 {strides = array<i32>} : memref<8x32xf32, #tpu.memory_space<vmem>>, vector<1x32xf32>,
    %c2_259 = arith.constant 2 : index
    %c0_260 = arith.constant 0 : index
    %690 = vector.load %arg6[%c2_259, %c0_260] : memref<6x32xf32, #tpu.memory_space<vmem>>, vector<1x32xf32>
    tpu.vector_store %arg6[%c2_259, %c0_260], %688 {strides = array<i32>} : memref<6x32xf32, #tpu.memory_space<vmem>>, vector<1x32xf32>,
    %c5_261 = arith.constant 5 : index
    %c0_262 = arith.constant 0 : index
    %691 = vector.load %arg6[%c5_261, %c0_262] : memref<6x32xf32, #tpu.memory_space<vmem>>, vector<1x32xf32>
    tpu.vector_store %arg6[%c5_261, %c0_262], %686 {strides = array<i32>} : memref<6x32xf32, #tpu.memory_space<vmem>>, vector<1x32xf32>,
    %c0_263 = arith.constant 0 : index
    %c0_264 = arith.constant 0 : index
    %692 = vector.load %arg7[%c0_263, %c0_264] : memref<8x32xf32, #tpu.memory_space<vmem>>, vector<8x8xf32>
    %c0_265 = arith.constant 0 : index
    %c0_266 = arith.constant 0 : index
    %693 = vector.load %arg5[%c0_265, %c0_266] : memref<8x8xf32, #tpu.memory_space<vmem>>, vector<8x8xf32>
    tpu.vector_store %arg5[%c0_265, %c0_266], %692 {strides = array<i32>} : memref<8x8xf32, #tpu.memory_space<vmem>>, vector<8x8xf32>,
    return
  }
}

</mosaic_0001>

<llo_original>
// kernel: model_forward_pallas.1
$region0: #{model_forward_pallas.1}
  #allocation0 [shape = 'u32[]', space=smem, size = 0x4, offset = 0x4, fixed_abs, tag = 'smem constant byte address 0x4 - core index']
  #allocation1 [shape = 'u32[144,128]{1,0:T(1,128)}', space=vmem, size = 0x12000, scoped, tag = 'internal scratch']
  #allocation2 [shape = 'f32[8,32]{1,0:T(8,128)}', space=vmem, size = 0x1000, scoped, tag = 'scratch operand']
  %s0 = inlined_call_operand.vmem [shape: s32[8,1], index: 0, kind: input, shape index: {}]
  %s1 = inlined_call_operand.vmem [shape: bf16[8,128], index: 1, kind: input, shape index: {}]
  %s2 = inlined_call_operand.hbm [shape: bf16[5,32,128], index: 2, kind: input, shape index: {}]
  %s3 = inlined_call_operand.vmem [shape: f32[2,128], index: 3, kind: input, shape index: {}]
  %s4 = inlined_call_operand.vmem [shape: f32[6,32], index: 4, kind: input, shape index: {}, may-alias: {4,6}]
  %s5 = inlined_call_operand.hbm [shape: f32[8,8], index: 5, kind: output, shape index: {0}]
  %s6 = inlined_call_operand.vmem [shape: f32[6,32], index: 6, kind: output, shape index: {1}, may-alias: {4,6}]
  %7 = xla_tuple %s5, %s6
  %s8 = sld [smem:[#allocation0]]
  $region42: #{model_forward_pallas.1} parent=0
    _
  %s10 = ssub.s32 1, %s8
  %s11 = scalar_select 0, %s10, %s8
  $region1: #{model_forward_pallas.1} parent=0
    #allocation3 [shape = 'u8[40960]{0}', space=vmem, size = 0xa000, scoped, tag = 'input window, operand 2, single buffered']
    #allocation4 [shape = 's32[1]{0}', space=sflag, size = 0x4, scoped, tag = 'scoped memory for model_forward_pallas.1']
    #allocation5 [shape = 's32[1]{0}', space=sflag, size = 0x4, scoped, tag = 'scoped memory for model_forward_pallas.1']
    #allocation6 [shape = 'u8[4096]{0}', space=vmem, size = 0x1000, scoped, tag = 'output window, operand 0, single buffered']
    %12 = vsyncpa [#allocation4], 0
    %13 = vsyncpa [#allocation5], 0
    // Predicated region
    $region2: #{model_forward_pallas.1} parent=1 // pred_check
      _
    $region3: #{model_forward_pallas.1} parent=1 // pred_check_branch
      %15 = sbr.rel (0) target = $region5
    $region4: #{model_forward_pallas.1} parent=1 // pred_region
      _
    $region5: #{model_forward_pallas.1} parent=1 // pred_fallthru
      _
    // Predicated region
    $region6: #{model_forward_pallas.1} parent=1 // pred_check
      _
    $region7: #{model_forward_pallas.1} parent=1 // pred_check_branch
      %17 = sbr.rel (0) target = $region9
    $region8: #{model_forward_pallas.1} parent=1 // pred_region
      _
    $region9: #{model_forward_pallas.1} parent=1 // pred_fallthru
      _
    // Predicated region
    $region10: #{model_forward_pallas.1} parent=1 // pred_check
      _
    $region11: #{model_forward_pallas.1} parent=1 // pred_check_branch
      %19 = sbr.rel (0) target = $region13
    $region12: #{model_forward_pallas.1} parent=1 // pred_region
      %s21 = ssub.s32 1280, 1280
      %22 = vsyncadd [#allocation4], %s21
      %s23 = sshll.u32 [#allocation3], 4
      %s24 = int_to_ptr.vmem [resolvable:$true] %s23
      %29 = dma.hbm_to_vmem [thread:$0]  %s2, 1280, %s24, [#allocation4], 64, 64, 4
    $region13: #{model_forward_pallas.1} parent=1 // pred_fallthru
      _
    // Predicated region
    $region14: #{model_forward_pallas.1} parent=1 // pred_check
      _
    $region15: #{model_forward_pallas.1} parent=1 // pred_check_branch
      %31 = sbr.rel (0) target = $region17
    $region16: #{model_forward_pallas.1} parent=1 // pred_region
      _
    $region17: #{model_forward_pallas.1} parent=1 // pred_fallthru
      _
    // Predicated region
    $region18: #{model_forward_pallas.1} parent=1 // pred_check
      _
    $region19: #{model_forward_pallas.1} parent=1 // pred_check_branch
      %33 = sbr.rel (0) target = $region21
    $region20: #{model_forward_pallas.1} parent=1 // pred_region
      _
    $region21: #{model_forward_pallas.1} parent=1 // pred_fallthru
      _
    // Predicated region
    $region22: #{model_forward_pallas.1} parent=1 // pred_check
      _
    $region23: #{model_forward_pallas.1} parent=1 // pred_check_branch
      %35 = sbr.rel (0) target = $region25
    $region24: #{model_forward_pallas.1} parent=1 // pred_region
      %36 = dma.done [#allocation4], 1280
    $region25: #{model_forward_pallas.1} parent=1 // pred_fallthru
      _
    %v38 = vlaneseq
    %v39 = vand.u32 %v38, 127
    %v40 = vld [vmem:[%s0] sm:$0xff]
    %41 = vset.pattern.permute.xlu0 0
    %42 = vperm.xlu0 %41, %v40
    %v43 = vpop.permute.xlu0 %42
    %vm44 = vcmp.eq.s32.totalorder %v43, %v39
    %v45 = vsel %vm44, 1.0, 0.0
    %v46 = vpack.c.bf16 %v45, %v45
    %v47 = vld [vmem:[%s1] sm:$0xf]
    %vm48 = vcmask 64512
    %v50 = vsel %vm48, %v46, 0
    %vm52 = vcmask 1043456
    %v54 = vsel %vm52, %v47, 0
    %56 = vmatprep.subr.bf16.mxu0 0
    %57 = vmatpush1.bf16.msra.mxu0 %v54
    %58 = vmatprep.subr.bf16.mxu0 0
    %59 = vmatpush1.bf16.msra.mxu0 0
    %60 = vmatprep.subr.bf16.mxu0 0
    %61 = vmatpush1.bf16.msra.mxu0 0
    %62 = vmatprep.subr.bf16.mxu0 0
    %63 = vmatpush1.bf16.msra.mxu0 0
    %64 = vmatprep.subr.bf16.mxu0 0
    %65 = vmatpush1.bf16.msra.mxu0 0
    %66 = vmatprep.subr.bf16.mxu0 0
    %67 = vmatpush1.bf16.msra.mxu0 0
    %68 = vmatprep.subr.bf16.mxu0 0
    %69 = vmatpush1.bf16.msra.mxu0 0
    %70 = vmatprep.subr.bf16.mxu0 0
    %71 = vmatpush1.bf16.msra.mxu0 0
    %72 = vmatprep.subr.bf16.mxu0 0
    %73 = vmatpush1.bf16.msra.mxu0 0
    %74 = vmatprep.subr.bf16.mxu0 0
    %75 = vmatpush1.bf16.msra.mxu0 0
    %76 = vmatprep.subr.bf16.mxu0 0
    %77 = vmatpush1.bf16.msra.mxu0 0
    %78 = vmatprep.subr.bf16.mxu0 0
    %79 = vmatpush1.bf16.msra.mxu0 0
    %80 = vmatprep.subr.bf16.mxu0 0
    %81 = vmatpush1.bf16.msra.mxu0 0
    %82 = vmatprep.subr.bf16.mxu0 0
    %83 = vmatpush1.bf16.msra.mxu0 0
    %84 = vmatprep.subr.bf16.mxu0 0
    %85 = vmatpush1.bf16.msra.mxu0 0
    %86 = vmatprep.subr.bf16.mxu0 0
    %87 = vmatpush1.bf16.msra.mxu0 0
    %88 = vmatprep.mubr.bf16.mxu0 0
    %89 = vmatmul.mubr.bf16.gmra.mrb[0].mxu0 %v50
    %v90 = vpop.f32.mrb[0].mxu0
    %v91 = vadd.f32 0.0, %v90
    %v92 = vpop.f32.mrb[0].mxu0
    %v93 = vpop.f32.mrb[0].mxu0
    %v94 = vpop.f32.mrb[0].mxu0
    %95 = vdwg.mxu0
    %v96 = vld [vmem:[#allocation3] sm:$0xf]
    %v97 = vld [vmem:[#allocation3 + $0x4] sm:$0xf]
    %v98 = vld [vmem:[#allocation3 + $0x8] sm:$0xf]
    %v99 = vld [vmem:[#allocation3 + $0xc] sm:$0xf]
    %v100 = vld [vmem:[%s4] sm:$0x1]
    %v101 = vld [vmem:[%s4 + $0x3] sm:$0x1]
    %v102 = vpack.c.bf16 %v100, %v100
    %v107 = vunpack.c.l.b16 %v96
    %v108 = vunpack.c.l.b16 %v97
    %v109 = vunpack.c.l.b16 %v98
    %v110 = vunpack.c.l.b16 %v99
    %v111 = vpack.c.b16 %v108, %v107
    %v112 = vpack.c.b16 %v110, %v109
    %vm115 = vcmask 261120
    %v117 = vsel %vm115, %v102, 0
    %119 = vmatprep.subr.bf16.mxu0 0
    %120 = vmatpush1.bf16.msra.mxu0 %v111
    %121 = vmatprep.subr.bf16.mxu0 0
    %122 = vmatpush1.bf16.msra.mxu0 %v112
    %123 = vmatprep.subr.bf16.mxu0 0
    %124 = vmatpush1.bf16.msra.mxu0 0
    %125 = vmatprep.subr.bf16.mxu0 0
    %126 = vmatpush1.bf16.msra.mxu0 0
    %127 = vmatprep.subr.bf16.mxu0 0
    %128 = vmatpush1.bf16.msra.mxu0 0
    %129 = vmatprep.subr.bf16.mxu0 0
    %130 = vmatpush1.bf16.msra.mxu0 0
    %131 = vmatprep.subr.bf16.mxu0 0
    %132 = vmatpush1.bf16.msra.mxu0 0
    %133 = vmatprep.subr.bf16.mxu0 0
    %134 = vmatpush1.bf16.msra.mxu0 0
    %135 = vmatprep.subr.bf16.mxu0 0
    %136 = vmatpush1.bf16.msra.mxu0 0
    %137 = vmatprep.subr.bf16.mxu0 0
    %138 = vmatpush1.bf16.msra.mxu0 0
    %139 = vmatprep.subr.bf16.mxu0 0
    %140 = vmatpush1.bf16.msra.mxu0 0
    %141 = vmatprep.subr.bf16.mxu0 0
    %142 = vmatpush1.bf16.msra.mxu0 0
    %143 = vmatprep.subr.bf16.mxu0 0
    %144 = vmatpush1.bf16.msra.mxu0 0
    %145 = vmatprep.subr.bf16.mxu0 0
    %146 = vmatpush1.bf16.msra.mxu0 0
    %147 = vmatprep.subr.bf16.mxu0 0
    %148 = vmatpush1.bf16.msra.mxu0 0
    %149 = vmatprep.subr.bf16.mxu0 0
    %150 = vmatpush1.bf16.msra.mxu0 0
    %151 = vmatprep.mubr.bf16.mxu0 0
    %152 = vmatmul.mubr.bf16.gmra.mrb[0].mxu0 %v117
    %v153 = vpop.f32.mrb[0].mxu0
    %v154 = vadd.f32 0.0, %v153
    %v155 = vpop.f32.mrb[0].mxu0
    %v156 = vpop.f32.mrb[0].mxu0
    %v157 = vpop.f32.mrb[0].mxu0
    %158 = vdwg.mxu0
    %v159 = vadd.f32 %v91, %v154
    %v160 = vtanh.pop %v159
    %v161 = vmul.f32 %v160, 0.5
    %v162 = vadd.f32 %v161, 0.5
    %164 = vrot.lane.b32.xlu0 %v101, 32
    %v165 = vpop.permute.xlu0 %164
    %v167 = vmul.f32 %v162, %v165
    %169 = vrot.lane.b32.xlu0 %v160, 32
    %v170 = vpop.permute.xlu0 %169
    %v172 = vmul.f32 %v162, %v170
    %174 = vrot.lane.b32.xlu0 %v172, 32
    %v175 = vpop.permute.xlu0 %174
    %v177 = vadd.f32 %v167, %v175
    %v178 = vtanh.pop %v177
    %180 = vrot.lane.b32.xlu0 %v178, 32
    %v181 = vpop.permute.xlu0 %180
    %v183 = vmul.f32 %v162, %v181
    %185 = vrot.lane.b32.xlu0 %v183, 64
    %v186 = vpop.permute.xlu0 %185
    %vm188 = vcmask 253952
    %189 = vst.msk [vmem:[#allocation2] sm:$0x1] %vm188, %v186
    %v190 = vpack.c.bf16 %v183, %v183
    %192 = vrot.lane.b32.xlu0 %v190, 64
    %v193 = vpop.permute.xlu0 %192
    %v195 = vsel %vm115, %v193, 0
    %197 = vmatprep.subr.bf16.mxu0 0
    %198 = vmatpush1.bf16.msra.mxu0 %v111
    %199 = vmatprep.subr.bf16.mxu0 0
    %200 = vmatpush1.bf16.msra.mxu0 %v112
    %201 = vmatprep.subr.bf16.mxu0 0
    %202 = vmatpush1.bf16.msra.mxu0 0
    %203 = vmatprep.subr.bf16.mxu0 0
    %204 = vmatpush1.bf16.msra.mxu0 0
    %205 = vmatprep.subr.bf16.mxu0 0
    %206 = vmatpush1.bf16.msra.mxu0 0
    %207 = vmatprep.subr.bf16.mxu0 0
    %208 = vmatpush1.bf16.msra.mxu0 0
    %209 = vmatprep.subr.bf16.mxu0 0
    %210 = vmatpush1.bf16.msra.mxu0 0
    %211 = vmatprep.subr.bf16.mxu0 0
    %212 = vmatpush1.bf16.msra.mxu0 0
    %213 = vmatprep.subr.bf16.mxu0 0
    %214 = vmatpush1.bf16.msra.mxu0 0
    %215 = vmatprep.subr.bf16.mxu0 0
    %216 = vmatpush1.bf16.msra.mxu0 0
    %217 = vmatprep.subr.bf16.mxu0 0
    %218 = vmatpush1.bf16.msra.mxu0 0
    %219 = vmatprep.subr.bf16.mxu0 0
    %220 = vmatpush1.bf16.msra.mxu0 0
    %221 = vmatprep.subr.bf16.mxu0 0
    %222 = vmatpush1.bf16.msra.mxu0 0
    %223 = vmatprep.subr.bf16.mxu0 0
    %224 = vmatpush1.bf16.msra.mxu0 0
    %225 = vmatprep.subr.bf16.mxu0 0
    %226 = vmatpush1.bf16.msra.mxu0 0
    %227 = vmatprep.subr.bf16.mxu0 0
    %228 = vmatpush1.bf16.msra.mxu0 0
    %229 = vmatprep.mubr.bf16.mxu0 0
    %230 = vmatmul.mubr.bf16.gmra.mrb[0].mxu0 %v195
    %v231 = vpop.f32.mrb[0].mxu0
    %v232 = vadd.f32 0.0, %v231
    %v233 = vpop.f32.mrb[0].mxu0
    %v234 = vpop.f32.mrb[0].mxu0
    %v235 = vpop.f32.mrb[0].mxu0
    %236 = vdwg.mxu0
    %v238 = vrot.slane %v232, 7
    %v240 = vadd.f32 %v91, %v238
    %v241 = vtanh.pop %v240
    %v242 = vmul.f32 %v241, 0.5
    %v243 = vadd.f32 %v242, 0.5
    %v245 = vrot.slane %v177, 7
    %v247 = vmul.f32 %v243, %v245
    %249 = vrot.lane.b32.xlu0 %v241, 32
    %v250 = vpop.permute.xlu0 %249
    %v252 = vmul.f32 %v243, %v250
    %254 = vrot.lane.b32.xlu0 %v252, 32
    %v255 = vpop.permute.xlu0 %254
    %v257 = vadd.f32 %v247, %v255
    %v258 = vtanh.pop %v257
    %260 = vrot.lane.b32.xlu0 %v258, 32
    %v261 = vpop.permute.xlu0 %260
    %v263 = vmul.f32 %v243, %v261
    %265 = vrot.lane.b32.xlu0 %v263, 64
    %v266 = vpop.permute.xlu0 %265
    %vm268 = vcmask 254977
    %269 = vst.msk [vmem:[#allocation2] sm:$0x2] %vm268, %v266
    %v270 = vpack.c.bf16 %v263, %v263
    %v272 = vshrl.u32 %v270, 16
    %274 = vrot.lane.b32.xlu0 %v272, 64
    %v275 = vpop.permute.xlu0 %274
    %v277 = vsel %vm115, %v275, 0
    %279 = vmatprep.subr.bf16.mxu0 0
    %280 = vmatpush1.bf16.msra.mxu0 %v111
    %281 = vmatprep.subr.bf16.mxu0 0
    %282 = vmatpush1.bf16.msra.mxu0 %v112
    %283 = vmatprep.subr.bf16.mxu0 0
    %284 = vmatpush1.bf16.msra.mxu0 0
    %285 = vmatprep.subr.bf16.mxu0 0
    %286 = vmatpush1.bf16.msra.mxu0 0
    %287 = vmatprep.subr.bf16.mxu0 0
    %288 = vmatpush1.bf16.msra.mxu0 0
    %289 = vmatprep.subr.bf16.mxu0 0
    %290 = vmatpush1.bf16.msra.mxu0 0
    %291 = vmatprep.subr.bf16.mxu0 0
    %292 = vmatpush1.bf16.msra.mxu0 0
    %293 = vmatprep.subr.bf16.mxu0 0
    %294 = vmatpush1.bf16.msra.mxu0 0
    %295 = vmatprep.subr.bf16.mxu0 0
    %296 = vmatpush1.bf16.msra.mxu0 0
    %297 = vmatprep.subr.bf16.mxu0 0
    %298 = vmatpush1.bf16.msra.mxu0 0
    %299 = vmatprep.subr.bf16.mxu0 0
    %300 = vmatpush1.bf16.msra.mxu0 0
    %301 = vmatprep.subr.bf16.mxu0 0
    %302 = vmatpush1.bf16.msra.mxu0 0
    %303 = vmatprep.subr.bf16.mxu0 0
    %304 = vmatpush1.bf16.msra.mxu0 0
    %305 = vmatprep.subr.bf16.mxu0 0
    %306 = vmatpush1.bf16.msra.mxu0 0
    %307 = vmatprep.subr.bf16.mxu0 0
    %308 = vmatpush1.bf16.msra.mxu0 0
    %309 = vmatprep.subr.bf16.mxu0 0
    %310 = vmatpush1.bf16.msra.mxu0 0
    %311 = vmatprep.mubr.bf16.mxu0 0
    %312 = vmatmul.mubr.bf16.gmra.mrb[0].mxu0 %v277
    %v313 = vpop.f32.mrb[0].mxu0
    %v314 = vadd.f32 0.0, %v313
    %v315 = vpop.f32.mrb[0].mxu0
    %v316 = vpop.f32.mrb[0].mxu0
    %v317 = vpop.f32.mrb[0].mxu0
    %318 = vdwg.mxu0
    %v320 = vrot.slane %v314, 6
    %v322 = vadd.f32 %v91, %v320
    %v323 = vtanh.pop %v322
    %v324 = vmul.f32 %v323, 0.5
    %v325 = vadd.f32 %v324, 0.5
    %v327 = vrot.slane %v257, 7
    %v329 = vmul.f32 %v325, %v327
    %331 = vrot.lane.b32.xlu0 %v323, 32
    %v332 = vpop.permute.xlu0 %331
    %v334 = vmul.f32 %v325, %v332
    %336 = vrot.lane.b32.xlu0 %v334, 32
    %v337 = vpop.permute.xlu0 %336
    %v339 = vadd.f32 %v329, %v337
    %v340 = vtanh.pop %v339
    %342 = vrot.lane.b32.xlu0 %v340, 32
    %v343 = vpop.permute.xlu0 %342
    %v345 = vmul.f32 %v325, %v343
    %347 = vrot.lane.b32.xlu0 %v345, 64
    %v348 = vpop.permute.xlu0 %347
    %vm350 = vcmask 256002
    %351 = vst.msk [vmem:[#allocation2] sm:$0x4] %vm350, %v348
    %v352 = vpack.c.bf16 %v345, %v345
    %v354 = vrot.slane %v352, 1
    %355 = vrot.lane.b32.xlu0 %v354, 64
    %v356 = vpop.permute.xlu0 %355
    %v358 = vsel %vm115, %v356, 0
    %360 = vmatprep.subr.bf16.mxu0 0
    %361 = vmatpush1.bf16.msra.mxu0 %v111
    %362 = vmatprep.subr.bf16.mxu0 0
    %363 = vmatpush1.bf16.msra.mxu0 %v112
    %364 = vmatprep.subr.bf16.mxu0 0
    %365 = vmatpush1.bf16.msra.mxu0 0
    %366 = vmatprep.subr.bf16.mxu0 0
    %367 = vmatpush1.bf16.msra.mxu0 0
    %368 = vmatprep.subr.bf16.mxu0 0
    %369 = vmatpush1.bf16.msra.mxu0 0
    %370 = vmatprep.subr.bf16.mxu0 0
    %371 = vmatpush1.bf16.msra.mxu0 0
    %372 = vmatprep.subr.bf16.mxu0 0
    %373 = vmatpush1.bf16.msra.mxu0 0
    %374 = vmatprep.subr.bf16.mxu0 0
    %375 = vmatpush1.bf16.msra.mxu0 0
    %376 = vmatprep.subr.bf16.mxu0 0
    %377 = vmatpush1.bf16.msra.mxu0 0
    %378 = vmatprep.subr.bf16.mxu0 0
    %379 = vmatpush1.bf16.msra.mxu0 0
    %380 = vmatprep.subr.bf16.mxu0 0
    %381 = vmatpush1.bf16.msra.mxu0 0
    %382 = vmatprep.subr.bf16.mxu0 0
    %383 = vmatpush1.bf16.msra.mxu0 0
    %384 = vmatprep.subr.bf16.mxu0 0
    %385 = vmatpush1.bf16.msra.mxu0 0
    %386 = vmatprep.subr.bf16.mxu0 0
    %387 = vmatpush1.bf16.msra.mxu0 0
    %388 = vmatprep.subr.bf16.mxu0 0
    %389 = vmatpush1.bf16.msra.mxu0 0
    %390 = vmatprep.subr.bf16.mxu0 0
    %391 = vmatpush1.bf16.msra.mxu0 0
    %392 = vmatprep.mubr.bf16.mxu0 0
    %393 = vmatmul.mubr.bf16.gmra.mrb[0].mxu0 %v358
    %v394 = vpop.f32.mrb[0].mxu0
    %v395 = vadd.f32 0.0, %v394
    %v396 = vpop.f32.mrb[0].mxu0
    %v397 = vpop.f32.mrb[0].mxu0
    %v398 = vpop.f32.mrb[0].mxu0
    %399 = vdwg.mxu0
    %v401 = vrot.slane %v395, 5
    %v403 = vadd.f32 %v91, %v401
    %v404 = vtanh.pop %v403
    %v405 = vmul.f32 %v404, 0.5
    %v406 = vadd.f32 %v405, 0.5
    %v408 = vrot.slane %v339, 7
    %v410 = vmul.f32 %v406, %v408
    %412 = vrot.lane.b32.xlu0 %v404, 32
    %v413 = vpop.permute.xlu0 %412
    %v415 = vmul.f32 %v406, %v413
    %417 = vrot.lane.b32.xlu0 %v415, 32
    %v418 = vpop.permute.xlu0 %417
    %v420 = vadd.f32 %v410, %v418
    %v421 = vtanh.pop %v420
    %423 = vrot.lane.b32.xlu0 %v421, 32
    %v424 = vpop.permute.xlu0 %423
    %v426 = vmul.f32 %v406, %v424
    %428 = vrot.lane.b32.xlu0 %v426, 64
    %v429 = vpop.permute.xlu0 %428
    %vm431 = vcmask 257027
    %432 = vst.msk [vmem:[#allocation2] sm:$0x8] %vm431, %v429
    %v433 = vpack.c.bf16 %v426, %v426
    %v435 = vshrl.u32 %v433, 16
    %v437 = vrot.slane %v435, 1
    %438 = vrot.lane.b32.xlu0 %v437, 64
    %v439 = vpop.permute.xlu0 %438
    %v441 = vsel %vm115, %v439, 0
    %443 = vmatprep.subr.bf16.mxu0 0
    %444 = vmatpush1.bf16.msra.mxu0 %v111
    %445 = vmatprep.subr.bf16.mxu0 0
    %446 = vmatpush1.bf16.msra.mxu0 %v112
    %447 = vmatprep.subr.bf16.mxu0 0
    %448 = vmatpush1.bf16.msra.mxu0 0
    %449 = vmatprep.subr.bf16.mxu0 0
    %450 = vmatpush1.bf16.msra.mxu0 0
    %451 = vmatprep.subr.bf16.mxu0 0
    %452 = vmatpush1.bf16.msra.mxu0 0
    %453 = vmatprep.subr.bf16.mxu0 0
    %454 = vmatpush1.bf16.msra.mxu0 0
    %455 = vmatprep.subr.bf16.mxu0 0
    %456 = vmatpush1.bf16.msra.mxu0 0
    %457 = vmatprep.subr.bf16.mxu0 0
    %458 = vmatpush1.bf16.msra.mxu0 0
    %459 = vmatprep.subr.bf16.mxu0 0
    %460 = vmatpush1.bf16.msra.mxu0 0
    %461 = vmatprep.subr.bf16.mxu0 0
    %462 = vmatpush1.bf16.msra.mxu0 0
    %463 = vmatprep.subr.bf16.mxu0 0
    %464 = vmatpush1.bf16.msra.mxu0 0
    %465 = vmatprep.subr.bf16.mxu0 0
    %466 = vmatpush1.bf16.msra.mxu0 0
    %467 = vmatprep.subr.bf16.mxu0 0
    %468 = vmatpush1.bf16.msra.mxu0 0
    %469 = vmatprep.subr.bf16.mxu0 0
    %470 = vmatpush1.bf16.msra.mxu0 0
    %471 = vmatprep.subr.bf16.mxu0 0
    %472 = vmatpush1.bf16.msra.mxu0 0
    %473 = vmatprep.subr.bf16.mxu0 0
    %474 = vmatpush1.bf16.msra.mxu0 0
    %475 = vmatprep.mubr.bf16.mxu0 0
    %476 = vmatmul.mubr.bf16.gmra.mrb[0].mxu0 %v441
    %v477 = vpop.f32.mrb[0].mxu0
    %v478 = vadd.f32 0.0, %v477
    %v479 = vpop.f32.mrb[0].mxu0
    %v480 = vpop.f32.mrb[0].mxu0
    %v481 = vpop.f32.mrb[0].mxu0
    %482 = vdwg.mxu0
    %v484 = vrot.slane %v478, 4
    %v486 = vadd.f32 %v91, %v484
    %v487 = vtanh.pop %v486
    %v488 = vmul.f32 %v487, 0.5
    %v489 = vadd.f32 %v488, 0.5
    %v491 = vrot.slane %v420, 7
    %v493 = vmul.f32 %v489, %v491
    %495 = vrot.lane.b32.xlu0 %v487, 32
    %v496 = vpop.permute.xlu0 %495
    %v498 = vmul.f32 %v489, %v496
    %500 = vrot.lane.b32.xlu0 %v498, 32
    %v501 = vpop.permute.xlu0 %500
    %v503 = vadd.f32 %v493, %v501
    %v504 = vtanh.pop %v503
    %506 = vrot.lane.b32.xlu0 %v504, 32
    %v507 = vpop.permute.xlu0 %506
    %v509 = vmul.f32 %v489, %v507
    %511 = vrot.lane.b32.xlu0 %v509, 64
    %v512 = vpop.permute.xlu0 %511
    %vm514 = vcmask 258052
    %515 = vst.msk [vmem:[#allocation2] sm:$0x10] %vm514, %v512
    %v516 = vpack.c.bf16 %v509, %v509
    %v518 = vrot.slane %v516, 2
    %519 = vrot.lane.b32.xlu0 %v518, 64
    %v520 = vpop.permute.xlu0 %519
    %v522 = vsel %vm115, %v520, 0
    %524 = vmatprep.subr.bf16.mxu0 0
    %525 = vmatpush1.bf16.msra.mxu0 %v111
    %526 = vmatprep.subr.bf16.mxu0 0
    %527 = vmatpush1.bf16.msra.mxu0 %v112
    %528 = vmatprep.subr.bf16.mxu0 0
    %529 = vmatpush1.bf16.msra.mxu0 0
    %530 = vmatprep.subr.bf16.mxu0 0
    %531 = vmatpush1.bf16.msra.mxu0 0
    %532 = vmatprep.subr.bf16.mxu0 0
    %533 = vmatpush1.bf16.msra.mxu0 0
    %534 = vmatprep.subr.bf16.mxu0 0
    %535 = vmatpush1.bf16.msra.mxu0 0
    %536 = vmatprep.subr.bf16.mxu0 0
    %537 = vmatpush1.bf16.msra.mxu0 0
    %538 = vmatprep.subr.bf16.mxu0 0
    %539 = vmatpush1.bf16.msra.mxu0 0
    %540 = vmatprep.subr.bf16.mxu0 0
    %541 = vmatpush1.bf16.msra.mxu0 0
    %542 = vmatprep.subr.bf16.mxu0 0
    %543 = vmatpush1.bf16.msra.mxu0 0
    %544 = vmatprep.subr.bf16.mxu0 0
    %545 = vmatpush1.bf16.msra.mxu0 0
    %546 = vmatprep.subr.bf16.mxu0 0
    %547 = vmatpush1.bf16.msra.mxu0 0
    %548 = vmatprep.subr.bf16.mxu0 0
    %549 = vmatpush1.bf16.msra.mxu0 0
    %550 = vmatprep.subr.bf16.mxu0 0
    %551 = vmatpush1.bf16.msra.mxu0 0
    %552 = vmatprep.subr.bf16.mxu0 0
    %553 = vmatpush1.bf16.msra.mxu0 0
    %554 = vmatprep.subr.bf16.mxu0 0
    %555 = vmatpush1.bf16.msra.mxu0 0
    %556 = vmatprep.mubr.bf16.mxu0 0
    %557 = vmatmul.mubr.bf16.gmra.mrb[0].mxu0 %v522
    %v558 = vpop.f32.mrb[0].mxu0
    %v559 = vadd.f32 0.0, %v558
    %v560 = vpop.f32.mrb[0].mxu0
    %v561 = vpop.f32.mrb[0].mxu0
    %v562 = vpop.f32.mrb[0].mxu0
    %563 = vdwg.mxu0
    %v565 = vrot.slane %v559, 3
    %v567 = vadd.f32 %v91, %v565
    %v568 = vtanh.pop %v567
    %v569 = vmul.f32 %v568, 0.5
    %v570 = vadd.f32 %v569, 0.5
    %v572 = vrot.slane %v503, 7
    %v574 = vmul.f32 %v570, %v572
    %576 = vrot.lane.b32.xlu0 %v568, 32
    %v577 = vpop.permute.xlu0 %576
    %v579 = vmul.f32 %v570, %v577
    %581 = vrot.lane.b32.xlu0 %v579, 32
    %v582 = vpop.permute.xlu0 %581
    %v584 = vadd.f32 %v574, %v582
    %v585 = vtanh.pop %v584
    %587 = vrot.lane.b32.xlu0 %v585, 32
    %v588 = vpop.permute.xlu0 %587
    %v590 = vmul.f32 %v570, %v588
    %592 = vrot.lane.b32.xlu0 %v590, 64
    %v593 = vpop.permute.xlu0 %592
    %vm595 = vcmask 259077
    %596 = vst.msk [vmem:[#allocation2] sm:$0x20] %vm595, %v593
    %v597 = vpack.c.bf16 %v590, %v590
    %v599 = vshrl.u32 %v597, 16
    %v601 = vrot.slane %v599, 2
    %602 = vrot.lane.b32.xlu0 %v601, 64
    %v603 = vpop.permute.xlu0 %602
    %v605 = vsel %vm115, %v603, 0
    %607 = vmatprep.subr.bf16.mxu0 0
    %608 = vmatpush1.bf16.msra.mxu0 %v111
    %609 = vmatprep.subr.bf16.mxu0 0
    %610 = vmatpush1.bf16.msra.mxu0 %v112
    %611 = vmatprep.subr.bf16.mxu0 0
    %612 = vmatpush1.bf16.msra.mxu0 0
    %613 = vmatprep.subr.bf16.mxu0 0
    %614 = vmatpush1.bf16.msra.mxu0 0
    %615 = vmatprep.subr.bf16.mxu0 0
    %616 = vmatpush1.bf16.msra.mxu0 0
    %617 = vmatprep.subr.bf16.mxu0 0
    %618 = vmatpush1.bf16.msra.mxu0 0
    %619 = vmatprep.subr.bf16.mxu0 0
    %620 = vmatpush1.bf16.msra.mxu0 0
    %621 = vmatprep.subr.bf16.mxu0 0
    %622 = vmatpush1.bf16.msra.mxu0 0
    %623 = vmatprep.subr.bf16.mxu0 0
    %624 = vmatpush1.bf16.msra.mxu0 0
    %625 = vmatprep.subr.bf16.mxu0 0
    %626 = vmatpush1.bf16.msra.mxu0 0
    %627 = vmatprep.subr.bf16.mxu0 0
    %628 = vmatpush1.bf16.msra.mxu0 0
    %629 = vmatprep.subr.bf16.mxu0 0
    %630 = vmatpush1.bf16.msra.mxu0 0
    %631 = vmatprep.subr.bf16.mxu0 0
    %632 = vmatpush1.bf16.msra.mxu0 0
    %633 = vmatprep.subr.bf16.mxu0 0
    %634 = vmatpush1.bf16.msra.mxu0 0
    %635 = vmatprep.subr.bf16.mxu0 0
    %636 = vmatpush1.bf16.msra.mxu0 0
    %637 = vmatprep.subr.bf16.mxu0 0
    %638 = vmatpush1.bf16.msra.mxu0 0
    %639 = vmatprep.mubr.bf16.mxu0 0
    %640 = vmatmul.mubr.bf16.gmra.mrb[0].mxu0 %v605
    %v641 = vpop.f32.mrb[0].mxu0
    %v642 = vadd.f32 0.0, %v641
    %v643 = vpop.f32.mrb[0].mxu0
    %v644 = vpop.f32.mrb[0].mxu0
    %v645 = vpop.f32.mrb[0].mxu0
    %646 = vdwg.mxu0
    %v648 = vrot.slane %v642, 2
    %v650 = vadd.f32 %v91, %v648
    %v651 = vtanh.pop %v650
    %v652 = vmul.f32 %v651, 0.5
    %v653 = vadd.f32 %v652, 0.5
    %v655 = vrot.slane %v584, 7
    %v657 = vmul.f32 %v653, %v655
    %659 = vrot.lane.b32.xlu0 %v651, 32
    %v660 = vpop.permute.xlu0 %659
    %v662 = vmul.f32 %v653, %v660
    %664 = vrot.lane.b32.xlu0 %v662, 32
    %v665 = vpop.permute.xlu0 %664
    %v667 = vadd.f32 %v657, %v665
    %v668 = vtanh.pop %v667
    %670 = vrot.lane.b32.xlu0 %v668, 32
    %v671 = vpop.permute.xlu0 %670
    %v673 = vmul.f32 %v653, %v671
    %675 = vrot.lane.b32.xlu0 %v673, 64
    %v676 = vpop.permute.xlu0 %675
    %vm678 = vcmask 260102
    %679 = vst.msk [vmem:[#allocation2] sm:$0x40] %vm678, %v676
    %v680 = vpack.c.bf16 %v673, %v673
    %v682 = vrot.slane %v680, 3
    %683 = vrot.lane.b32.xlu0 %v682, 64
    %v684 = vpop.permute.xlu0 %683
    %v686 = vsel %vm115, %v684, 0
    %688 = vmatprep.subr.bf16.mxu0 0
    %689 = vmatpush1.bf16.msra.mxu0 %v111
    %690 = vmatprep.subr.bf16.mxu0 0
    %691 = vmatpush1.bf16.msra.mxu0 %v112
    %692 = vmatprep.subr.bf16.mxu0 0
    %693 = vmatpush1.bf16.msra.mxu0 0
    %694 = vmatprep.subr.bf16.mxu0 0
    %695 = vmatpush1.bf16.msra.mxu0 0
    %696 = vmatprep.subr.bf16.mxu0 0
    %697 = vmatpush1.bf16.msra.mxu0 0
    %698 = vmatprep.subr.bf16.mxu0 0
    %699 = vmatpush1.bf16.msra.mxu0 0
    %700 = vmatprep.subr.bf16.mxu0 0
    %701 = vmatpush1.bf16.msra.mxu0 0
    %702 = vmatprep.subr.bf16.mxu0 0
    %703 = vmatpush1.bf16.msra.mxu0 0
    %704 = vmatprep.subr.bf16.mxu0 0
    %705 = vmatpush1.bf16.msra.mxu0 0
    %706 = vmatprep.subr.bf16.mxu0 0
    %707 = vmatpush1.bf16.msra.mxu0 0
    %708 = vmatprep.subr.bf16.mxu0 0
    %709 = vmatpush1.bf16.msra.mxu0 0
    %710 = vmatprep.subr.bf16.mxu0 0
    %711 = vmatpush1.bf16.msra.mxu0 0
    %712 = vmatprep.subr.bf16.mxu0 0
    %713 = vmatpush1.bf16.msra.mxu0 0
    %714 = vmatprep.subr.bf16.mxu0 0
    %715 = vmatpush1.bf16.msra.mxu0 0
    %716 = vmatprep.subr.bf16.mxu0 0
    %717 = vmatpush1.bf16.msra.mxu0 0
    %718 = vmatprep.subr.bf16.mxu0 0
    %719 = vmatpush1.bf16.msra.mxu0 0
    %720 = vmatprep.mubr.bf16.mxu0 0
    %721 = vmatmul.mubr.bf16.gmra.mrb[0].mxu0 %v686
    %v722 = vpop.f32.mrb[0].mxu0
    %v723 = vadd.f32 0.0, %v722
    %v724 = vpop.f32.mrb[0].mxu0
    %v725 = vpop.f32.mrb[0].mxu0
    %v726 = vpop.f32.mrb[0].mxu0
    %727 = vdwg.mxu0
    %v729 = vrot.slane %v723, 1
    %v731 = vadd.f32 %v91, %v729
    %v732 = vtanh.pop %v731
    %v733 = vmul.f32 %v732, 0.5
    %v734 = vadd.f32 %v733, 0.5
    %v736 = vrot.slane %v667, 7
    %v738 = vmul.f32 %v734, %v736
    %740 = vrot.lane.b32.xlu0 %v732, 32
    %v741 = vpop.permute.xlu0 %740
    %v743 = vmul.f32 %v734, %v741
    %745 = vrot.lane.b32.xlu0 %v743, 32
    %v746 = vpop.permute.xlu0 %745
    %v748 = vadd.f32 %v738, %v746
    %v749 = vtanh.pop %v748
    %751 = vrot.lane.b32.xlu0 %v749, 32
    %v752 = vpop.permute.xlu0 %751
    %v754 = vmul.f32 %v734, %v752
    %756 = vrot.lane.b32.xlu0 %v754, 64
    %v757 = vpop.permute.xlu0 %756
    %vm759 = vcmask 261127
    %760 = vst.msk [vmem:[#allocation2] sm:$0x80] %vm759, %v757
    %761 = vst.msk [vmem:[%s6 - $0x7] sm:$0x80] %vm759, %v757
    %763 = vrot.lane.b32.xlu0 %v748, 96
    %v764 = vpop.permute.xlu0 %763
    %766 = vst.msk [vmem:[%s6 - $0x4] sm:$0x80] %vm759, %v764
    %v767 = vld [vmem:[#allocation2] sm:$0xff]
    %v768 = vpack.c.bf16 %v767, %v767
    %s769 = scalar_lea.vmem [#allocation3], 48
    %v770 = vld [vmem:[%s769] sm:$0xf]
    %v771 = vld [vmem:[%s769 + $0x4] sm:$0xf]
    %v772 = vld [vmem:[%s769 + $0x8] sm:$0xf]
    %v773 = vld [vmem:[%s769 + $0xc] sm:$0xf]
    %v774 = vld [vmem:[%s3] sm:$0x1]
    %v775 = vlaneseq
    %v776 = vshrl.u32 %v775, 7
    %v777 = vsub.s32 0, %v776
    %v778 = vrot.slane %v774, %v777
    %v783 = vunpack.c.l.b16 %v770
    %v784 = vunpack.c.l.b16 %v771
    %v785 = vunpack.c.l.b16 %v772
    %v786 = vunpack.c.l.b16 %v773
    %v787 = vpack.c.b16 %v784, %v783
    %v788 = vpack.c.b16 %v786, %v785
    %v792 = vsel %vm115, %v768, 0
    %794 = vmatprep.subr.bf16.mxu0 0
    %795 = vmatpush1.bf16.msra.mxu0 %v787
    %796 = vmatprep.subr.bf16.mxu0 0
    %797 = vmatpush1.bf16.msra.mxu0 %v788
    %798 = vmatprep.subr.bf16.mxu0 0
    %799 = vmatpush1.bf16.msra.mxu0 0
    %800 = vmatprep.subr.bf16.mxu0 0
    %801 = vmatpush1.bf16.msra.mxu0 0
    %802 = vmatprep.subr.bf16.mxu0 0
    %803 = vmatpush1.bf16.msra.mxu0 0
    %804 = vmatprep.subr.bf16.mxu0 0
    %805 = vmatpush1.bf16.msra.mxu0 0
    %806 = vmatprep.subr.bf16.mxu0 0
    %807 = vmatpush1.bf16.msra.mxu0 0
    %808 = vmatprep.subr.bf16.mxu0 0
    %809 = vmatpush1.bf16.msra.mxu0 0
    %810 = vmatprep.subr.bf16.mxu0 0
    %811 = vmatpush1.bf16.msra.mxu0 0
    %812 = vmatprep.subr.bf16.mxu0 0
    %813 = vmatpush1.bf16.msra.mxu0 0
    %814 = vmatprep.subr.bf16.mxu0 0
    %815 = vmatpush1.bf16.msra.mxu0 0
    %816 = vmatprep.subr.bf16.mxu0 0
    %817 = vmatpush1.bf16.msra.mxu0 0
    %818 = vmatprep.subr.bf16.mxu0 0
    %819 = vmatpush1.bf16.msra.mxu0 0
    %820 = vmatprep.subr.bf16.mxu0 0
    %821 = vmatpush1.bf16.msra.mxu0 0
    %822 = vmatprep.subr.bf16.mxu0 0
    %823 = vmatpush1.bf16.msra.mxu0 0
    %824 = vmatprep.subr.bf16.mxu0 0
    %825 = vmatpush1.bf16.msra.mxu0 0
    %826 = vmatprep.mubr.bf16.mxu0 0
    %827 = vmatmul.mubr.bf16.gmra.mrb[0].mxu0 %v792
    %v828 = vpop.f32.mrb[0].mxu0
    %v829 = vadd.f32 %v778, %v828
    %v830 = vpop.f32.mrb[0].mxu0
    %v831 = vpop.f32.mrb[0].mxu0
    %v832 = vpop.f32.mrb[0].mxu0
    %833 = vdwg.mxu0
    %s834 = scalar_lea.vmem [#allocation3], 16
    %v835 = vld [vmem:[%s834] sm:$0xf]
    %v836 = vld [vmem:[%s834 + $0x4] sm:$0xf]
    %v837 = vld [vmem:[%s834 + $0x8] sm:$0xf]
    %v838 = vld [vmem:[%s834 + $0xc] sm:$0xf]
    %v839 = vld [vmem:[%s4 + $0x1] sm:$0x1]
    %v840 = vld [vmem:[%s4 + $0x4] sm:$0x1]
    %v841 = vpack.c.bf16 %v839, %v839
    %v846 = vunpack.c.l.b16 %v835
    %v847 = vunpack.c.l.b16 %v836
    %v848 = vunpack.c.l.b16 %v837
    %v849 = vunpack.c.l.b16 %v838
    %v850 = vpack.c.b16 %v847, %v846
    %v851 = vpack.c.b16 %v849, %v848
    %v855 = vsel %vm115, %v841, 0
    %857 = vmatprep.subr.bf16.mxu0 0
    %858 = vmatpush1.bf16.msra.mxu0 %v850
    %859 = vmatprep.subr.bf16.mxu0 0
    %860 = vmatpush1.bf16.msra.mxu0 %v851
    %861 = vmatprep.subr.bf16.mxu0 0
    %862 = vmatpush1.bf16.msra.mxu0 0
    %863 = vmatprep.subr.bf16.mxu0 0
    %864 = vmatpush1.bf16.msra.mxu0 0
    %865 = vmatprep.subr.bf16.mxu0 0
    %866 = vmatpush1.bf16.msra.mxu0 0
    %867 = vmatprep.subr.bf16.mxu0 0
    %868 = vmatpush1.bf16.msra.mxu0 0
    %869 = vmatprep.subr.bf16.mxu0 0
    %870 = vmatpush1.bf16.msra.mxu0 0
    %871 = vmatprep.subr.bf16.mxu0 0
    %872 = vmatpush1.bf16.msra.mxu0 0
    %873 = vmatprep.subr.bf16.mxu0 0
    %874 = vmatpush1.bf16.msra.mxu0 0
    %875 = vmatprep.subr.bf16.mxu0 0
    %876 = vmatpush1.bf16.msra.mxu0 0
    %877 = vmatprep.subr.bf16.mxu0 0
    %878 = vmatpush1.bf16.msra.mxu0 0
    %879 = vmatprep.subr.bf16.mxu0 0
    %880 = vmatpush1.bf16.msra.mxu0 0
    %881 = vmatprep.subr.bf16.mxu0 0
    %882 = vmatpush1.bf16.msra.mxu0 0
    %883 = vmatprep.subr.bf16.mxu0 0
    %884 = vmatpush1.bf16.msra.mxu0 0
    %885 = vmatprep.subr.bf16.mxu0 0
    %886 = vmatpush1.bf16.msra.mxu0 0
    %887 = vmatprep.subr.bf16.mxu0 0
    %888 = vmatpush1.bf16.msra.mxu0 0
    %889 = vmatprep.mubr.bf16.mxu0 0
    %890 = vmatmul.mubr.bf16.gmra.mrb[0].mxu0 %v855
    %v891 = vpop.f32.mrb[0].mxu0
    %v892 = vadd.f32 0.0, %v891
    %v893 = vpop.f32.mrb[0].mxu0
    %v894 = vpop.f32.mrb[0].mxu0
    %v895 = vpop.f32.mrb[0].mxu0
    %896 = vdwg.mxu0
    %v897 = vadd.f32 %v829, %v892
    %v898 = vtanh.pop %v897
    %v899 = vmul.f32 %v898, 0.5
    %v900 = vadd.f32 %v899, 0.5
    %902 = vrot.lane.b32.xlu0 %v840, 32
    %v903 = vpop.permute.xlu0 %902
    %v905 = vmul.f32 %v900, %v903
    %907 = vrot.lane.b32.xlu0 %v898, 32
    %v908 = vpop.permute.xlu0 %907
    %v910 = vmul.f32 %v900, %v908
    %912 = vrot.lane.b32.xlu0 %v910, 32
    %v913 = vpop.permute.xlu0 %912
    %v915 = vadd.f32 %v905, %v913
    %v916 = vtanh.pop %v915
    %918 = vrot.lane.b32.xlu0 %v916, 32
    %v919 = vpop.permute.xlu0 %918
    %v921 = vmul.f32 %v900, %v919
    %923 = vrot.lane.b32.xlu0 %v921, 64
    %v924 = vpop.permute.xlu0 %923
    %926 = vst.msk [vmem:[#allocation2] sm:$0x1] %vm188, %v924
    %v927 = vpack.c.bf16 %v921, %v921
    %929 = vrot.lane.b32.xlu0 %v927, 64
    %v930 = vpop.permute.xlu0 %929
    %v932 = vsel %vm115, %v930, 0
    %934 = vmatprep.subr.bf16.mxu0 0
    %935 = vmatpush1.bf16.msra.mxu0 %v850
    %936 = vmatprep.subr.bf16.mxu0 0
    %937 = vmatpush1.bf16.msra.mxu0 %v851
    %938 = vmatprep.subr.bf16.mxu0 0
    %939 = vmatpush1.bf16.msra.mxu0 0
    %940 = vmatprep.subr.bf16.mxu0 0
    %941 = vmatpush1.bf16.msra.mxu0 0
    %942 = vmatprep.subr.bf16.mxu0 0
    %943 = vmatpush1.bf16.msra.mxu0 0
    %944 = vmatprep.subr.bf16.mxu0 0
    %945 = vmatpush1.bf16.msra.mxu0 0
    %946 = vmatprep.subr.bf16.mxu0 0
    %947 = vmatpush1.bf16.msra.mxu0 0
    %948 = vmatprep.subr.bf16.mxu0 0
    %949 = vmatpush1.bf16.msra.mxu0 0
    %950 = vmatprep.subr.bf16.mxu0 0
    %951 = vmatpush1.bf16.msra.mxu0 0
    %952 = vmatprep.subr.bf16.mxu0 0
    %953 = vmatpush1.bf16.msra.mxu0 0
    %954 = vmatprep.subr.bf16.mxu0 0
    %955 = vmatpush1.bf16.msra.mxu0 0
    %956 = vmatprep.subr.bf16.mxu0 0
    %957 = vmatpush1.bf16.msra.mxu0 0
    %958 = vmatprep.subr.bf16.mxu0 0
    %959 = vmatpush1.bf16.msra.mxu0 0
    %960 = vmatprep.subr.bf16.mxu0 0
    %961 = vmatpush1.bf16.msra.mxu0 0
    %962 = vmatprep.subr.bf16.mxu0 0
    %963 = vmatpush1.bf16.msra.mxu0 0
    %964 = vmatprep.subr.bf16.mxu0 0
    %965 = vmatpush1.bf16.msra.mxu0 0
    %966 = vmatprep.mubr.bf16.mxu0 0
    %967 = vmatmul.mubr.bf16.gmra.mrb[0].mxu0 %v932
    %v968 = vpop.f32.mrb[0].mxu0
    %v969 = vadd.f32 0.0, %v968
    %v970 = vpop.f32.mrb[0].mxu0
    %v971 = vpop.f32.mrb[0].mxu0
    %v972 = vpop.f32.mrb[0].mxu0
    %973 = vdwg.mxu0
    %v975 = vrot.slane %v969, 7
    %v977 = vadd.f32 %v829, %v975
    %v978 = vtanh.pop %v977
    %v979 = vmul.f32 %v978, 0.5
    %v980 = vadd.f32 %v979, 0.5
    %v982 = vrot.slane %v915, 7
    %v984 = vmul.f32 %v980, %v982
    %986 = vrot.lane.b32.xlu0 %v978, 32
    %v987 = vpop.permute.xlu0 %986
    %v989 = vmul.f32 %v980, %v987
    %991 = vrot.lane.b32.xlu0 %v989, 32
    %v992 = vpop.permute.xlu0 %991
    %v994 = vadd.f32 %v984, %v992
    %v995 = vtanh.pop %v994
    %997 = vrot.lane.b32.xlu0 %v995, 32
    %v998 = vpop.permute.xlu0 %997
    %v1000 = vmul.f32 %v980, %v998
    %1002 = vrot.lane.b32.xlu0 %v1000, 64
    %v1003 = vpop.permute.xlu0 %1002
    %1005 = vst.msk [vmem:[#allocation2] sm:$0x2] %vm268, %v1003
    %v1006 = vpack.c.bf16 %v1000, %v1000
    %v1008 = vshrl.u32 %v1006, 16
    %1010 = vrot.lane.b32.xlu0 %v1008, 64
    %v1011 = vpop.permute.xlu0 %1010
    %v1013 = vsel %vm115, %v1011, 0
    %1015 = vmatprep.subr.bf16.mxu0 0
    %1016 = vmatpush1.bf16.msra.mxu0 %v850
    %1017 = vmatprep.subr.bf16.mxu0 0
    %1018 = vmatpush1.bf16.msra.mxu0 %v851
    %1019 = vmatprep.subr.bf16.mxu0 0
    %1020 = vmatpush1.bf16.msra.mxu0 0
    %1021 = vmatprep.subr.bf16.mxu0 0
    %1022 = vmatpush1.bf16.msra.mxu0 0
    %1023 = vmatprep.subr.bf16.mxu0 0
    %1024 = vmatpush1.bf16.msra.mxu0 0
    %1025 = vmatprep.subr.bf16.mxu0 0
    %1026 = vmatpush1.bf16.msra.mxu0 0
    %1027 = vmatprep.subr.bf16.mxu0 0
    %1028 = vmatpush1.bf16.msra.mxu0 0
    %1029 = vmatprep.subr.bf16.mxu0 0
    %1030 = vmatpush1.bf16.msra.mxu0 0
    %1031 = vmatprep.subr.bf16.mxu0 0
    %1032 = vmatpush1.bf16.msra.mxu0 0
    %1033 = vmatprep.subr.bf16.mxu0 0
    %1034 = vmatpush1.bf16.msra.mxu0 0
    %1035 = vmatprep.subr.bf16.mxu0 0
    %1036 = vmatpush1.bf16.msra.mxu0 0
    %1037 = vmatprep.subr.bf16.mxu0 0
    %1038 = vmatpush1.bf16.msra.mxu0 0
    %1039 = vmatprep.subr.bf16.mxu0 0
    %1040 = vmatpush1.bf16.msra.mxu0 0
    %1041 = vmatprep.subr.bf16.mxu0 0
    %1042 = vmatpush1.bf16.msra.mxu0 0
    %1043 = vmatprep.subr.bf16.mxu0 0
    %1044 = vmatpush1.bf16.msra.mxu0 0
    %1045 = vmatprep.subr.bf16.mxu0 0
    %1046 = vmatpush1.bf16.msra.mxu0 0
    %1047 = vmatprep.mubr.bf16.mxu0 0
    %1048 = vmatmul.mubr.bf16.gmra.mrb[0].mxu0 %v1013
    %v1049 = vpop.f32.mrb[0].mxu0
    %v1050 = vadd.f32 0.0, %v1049
    %v1051 = vpop.f32.mrb[0].mxu0
    %v1052 = vpop.f32.mrb[0].mxu0
    %v1053 = vpop.f32.mrb[0].mxu0
    %1054 = vdwg.mxu0
    %v1056 = vrot.slane %v1050, 6
    %v1058 = vadd.f32 %v829, %v1056
    %v1059 = vtanh.pop %v1058
    %v1060 = vmul.f32 %v1059, 0.5
    %v1061 = vadd.f32 %v1060, 0.5
    %v1063 = vrot.slane %v994, 7
    %v1065 = vmul.f32 %v1061, %v1063
    %1067 = vrot.lane.b32.xlu0 %v1059, 32
    %v1068 = vpop.permute.xlu0 %1067
    %v1070 = vmul.f32 %v1061, %v1068
    %1072 = vrot.lane.b32.xlu0 %v1070, 32
    %v1073 = vpop.permute.xlu0 %1072
    %v1075 = vadd.f32 %v1065, %v1073
    %v1076 = vtanh.pop %v1075
    %1078 = vrot.lane.b32.xlu0 %v1076, 32
    %v1079 = vpop.permute.xlu0 %1078
    %v1081 = vmul.f32 %v1061, %v1079
    %1083 = vrot.lane.b32.xlu0 %v1081, 64
    %v1084 = vpop.permute.xlu0 %1083
    %1086 = vst.msk [vmem:[#allocation2] sm:$0x4] %vm350, %v1084
    %v1087 = vpack.c.bf16 %v1081, %v1081
    %v1089 = vrot.slane %v1087, 1
    %1090 = vrot.lane.b32.xlu0 %v1089, 64
    %v1091 = vpop.permute.xlu0 %1090
    %v1093 = vsel %vm115, %v1091, 0
    %1095 = vmatprep.subr.bf16.mxu0 0
    %1096 = vmatpush1.bf16.msra.mxu0 %v850
    %1097 = vmatprep.subr.bf16.mxu0 0
    %1098 = vmatpush1.bf16.msra.mxu0 %v851
    %1099 = vmatprep.subr.bf16.mxu0 0
    %1100 = vmatpush1.bf16.msra.mxu0 0
    %1101 = vmatprep.subr.bf16.mxu0 0
    %1102 = vmatpush1.bf16.msra.mxu0 0
    %1103 = vmatprep.subr.bf16.mxu0 0
    %1104 = vmatpush1.bf16.msra.mxu0 0
    %1105 = vmatprep.subr.bf16.mxu0 0
    %1106 = vmatpush1.bf16.msra.mxu0 0
    %1107 = vmatprep.subr.bf16.mxu0 0
    %1108 = vmatpush1.bf16.msra.mxu0 0
    %1109 = vmatprep.subr.bf16.mxu0 0
    %1110 = vmatpush1.bf16.msra.mxu0 0
    %1111 = vmatprep.subr.bf16.mxu0 0
    %1112 = vmatpush1.bf16.msra.mxu0 0
    %1113 = vmatprep.subr.bf16.mxu0 0
    %1114 = vmatpush1.bf16.msra.mxu0 0
    %1115 = vmatprep.subr.bf16.mxu0 0
    %1116 = vmatpush1.bf16.msra.mxu0 0
    %1117 = vmatprep.subr.bf16.mxu0 0
    %1118 = vmatpush1.bf16.msra.mxu0 0
    %1119 = vmatprep.subr.bf16.mxu0 0
    %1120 = vmatpush1.bf16.msra.mxu0 0
    %1121 = vmatprep.subr.bf16.mxu0 0
    %1122 = vmatpush1.bf16.msra.mxu0 0
    %1123 = vmatprep.subr.bf16.mxu0 0
    %1124 = vmatpush1.bf16.msra.mxu0 0
    %1125 = vmatprep.subr.bf16.mxu0 0
    %1126 = vmatpush1.bf16.msra.mxu0 0
    %1127 = vmatprep.mubr.bf16.mxu0 0
    %1128 = vmatmul.mubr.bf16.gmra.mrb[0].mxu0 %v1093
    %v1129 = vpop.f32.mrb[0].mxu0
    %v1130 = vadd.f32 0.0, %v1129
    %v1131 = vpop.f32.mrb[0].mxu0
    %v1132 = vpop.f32.mrb[0].mxu0
    %v1133 = vpop.f32.mrb[0].mxu0
    %1134 = vdwg.mxu0
    %v1136 = vrot.slane %v1130, 5
    %v1138 = vadd.f32 %v829, %v1136
    %v1139 = vtanh.pop %v1138
    %v1140 = vmul.f32 %v1139, 0.5
    %v1141 = vadd.f32 %v1140, 0.5
    %v1143 = vrot.slane %v1075, 7
    %v1145 = vmul.f32 %v1141, %v1143
    %1147 = vrot.lane.b32.xlu0 %v1139, 32
    %v1148 = vpop.permute.xlu0 %1147
    %v1150 = vmul.f32 %v1141, %v1148
    %1152 = vrot.lane.b32.xlu0 %v1150, 32
    %v1153 = vpop.permute.xlu0 %1152
    %v1155 = vadd.f32 %v1145, %v1153
    %v1156 = vtanh.pop %v1155
    %1158 = vrot.lane.b32.xlu0 %v1156, 32
    %v1159 = vpop.permute.xlu0 %1158
    %v1161 = vmul.f32 %v1141, %v1159
    %1163 = vrot.lane.b32.xlu0 %v1161, 64
    %v1164 = vpop.permute.xlu0 %1163
    %1166 = vst.msk [vmem:[#allocation2] sm:$0x8] %vm431, %v1164
    %v1167 = vpack.c.bf16 %v1161, %v1161
    %v1169 = vshrl.u32 %v1167, 16
    %v1171 = vrot.slane %v1169, 1
    %1172 = vrot.lane.b32.xlu0 %v1171, 64
    %v1173 = vpop.permute.xlu0 %1172
    %v1175 = vsel %vm115, %v1173, 0
    %1177 = vmatprep.subr.bf16.mxu0 0
    %1178 = vmatpush1.bf16.msra.mxu0 %v850
    %1179 = vmatprep.subr.bf16.mxu0 0
    %1180 = vmatpush1.bf16.msra.mxu0 %v851
    %1181 = vmatprep.subr.bf16.mxu0 0
    %1182 = vmatpush1.bf16.msra.mxu0 0
    %1183 = vmatprep.subr.bf16.mxu0 0
    %1184 = vmatpush1.bf16.msra.mxu0 0
    %1185 = vmatprep.subr.bf16.mxu0 0
    %1186 = vmatpush1.bf16.msra.mxu0 0
    %1187 = vmatprep.subr.bf16.mxu0 0
    %1188 = vmatpush1.bf16.msra.mxu0 0
    %1189 = vmatprep.subr.bf16.mxu0 0
    %1190 = vmatpush1.bf16.msra.mxu0 0
    %1191 = vmatprep.subr.bf16.mxu0 0
    %1192 = vmatpush1.bf16.msra.mxu0 0
    %1193 = vmatprep.subr.bf16.mxu0 0
    %1194 = vmatpush1.bf16.msra.mxu0 0
    %1195 = vmatprep.subr.bf16.mxu0 0
    %1196 = vmatpush1.bf16.msra.mxu0 0
    %1197 = vmatprep.subr.bf16.mxu0 0
    %1198 = vmatpush1.bf16.msra.mxu0 0
    %1199 = vmatprep.subr.bf16.mxu0 0
    %1200 = vmatpush1.bf16.msra.mxu0 0
    %1201 = vmatprep.subr.bf16.mxu0 0
    %1202 = vmatpush1.bf16.msra.mxu0 0
    %1203 = vmatprep.subr.bf16.mxu0 0
    %1204 = vmatpush1.bf16.msra.mxu0 0
    %1205 = vmatprep.subr.bf16.mxu0 0
    %1206 = vmatpush1.bf16.msra.mxu0 0
    %1207 = vmatprep.subr.bf16.mxu0 0
    %1208 = vmatpush1.bf16.msra.mxu0 0
    %1209 = vmatprep.mubr.bf16.mxu0 0
    %1210 = vmatmul.mubr.bf16.gmra.mrb[0].mxu0 %v1175
    %v1211 = vpop.f32.mrb[0].mxu0
    %v1212 = vadd.f32 0.0, %v1211
    %v1213 = vpop.f32.mrb[0].mxu0
    %v1214 = vpop.f32.mrb[0].mxu0
    %v1215 = vpop.f32.mrb[0].mxu0
    %1216 = vdwg.mxu0
    %v1218 = vrot.slane %v1212, 4
    %v1220 = vadd.f32 %v829, %v1218
    %v1221 = vtanh.pop %v1220
    %v1222 = vmul.f32 %v1221, 0.5
    %v1223 = vadd.f32 %v1222, 0.5
    %v1225 = vrot.slane %v1155, 7
    %v1227 = vmul.f32 %v1223, %v1225
    %1229 = vrot.lane.b32.xlu0 %v1221, 32
    %v1230 = vpop.permute.xlu0 %1229
    %v1232 = vmul.f32 %v1223, %v1230
    %1234 = vrot.lane.b32.xlu0 %v1232, 32
    %v1235 = vpop.permute.xlu0 %1234
    %v1237 = vadd.f32 %v1227, %v1235
    %v1238 = vtanh.pop %v1237
    %1240 = vrot.lane.b32.xlu0 %v1238, 32
    %v1241 = vpop.permute.xlu0 %1240
    %v1243 = vmul.f32 %v1223, %v1241
    %1245 = vrot.lane.b32.xlu0 %v1243, 64
    %v1246 = vpop.permute.xlu0 %1245
    %1248 = vst.msk [vmem:[#allocation2] sm:$0x10] %vm514, %v1246
    %v1249 = vpack.c.bf16 %v1243, %v1243
    %v1251 = vrot.slane %v1249, 2
    %1252 = vrot.lane.b32.xlu0 %v1251, 64
    %v1253 = vpop.permute.xlu0 %1252
    %v1255 = vsel %vm115, %v1253, 0
    %1257 = vmatprep.subr.bf16.mxu0 0
    %1258 = vmatpush1.bf16.msra.mxu0 %v850
    %1259 = vmatprep.subr.bf16.mxu0 0
    %1260 = vmatpush1.bf16.msra.mxu0 %v851
    %1261 = vmatprep.subr.bf16.mxu0 0
    %1262 = vmatpush1.bf16.msra.mxu0 0
    %1263 = vmatprep.subr.bf16.mxu0 0
    %1264 = vmatpush1.bf16.msra.mxu0 0
    %1265 = vmatprep.subr.bf16.mxu0 0
    %1266 = vmatpush1.bf16.msra.mxu0 0
    %1267 = vmatprep.subr.bf16.mxu0 0
    %1268 = vmatpush1.bf16.msra.mxu0 0
    %1269 = vmatprep.subr.bf16.mxu0 0
    %1270 = vmatpush1.bf16.msra.mxu0 0
    %1271 = vmatprep.subr.bf16.mxu0 0
    %1272 = vmatpush1.bf16.msra.mxu0 0
    %1273 = vmatprep.subr.bf16.mxu0 0
    %1274 = vmatpush1.bf16.msra.mxu0 0
    %1275 = vmatprep.subr.bf16.mxu0 0
    %1276 = vmatpush1.bf16.msra.mxu0 0
    %1277 = vmatprep.subr.bf16.mxu0 0
    %1278 = vmatpush1.bf16.msra.mxu0 0
    %1279 = vmatprep.subr.bf16.mxu0 0
    %1280 = vmatpush1.bf16.msra.mxu0 0
    %1281 = vmatprep.subr.bf16.mxu0 0
    %1282 = vmatpush1.bf16.msra.mxu0 0
    %1283 = vmatprep.subr.bf16.mxu0 0
    %1284 = vmatpush1.bf16.msra.mxu0 0
    %1285 = vmatprep.subr.bf16.mxu0 0
    %1286 = vmatpush1.bf16.msra.mxu0 0
    %1287 = vmatprep.subr.bf16.mxu0 0
    %1288 = vmatpush1.bf16.msra.mxu0 0
    %1289 = vmatprep.mubr.bf16.mxu0 0
    %1290 = vmatmul.mubr.bf16.gmra.mrb[0].mxu0 %v1255
    %v1291 = vpop.f32.mrb[0].mxu0
    %v1292 = vadd.f32 0.0, %v1291
    %v1293 = vpop.f32.mrb[0].mxu0
    %v1294 = vpop.f32.mrb[0].mxu0
    %v1295 = vpop.f32.mrb[0].mxu0
    %1296 = vdwg.mxu0
    %v1298 = vrot.slane %v1292, 3
    %v1300 = vadd.f32 %v829, %v1298
    %v1301 = vtanh.pop %v1300
    %v1302 = vmul.f32 %v1301, 0.5
    %v1303 = vadd.f32 %v1302, 0.5
    %v1305 = vrot.slane %v1237, 7
    %v1307 = vmul.f32 %v1303, %v1305
    %1309 = vrot.lane.b32.xlu0 %v1301, 32
    %v1310 = vpop.permute.xlu0 %1309
    %v1312 = vmul.f32 %v1303, %v1310
    %1314 = vrot.lane.b32.xlu0 %v1312, 32
    %v1315 = vpop.permute.xlu0 %1314
    %v1317 = vadd.f32 %v1307, %v1315
    %v1318 = vtanh.pop %v1317
    %1320 = vrot.lane.b32.xlu0 %v1318, 32
    %v1321 = vpop.permute.xlu0 %1320
    %v1323 = vmul.f32 %v1303, %v1321
    %1325 = vrot.lane.b32.xlu0 %v1323, 64
    %v1326 = vpop.permute.xlu0 %1325
    %1328 = vst.msk [vmem:[#allocation2] sm:$0x20] %vm595, %v1326
    %v1329 = vpack.c.bf16 %v1323, %v1323
    %v1331 = vshrl.u32 %v1329, 16
    %v1333 = vrot.slane %v1331, 2
    %1334 = vrot.lane.b32.xlu0 %v1333, 64
    %v1335 = vpop.permute.xlu0 %1334
    %v1337 = vsel %vm115, %v1335, 0
    %1339 = vmatprep.subr.bf16.mxu0 0
    %1340 = vmatpush1.bf16.msra.mxu0 %v850
    %1341 = vmatprep.subr.bf16.mxu0 0
    %1342 = vmatpush1.bf16.msra.mxu0 %v851
    %1343 = vmatprep.subr.bf16.mxu0 0
    %1344 = vmatpush1.bf16.msra.mxu0 0
    %1345 = vmatprep.subr.bf16.mxu0 0
    %1346 = vmatpush1.bf16.msra.mxu0 0
    %1347 = vmatprep.subr.bf16.mxu0 0
    %1348 = vmatpush1.bf16.msra.mxu0 0
    %1349 = vmatprep.subr.bf16.mxu0 0
    %1350 = vmatpush1.bf16.msra.mxu0 0
    %1351 = vmatprep.subr.bf16.mxu0 0
    %1352 = vmatpush1.bf16.msra.mxu0 0
    %1353 = vmatprep.subr.bf16.mxu0 0
    %1354 = vmatpush1.bf16.msra.mxu0 0
    %1355 = vmatprep.subr.bf16.mxu0 0
    %1356 = vmatpush1.bf16.msra.mxu0 0
    %1357 = vmatprep.subr.bf16.mxu0 0
    %1358 = vmatpush1.bf16.msra.mxu0 0
    %1359 = vmatprep.subr.bf16.mxu0 0
    %1360 = vmatpush1.bf16.msra.mxu0 0
    %1361 = vmatprep.subr.bf16.mxu0 0
    %1362 = vmatpush1.bf16.msra.mxu0 0
    %1363 = vmatprep.subr.bf16.mxu0 0
    %1364 = vmatpush1.bf16.msra.mxu0 0
    %1365 = vmatprep.subr.bf16.mxu0 0
    %1366 = vmatpush1.bf16.msra.mxu0 0
    %1367 = vmatprep.subr.bf16.mxu0 0
    %1368 = vmatpush1.bf16.msra.mxu0 0
    %1369 = vmatprep.subr.bf16.mxu0 0
    %1370 = vmatpush1.bf16.msra.mxu0 0
    %1371 = vmatprep.mubr.bf16.mxu0 0
    %1372 = vmatmul.mubr.bf16.gmra.mrb[0].mxu0 %v1337
    %v1373 = vpop.f32.mrb[0].mxu0
    %v1374 = vadd.f32 0.0, %v1373
    %v1375 = vpop.f32.mrb[0].mxu0
    %v1376 = vpop.f32.mrb[0].mxu0
    %v1377 = vpop.f32.mrb[0].mxu0
    %1378 = vdwg.mxu0
    %v1380 = vrot.slane %v1374, 2
    %v1382 = vadd.f32 %v829, %v1380
    %v1383 = vtanh.pop %v1382
    %v1384 = vmul.f32 %v1383, 0.5
    %v1385 = vadd.f32 %v1384, 0.5
    %v1387 = vrot.slane %v1317, 7
    %v1389 = vmul.f32 %v1385, %v1387
    %1391 = vrot.lane.b32.xlu0 %v1383, 32
    %v1392 = vpop.permute.xlu0 %1391
    %v1394 = vmul.f32 %v1385, %v1392
    %1396 = vrot.lane.b32.xlu0 %v1394, 32
    %v1397 = vpop.permute.xlu0 %1396
    %v1399 = vadd.f32 %v1389, %v1397
    %v1400 = vtanh.pop %v1399
    %1402 = vrot.lane.b32.xlu0 %v1400, 32
    %v1403 = vpop.permute.xlu0 %1402
    %v1405 = vmul.f32 %v1385, %v1403
    %1407 = vrot.lane.b32.xlu0 %v1405, 64
    %v1408 = vpop.permute.xlu0 %1407
    %1410 = vst.msk [vmem:[#allocation2] sm:$0x40] %vm678, %v1408
    %v1411 = vpack.c.bf16 %v1405, %v1405
    %v1413 = vrot.slane %v1411, 3
    %1414 = vrot.lane.b32.xlu0 %v1413, 64
    %v1415 = vpop.permute.xlu0 %1414
    %v1417 = vsel %vm115, %v1415, 0
    %1419 = vmatprep.subr.bf16.mxu0 0
    %1420 = vmatpush1.bf16.msra.mxu0 %v850
    %1421 = vmatprep.subr.bf16.mxu0 0
    %1422 = vmatpush1.bf16.msra.mxu0 %v851
    %1423 = vmatprep.subr.bf16.mxu0 0
    %1424 = vmatpush1.bf16.msra.mxu0 0
    %1425 = vmatprep.subr.bf16.mxu0 0
    %1426 = vmatpush1.bf16.msra.mxu0 0
    %1427 = vmatprep.subr.bf16.mxu0 0
    %1428 = vmatpush1.bf16.msra.mxu0 0
    %1429 = vmatprep.subr.bf16.mxu0 0
    %1430 = vmatpush1.bf16.msra.mxu0 0
    %1431 = vmatprep.subr.bf16.mxu0 0
    %1432 = vmatpush1.bf16.msra.mxu0 0
    %1433 = vmatprep.subr.bf16.mxu0 0
    %1434 = vmatpush1.bf16.msra.mxu0 0
    %1435 = vmatprep.subr.bf16.mxu0 0
    %1436 = vmatpush1.bf16.msra.mxu0 0
    %1437 = vmatprep.subr.bf16.mxu0 0
    %1438 = vmatpush1.bf16.msra.mxu0 0
    %1439 = vmatprep.subr.bf16.mxu0 0
    %1440 = vmatpush1.bf16.msra.mxu0 0
    %1441 = vmatprep.subr.bf16.mxu0 0
    %1442 = vmatpush1.bf16.msra.mxu0 0
    %1443 = vmatprep.subr.bf16.mxu0 0
    %1444 = vmatpush1.bf16.msra.mxu0 0
    %1445 = vmatprep.subr.bf16.mxu0 0
    %1446 = vmatpush1.bf16.msra.mxu0 0
    %1447 = vmatprep.subr.bf16.mxu0 0
    %1448 = vmatpush1.bf16.msra.mxu0 0
    %1449 = vmatprep.subr.bf16.mxu0 0
    %1450 = vmatpush1.bf16.msra.mxu0 0
    %1451 = vmatprep.mubr.bf16.mxu0 0
    %1452 = vmatmul.mubr.bf16.gmra.mrb[0].mxu0 %v1417
    %v1453 = vpop.f32.mrb[0].mxu0
    %v1454 = vadd.f32 0.0, %v1453
    %v1455 = vpop.f32.mrb[0].mxu0
    %v1456 = vpop.f32.mrb[0].mxu0
    %v1457 = vpop.f32.mrb[0].mxu0
    %1458 = vdwg.mxu0
    %v1460 = vrot.slane %v1454, 1
    %v1462 = vadd.f32 %v829, %v1460
    %v1463 = vtanh.pop %v1462
    %v1464 = vmul.f32 %v1463, 0.5
    %v1465 = vadd.f32 %v1464, 0.5
    %v1467 = vrot.slane %v1399, 7
    %v1469 = vmul.f32 %v1465, %v1467
    %1471 = vrot.lane.b32.xlu0 %v1463, 32
    %v1472 = vpop.permute.xlu0 %1471
    %v1474 = vmul.f32 %v1465, %v1472
    %1476 = vrot.lane.b32.xlu0 %v1474, 32
    %v1477 = vpop.permute.xlu0 %1476
    %v1479 = vadd.f32 %v1469, %v1477
    %v1480 = vtanh.pop %v1479
    %1482 = vrot.lane.b32.xlu0 %v1480, 32
    %v1483 = vpop.permute.xlu0 %1482
    %v1485 = vmul.f32 %v1465, %v1483
    %1487 = vrot.lane.b32.xlu0 %v1485, 64
    %v1488 = vpop.permute.xlu0 %1487
    %1490 = vst.msk [vmem:[#allocation2] sm:$0x80] %vm759, %v1488
    %1491 = vst.msk [vmem:[%s6 - $0x6] sm:$0x80] %vm759, %v1488
    %1493 = vrot.lane.b32.xlu0 %v1479, 96
    %v1494 = vpop.permute.xlu0 %1493
    %1496 = vst.msk [vmem:[%s6 - $0x3] sm:$0x80] %vm759, %v1494
    %v1497 = vld [vmem:[#allocation2] sm:$0xff]
    %v1498 = vpack.c.bf16 %v1497, %v1497
    %s1499 = scalar_lea.vmem [#allocation3], 64
    %v1500 = vld [vmem:[%s1499] sm:$0xf]
    %v1501 = vld [vmem:[%s1499 + $0x4] sm:$0xf]
    %v1502 = vld [vmem:[%s1499 + $0x8] sm:$0xf]
    %v1503 = vld [vmem:[%s1499 + $0xc] sm:$0xf]
    %v1504 = vld [vmem:[%s3 + $0x1] sm:$0x1]
    %v1505 = vlaneseq
    %v1506 = vshrl.u32 %v1505, 7
    %v1507 = vsub.s32 0, %v1506
    %v1508 = vrot.slane %v1504, %v1507
    %v1513 = vunpack.c.l.b16 %v1500
    %v1514 = vunpack.c.l.b16 %v1501
    %v1515 = vunpack.c.l.b16 %v1502
    %v1516 = vunpack.c.l.b16 %v1503
    %v1517 = vpack.c.b16 %v1514, %v1513
    %v1518 = vpack.c.b16 %v1516, %v1515
    %v1522 = vsel %vm115, %v1498, 0
    %1524 = vmatprep.subr.bf16.mxu0 0
    %1525 = vmatpush1.bf16.msra.mxu0 %v1517
    %1526 = vmatprep.subr.bf16.mxu0 0
    %1527 = vmatpush1.bf16.msra.mxu0 %v1518
    %1528 = vmatprep.subr.bf16.mxu0 0
    %1529 = vmatpush1.bf16.msra.mxu0 0
    %1530 = vmatprep.subr.bf16.mxu0 0
    %1531 = vmatpush1.bf16.msra.mxu0 0
    %1532 = vmatprep.subr.bf16.mxu0 0
    %1533 = vmatpush1.bf16.msra.mxu0 0
    %1534 = vmatprep.subr.bf16.mxu0 0
    %1535 = vmatpush1.bf16.msra.mxu0 0
    %1536 = vmatprep.subr.bf16.mxu0 0
    %1537 = vmatpush1.bf16.msra.mxu0 0
    %1538 = vmatprep.subr.bf16.mxu0 0
    %1539 = vmatpush1.bf16.msra.mxu0 0
    %1540 = vmatprep.subr.bf16.mxu0 0
    %1541 = vmatpush1.bf16.msra.mxu0 0
    %1542 = vmatprep.subr.bf16.mxu0 0
    %1543 = vmatpush1.bf16.msra.mxu0 0
    %1544 = vmatprep.subr.bf16.mxu0 0
    %1545 = vmatpush1.bf16.msra.mxu0 0
    %1546 = vmatprep.subr.bf16.mxu0 0
    %1547 = vmatpush1.bf16.msra.mxu0 0
    %1548 = vmatprep.subr.bf16.mxu0 0
    %1549 = vmatpush1.bf16.msra.mxu0 0
    %1550 = vmatprep.subr.bf16.mxu0 0
    %1551 = vmatpush1.bf16.msra.mxu0 0
    %1552 = vmatprep.subr.bf16.mxu0 0
    %1553 = vmatpush1.bf16.msra.mxu0 0
    %1554 = vmatprep.subr.bf16.mxu0 0
    %1555 = vmatpush1.bf16.msra.mxu0 0
    %1556 = vmatprep.mubr.bf16.mxu0 0
    %1557 = vmatmul.mubr.bf16.gmra.mrb[0].mxu0 %v1522
    %v1558 = vpop.f32.mrb[0].mxu0
    %v1559 = vadd.f32 %v1508, %v1558
    %v1560 = vpop.f32.mrb[0].mxu0
    %v1561 = vpop.f32.mrb[0].mxu0
    %v1562 = vpop.f32.mrb[0].mxu0
    %1563 = vdwg.mxu0
    %s1564 = scalar_lea.vmem [#allocation3], 32
    %v1565 = vld [vmem:[%s1564] sm:$0xf]
    %v1566 = vld [vmem:[%s1564 + $0x4] sm:$0xf]
    %v1567 = vld [vmem:[%s1564 + $0x8] sm:$0xf]
    %v1568 = vld [vmem:[%s1564 + $0xc] sm:$0xf]
    %v1569 = vld [vmem:[%s4 + $0x2] sm:$0x1]
    %v1570 = vld [vmem:[%s4 + $0x5] sm:$0x1]
    %v1571 = vpack.c.bf16 %v1569, %v1569
    %v1576 = vunpack.c.l.b16 %v1565
    %v1577 = vunpack.c.l.b16 %v1566
    %v1578 = vunpack.c.l.b16 %v1567
    %v1579 = vunpack.c.l.b16 %v1568
    %v1580 = vpack.c.b16 %v1577, %v1576
    %v1581 = vpack.c.b16 %v1579, %v1578
    %v1585 = vsel %vm115, %v1571, 0
    %1587 = vmatprep.subr.bf16.mxu0 0
    %1588 = vmatpush1.bf16.msra.mxu0 %v1580
    %1589 = vmatprep.subr.bf16.mxu0 0
    %1590 = vmatpush1.bf16.msra.mxu0 %v1581
    %1591 = vmatprep.subr.bf16.mxu0 0
    %1592 = vmatpush1.bf16.msra.mxu0 0
    %1593 = vmatprep.subr.bf16.mxu0 0
    %1594 = vmatpush1.bf16.msra.mxu0 0
    %1595 = vmatprep.subr.bf16.mxu0 0
    %1596 = vmatpush1.bf16.msra.mxu0 0
    %1597 = vmatprep.subr.bf16.mxu0 0
    %1598 = vmatpush1.bf16.msra.mxu0 0
    %1599 = vmatprep.subr.bf16.mxu0 0
    %1600 = vmatpush1.bf16.msra.mxu0 0
    %1601 = vmatprep.subr.bf16.mxu0 0
    %1602 = vmatpush1.bf16.msra.mxu0 0
    %1603 = vmatprep.subr.bf16.mxu0 0
    %1604 = vmatpush1.bf16.msra.mxu0 0
    %1605 = vmatprep.subr.bf16.mxu0 0
    %1606 = vmatpush1.bf16.msra.mxu0 0
    %1607 = vmatprep.subr.bf16.mxu0 0
    %1608 = vmatpush1.bf16.msra.mxu0 0
    %1609 = vmatprep.subr.bf16.mxu0 0
    %1610 = vmatpush1.bf16.msra.mxu0 0
    %1611 = vmatprep.subr.bf16.mxu0 0
    %1612 = vmatpush1.bf16.msra.mxu0 0
    %1613 = vmatprep.subr.bf16.mxu0 0
    %1614 = vmatpush1.bf16.msra.mxu0 0
    %1615 = vmatprep.subr.bf16.mxu0 0
    %1616 = vmatpush1.bf16.msra.mxu0 0
    %1617 = vmatprep.subr.bf16.mxu0 0
    %1618 = vmatpush1.bf16.msra.mxu0 0
    %1619 = vmatprep.mubr.bf16.mxu0 0
    %1620 = vmatmul.mubr.bf16.gmra.mrb[0].mxu0 %v1585
    %v1621 = vpop.f32.mrb[0].mxu0
    %v1622 = vadd.f32 0.0, %v1621
    %v1623 = vpop.f32.mrb[0].mxu0
    %v1624 = vpop.f32.mrb[0].mxu0
    %v1625 = vpop.f32.mrb[0].mxu0
    %1626 = vdwg.mxu0
    %v1627 = vadd.f32 %v1559, %v1622
    %v1628 = vtanh.pop %v1627
    %v1629 = vmul.f32 %v1628, 0.5
    %v1630 = vadd.f32 %v1629, 0.5
    %1632 = vrot.lane.b32.xlu0 %v1570, 32
    %v1633 = vpop.permute.xlu0 %1632
    %v1635 = vmul.f32 %v1630, %v1633
    %1637 = vrot.lane.b32.xlu0 %v1628, 32
    %v1638 = vpop.permute.xlu0 %1637
    %v1640 = vmul.f32 %v1630, %v1638
    %1642 = vrot.lane.b32.xlu0 %v1640, 32
    %v1643 = vpop.permute.xlu0 %1642
    %v1645 = vadd.f32 %v1635, %v1643
    %v1646 = vtanh.pop %v1645
    %1648 = vrot.lane.b32.xlu0 %v1646, 32
    %v1649 = vpop.permute.xlu0 %1648
    %v1651 = vmul.f32 %v1630, %v1649
    %1653 = vrot.lane.b32.xlu0 %v1651, 64
    %v1654 = vpop.permute.xlu0 %1653
    %1656 = vst.msk [vmem:[#allocation2] sm:$0x1] %vm188, %v1654
    %v1657 = vpack.c.bf16 %v1651, %v1651
    %1659 = vrot.lane.b32.xlu0 %v1657, 64
    %v1660 = vpop.permute.xlu0 %1659
    %v1662 = vsel %vm115, %v1660, 0
    %1664 = vmatprep.subr.bf16.mxu0 0
    %1665 = vmatpush1.bf16.msra.mxu0 %v1580
    %1666 = vmatprep.subr.bf16.mxu0 0
    %1667 = vmatpush1.bf16.msra.mxu0 %v1581
    %1668 = vmatprep.subr.bf16.mxu0 0
    %1669 = vmatpush1.bf16.msra.mxu0 0
    %1670 = vmatprep.subr.bf16.mxu0 0
    %1671 = vmatpush1.bf16.msra.mxu0 0
    %1672 = vmatprep.subr.bf16.mxu0 0
    %1673 = vmatpush1.bf16.msra.mxu0 0
    %1674 = vmatprep.subr.bf16.mxu0 0
    %1675 = vmatpush1.bf16.msra.mxu0 0
    %1676 = vmatprep.subr.bf16.mxu0 0
    %1677 = vmatpush1.bf16.msra.mxu0 0
    %1678 = vmatprep.subr.bf16.mxu0 0
    %1679 = vmatpush1.bf16.msra.mxu0 0
    %1680 = vmatprep.subr.bf16.mxu0 0
    %1681 = vmatpush1.bf16.msra.mxu0 0
    %1682 = vmatprep.subr.bf16.mxu0 0
    %1683 = vmatpush1.bf16.msra.mxu0 0
    %1684 = vmatprep.subr.bf16.mxu0 0
    %1685 = vmatpush1.bf16.msra.mxu0 0
    %1686 = vmatprep.subr.bf16.mxu0 0
    %1687 = vmatpush1.bf16.msra.mxu0 0
    %1688 = vmatprep.subr.bf16.mxu0 0
    %1689 = vmatpush1.bf16.msra.mxu0 0
    %1690 = vmatprep.subr.bf16.mxu0 0
    %1691 = vmatpush1.bf16.msra.mxu0 0
    %1692 = vmatprep.subr.bf16.mxu0 0
    %1693 = vmatpush1.bf16.msra.mxu0 0
    %1694 = vmatprep.subr.bf16.mxu0 0
    %1695 = vmatpush1.bf16.msra.mxu0 0
    %1696 = vmatprep.mubr.bf16.mxu0 0
    %1697 = vmatmul.mubr.bf16.gmra.mrb[0].mxu0 %v1662
    %v1698 = vpop.f32.mrb[0].mxu0
    %v1699 = vadd.f32 0.0, %v1698
    %v1700 = vpop.f32.mrb[0].mxu0
    %v1701 = vpop.f32.mrb[0].mxu0
    %v1702 = vpop.f32.mrb[0].mxu0
    %1703 = vdwg.mxu0
    %v1705 = vrot.slane %v1699, 7
    %v1707 = vadd.f32 %v1559, %v1705
    %v1708 = vtanh.pop %v1707
    %v1709 = vmul.f32 %v1708, 0.5
    %v1710 = vadd.f32 %v1709, 0.5
    %v1712 = vrot.slane %v1645, 7
    %v1714 = vmul.f32 %v1710, %v1712
    %1716 = vrot.lane.b32.xlu0 %v1708, 32
    %v1717 = vpop.permute.xlu0 %1716
    %v1719 = vmul.f32 %v1710, %v1717
    %1721 = vrot.lane.b32.xlu0 %v1719, 32
    %v1722 = vpop.permute.xlu0 %1721
    %v1724 = vadd.f32 %v1714, %v1722
    %v1725 = vtanh.pop %v1724
    %1727 = vrot.lane.b32.xlu0 %v1725, 32
    %v1728 = vpop.permute.xlu0 %1727
    %v1730 = vmul.f32 %v1710, %v1728
    %1732 = vrot.lane.b32.xlu0 %v1730, 64
    %v1733 = vpop.permute.xlu0 %1732
    %1735 = vst.msk [vmem:[#allocation2] sm:$0x2] %vm268, %v1733
    %v1736 = vpack.c.bf16 %v1730, %v1730
    %v1738 = vshrl.u32 %v1736, 16
    %1740 = vrot.lane.b32.xlu0 %v1738, 64
    %v1741 = vpop.permute.xlu0 %1740
    %v1743 = vsel %vm115, %v1741, 0
    %1745 = vmatprep.subr.bf16.mxu0 0
    %1746 = vmatpush1.bf16.msra.mxu0 %v1580
    %1747 = vmatprep.subr.bf16.mxu0 0
    %1748 = vmatpush1.bf16.msra.mxu0 %v1581
    %1749 = vmatprep.subr.bf16.mxu0 0
    %1750 = vmatpush1.bf16.msra.mxu0 0
    %1751 = vmatprep.subr.bf16.mxu0 0
    %1752 = vmatpush1.bf16.msra.mxu0 0
    %1753 = vmatprep.subr.bf16.mxu0 0
    %1754 = vmatpush1.bf16.msra.mxu0 0
    %1755 = vmatprep.subr.bf16.mxu0 0
    %1756 = vmatpush1.bf16.msra.mxu0 0
    %1757 = vmatprep.subr.bf16.mxu0 0
    %1758 = vmatpush1.bf16.msra.mxu0 0
    %1759 = vmatprep.subr.bf16.mxu0 0
    %1760 = vmatpush1.bf16.msra.mxu0 0
    %1761 = vmatprep.subr.bf16.mxu0 0
    %1762 = vmatpush1.bf16.msra.mxu0 0
    %1763 = vmatprep.subr.bf16.mxu0 0
    %1764 = vmatpush1.bf16.msra.mxu0 0
    %1765 = vmatprep.subr.bf16.mxu0 0
    %1766 = vmatpush1.bf16.msra.mxu0 0
    %1767 = vmatprep.subr.bf16.mxu0 0
    %1768 = vmatpush1.bf16.msra.mxu0 0
    %1769 = vmatprep.subr.bf16.mxu0 0
    %1770 = vmatpush1.bf16.msra.mxu0 0
    %1771 = vmatprep.subr.bf16.mxu0 0
    %1772 = vmatpush1.bf16.msra.mxu0 0
    %1773 = vmatprep.subr.bf16.mxu0 0
    %1774 = vmatpush1.bf16.msra.mxu0 0
    %1775 = vmatprep.subr.bf16.mxu0 0
    %1776 = vmatpush1.bf16.msra.mxu0 0
    %1777 = vmatprep.mubr.bf16.mxu0 0
    %1778 = vmatmul.mubr.bf16.gmra.mrb[0].mxu0 %v1743
    %v1779 = vpop.f32.mrb[0].mxu0
    %v1780 = vadd.f32 0.0, %v1779
    %v1781 = vpop.f32.mrb[0].mxu0
    %v1782 = vpop.f32.mrb[0].mxu0
    %v1783 = vpop.f32.mrb[0].mxu0
    %1784 = vdwg.mxu0
    %v1786 = vrot.slane %v1780, 6
    %v1788 = vadd.f32 %v1559, %v1786
    %v1789 = vtanh.pop %v1788
    %v1790 = vmul.f32 %v1789, 0.5
    %v1791 = vadd.f32 %v1790, 0.5
    %v1793 = vrot.slane %v1724, 7
    %v1795 = vmul.f32 %v1791, %v1793
    %1797 = vrot.lane.b32.xlu0 %v1789, 32
    %v1798 = vpop.permute.xlu0 %1797
    %v1800 = vmul.f32 %v1791, %v1798
    %1802 = vrot.lane.b32.xlu0 %v1800, 32
    %v1803 = vpop.permute.xlu0 %1802
    %v1805 = vadd.f32 %v1795, %v1803
    %v1806 = vtanh.pop %v1805
    %1808 = vrot.lane.b32.xlu0 %v1806, 32
    %v1809 = vpop.permute.xlu0 %1808
    %v1811 = vmul.f32 %v1791, %v1809
    %1813 = vrot.lane.b32.xlu0 %v1811, 64
    %v1814 = vpop.permute.xlu0 %1813
    %1816 = vst.msk [vmem:[#allocation2] sm:$0x4] %vm350, %v1814
    %v1817 = vpack.c.bf16 %v1811, %v1811
    %v1819 = vrot.slane %v1817, 1
    %1820 = vrot.lane.b32.xlu0 %v1819, 64
    %v1821 = vpop.permute.xlu0 %1820
    %v1823 = vsel %vm115, %v1821, 0
    %1825 = vmatprep.subr.bf16.mxu0 0
    %1826 = vmatpush1.bf16.msra.mxu0 %v1580
    %1827 = vmatprep.subr.bf16.mxu0 0
    %1828 = vmatpush1.bf16.msra.mxu0 %v1581
    %1829 = vmatprep.subr.bf16.mxu0 0
    %1830 = vmatpush1.bf16.msra.mxu0 0
    %1831 = vmatprep.subr.bf16.mxu0 0
    %1832 = vmatpush1.bf16.msra.mxu0 0
    %1833 = vmatprep.subr.bf16.mxu0 0
    %1834 = vmatpush1.bf16.msra.mxu0 0
    %1835 = vmatprep.subr.bf16.mxu0 0
    %1836 = vmatpush1.bf16.msra.mxu0 0
    %1837 = vmatprep.subr.bf16.mxu0 0
    %1838 = vmatpush1.bf16.msra.mxu0 0
    %1839 = vmatprep.subr.bf16.mxu0 0
    %1840 = vmatpush1.bf16.msra.mxu0 0
    %1841 = vmatprep.subr.bf16.mxu0 0
    %1842 = vmatpush1.bf16.msra.mxu0 0
    %1843 = vmatprep.subr.bf16.mxu0 0
    %1844 = vmatpush1.bf16.msra.mxu0 0
    %1845 = vmatprep.subr.bf16.mxu0 0
    %1846 = vmatpush1.bf16.msra.mxu0 0
    %1847 = vmatprep.subr.bf16.mxu0 0
    %1848 = vmatpush1.bf16.msra.mxu0 0
    %1849 = vmatprep.subr.bf16.mxu0 0
    %1850 = vmatpush1.bf16.msra.mxu0 0
    %1851 = vmatprep.subr.bf16.mxu0 0
    %1852 = vmatpush1.bf16.msra.mxu0 0
    %1853 = vmatprep.subr.bf16.mxu0 0
    %1854 = vmatpush1.bf16.msra.mxu0 0
    %1855 = vmatprep.subr.bf16.mxu0 0
    %1856 = vmatpush1.bf16.msra.mxu0 0
    %1857 = vmatprep.mubr.bf16.mxu0 0
    %1858 = vmatmul.mubr.bf16.gmra.mrb[0].mxu0 %v1823
    %v1859 = vpop.f32.mrb[0].mxu0
    %v1860 = vadd.f32 0.0, %v1859
    %v1861 = vpop.f32.mrb[0].mxu0
    %v1862 = vpop.f32.mrb[0].mxu0
    %v1863 = vpop.f32.mrb[0].mxu0
    %1864 = vdwg.mxu0
    %v1866 = vrot.slane %v1860, 5
    %v1868 = vadd.f32 %v1559, %v1866
    %v1869 = vtanh.pop %v1868
    %v1870 = vmul.f32 %v1869, 0.5
    %v1871 = vadd.f32 %v1870, 0.5
    %v1873 = vrot.slane %v1805, 7
    %v1875 = vmul.f32 %v1871, %v1873
    %1877 = vrot.lane.b32.xlu0 %v1869, 32
    %v1878 = vpop.permute.xlu0 %1877
    %v1880 = vmul.f32 %v1871, %v1878
    %1882 = vrot.lane.b32.xlu0 %v1880, 32
    %v1883 = vpop.permute.xlu0 %1882
    %v1885 = vadd.f32 %v1875, %v1883
    %v1886 = vtanh.pop %v1885
    %1888 = vrot.lane.b32.xlu0 %v1886, 32
    %v1889 = vpop.permute.xlu0 %1888
    %v1891 = vmul.f32 %v1871, %v1889
    %1893 = vrot.lane.b32.xlu0 %v1891, 64
    %v1894 = vpop.permute.xlu0 %1893
    %1896 = vst.msk [vmem:[#allocation2] sm:$0x8] %vm431, %v1894
    %v1897 = vpack.c.bf16 %v1891, %v1891
    %v1899 = vshrl.u32 %v1897, 16
    %v1901 = vrot.slane %v1899, 1
    %1902 = vrot.lane.b32.xlu0 %v1901, 64
    %v1903 = vpop.permute.xlu0 %1902
    %v1905 = vsel %vm115, %v1903, 0
    %1907 = vmatprep.subr.bf16.mxu0 0
    %1908 = vmatpush1.bf16.msra.mxu0 %v1580
    %1909 = vmatprep.subr.bf16.mxu0 0
    %1910 = vmatpush1.bf16.msra.mxu0 %v1581
    %1911 = vmatprep.subr.bf16.mxu0 0
    %1912 = vmatpush1.bf16.msra.mxu0 0
    %1913 = vmatprep.subr.bf16.mxu0 0
    %1914 = vmatpush1.bf16.msra.mxu0 0
    %1915 = vmatprep.subr.bf16.mxu0 0
    %1916 = vmatpush1.bf16.msra.mxu0 0
    %1917 = vmatprep.subr.bf16.mxu0 0
    %1918 = vmatpush1.bf16.msra.mxu0 0
    %1919 = vmatprep.subr.bf16.mxu0 0
    %1920 = vmatpush1.bf16.msra.mxu0 0
    %1921 = vmatprep.subr.bf16.mxu0 0
    %1922 = vmatpush1.bf16.msra.mxu0 0
    %1923 = vmatprep.subr.bf16.mxu0 0
    %1924 = vmatpush1.bf16.msra.mxu0 0
    %1925 = vmatprep.subr.bf16.mxu0 0
    %1926 = vmatpush1.bf16.msra.mxu0 0
    %1927 = vmatprep.subr.bf16.mxu0 0
    %1928 = vmatpush1.bf16.msra.mxu0 0
    %1929 = vmatprep.subr.bf16.mxu0 0
    %1930 = vmatpush1.bf16.msra.mxu0 0
    %1931 = vmatprep.subr.bf16.mxu0 0
    %1932 = vmatpush1.bf16.msra.mxu0 0
    %1933 = vmatprep.subr.bf16.mxu0 0
    %1934 = vmatpush1.bf16.msra.mxu0 0
    %1935 = vmatprep.subr.bf16.mxu0 0
    %1936 = vmatpush1.bf16.msra.mxu0 0
    %1937 = vmatprep.subr.bf16.mxu0 0
    %1938 = vmatpush1.bf16.msra.mxu0 0
    %1939 = vmatprep.mubr.bf16.mxu0 0
    %1940 = vmatmul.mubr.bf16.gmra.mrb[0].mxu0 %v1905
    %v1941 = vpop.f32.mrb[0].mxu0
    %v1942 = vadd.f32 0.0, %v1941
    %v1943 = vpop.f32.mrb[0].mxu0
    %v1944 = vpop.f32.mrb[0].mxu0
    %v1945 = vpop.f32.mrb[0].mxu0
    %1946 = vdwg.mxu0
    %v1948 = vrot.slane %v1942, 4
    %v1950 = vadd.f32 %v1559, %v1948
    %v1951 = vtanh.pop %v1950
    %v1952 = vmul.f32 %v1951, 0.5
    %v1953 = vadd.f32 %v1952, 0.5
    %v1955 = vrot.slane %v1885, 7
    %v1957 = vmul.f32 %v1953, %v1955
    %1959 = vrot.lane.b32.xlu0 %v1951, 32
    %v1960 = vpop.permute.xlu0 %1959
    %v1962 = vmul.f32 %v1953, %v1960
    %1964 = vrot.lane.b32.xlu0 %v1962, 32
    %v1965 = vpop.permute.xlu0 %1964
    %v1967 = vadd.f32 %v1957, %v1965
    %v1968 = vtanh.pop %v1967
    %1970 = vrot.lane.b32.xlu0 %v1968, 32
    %v1971 = vpop.permute.xlu0 %1970
    %v1973 = vmul.f32 %v1953, %v1971
    %1975 = vrot.lane.b32.xlu0 %v1973, 64
    %v1976 = vpop.permute.xlu0 %1975
    %1978 = vst.msk [vmem:[#allocation2] sm:$0x10] %vm514, %v1976
    %v1979 = vpack.c.bf16 %v1973, %v1973
    %v1981 = vrot.slane %v1979, 2
    %1982 = vrot.lane.b32.xlu0 %v1981, 64
    %v1983 = vpop.permute.xlu0 %1982
    %v1985 = vsel %vm115, %v1983, 0
    %1987 = vmatprep.subr.bf16.mxu0 0
    %1988 = vmatpush1.bf16.msra.mxu0 %v1580
    %1989 = vmatprep.subr.bf16.mxu0 0
    %1990 = vmatpush1.bf16.msra.mxu0 %v1581
    %1991 = vmatprep.subr.bf16.mxu0 0
    %1992 = vmatpush1.bf16.msra.mxu0 0
    %1993 = vmatprep.subr.bf16.mxu0 0
    %1994 = vmatpush1.bf16.msra.mxu0 0
    %1995 = vmatprep.subr.bf16.mxu0 0
    %1996 = vmatpush1.bf16.msra.mxu0 0
    %1997 = vmatprep.subr.bf16.mxu0 0
    %1998 = vmatpush1.bf16.msra.mxu0 0
    %1999 = vmatprep.subr.bf16.mxu0 0
    %2000 = vmatpush1.bf16.msra.mxu0 0
    %2001 = vmatprep.subr.bf16.mxu0 0
    %2002 = vmatpush1.bf16.msra.mxu0 0
    %2003 = vmatprep.subr.bf16.mxu0 0
    %2004 = vmatpush1.bf16.msra.mxu0 0
    %2005 = vmatprep.subr.bf16.mxu0 0
    %2006 = vmatpush1.bf16.msra.mxu0 0
    %2007 = vmatprep.subr.bf16.mxu0 0
    %2008 = vmatpush1.bf16.msra.mxu0 0
    %2009 = vmatprep.subr.bf16.mxu0 0
    %2010 = vmatpush1.bf16.msra.mxu0 0
    %2011 = vmatprep.subr.bf16.mxu0 0
    %2012 = vmatpush1.bf16.msra.mxu0 0
    %2013 = vmatprep.subr.bf16.mxu0 0
    %2014 = vmatpush1.bf16.msra.mxu0 0
    %2015 = vmatprep.subr.bf16.mxu0 0
    %2016 = vmatpush1.bf16.msra.mxu0 0
    %2017 = vmatprep.subr.bf16.mxu0 0
    %2018 = vmatpush1.bf16.msra.mxu0 0
    %2019 = vmatprep.mubr.bf16.mxu0 0
    %2020 = vmatmul.mubr.bf16.gmra.mrb[0].mxu0 %v1985
    %v2021 = vpop.f32.mrb[0].mxu0
    %v2022 = vadd.f32 0.0, %v2021
    %v2023 = vpop.f32.mrb[0].mxu0
    %v2024 = vpop.f32.mrb[0].mxu0
    %v2025 = vpop.f32.mrb[0].mxu0
    %2026 = vdwg.mxu0
    %v2028 = vrot.slane %v2022, 3
    %v2030 = vadd.f32 %v1559, %v2028
    %v2031 = vtanh.pop %v2030
    %v2032 = vmul.f32 %v2031, 0.5
    %v2033 = vadd.f32 %v2032, 0.5
    %v2035 = vrot.slane %v1967, 7
    %v2037 = vmul.f32 %v2033, %v2035
    %2039 = vrot.lane.b32.xlu0 %v2031, 32
    %v2040 = vpop.permute.xlu0 %2039
    %v2042 = vmul.f32 %v2033, %v2040
    %2044 = vrot.lane.b32.xlu0 %v2042, 32
    %v2045 = vpop.permute.xlu0 %2044
    %v2047 = vadd.f32 %v2037, %v2045
    %v2048 = vtanh.pop %v2047
    %2050 = vrot.lane.b32.xlu0 %v2048, 32
    %v2051 = vpop.permute.xlu0 %2050
    %v2053 = vmul.f32 %v2033, %v2051
    %2055 = vrot.lane.b32.xlu0 %v2053, 64
    %v2056 = vpop.permute.xlu0 %2055
    %2058 = vst.msk [vmem:[#allocation2] sm:$0x20] %vm595, %v2056
    %v2059 = vpack.c.bf16 %v2053, %v2053
    %v2061 = vshrl.u32 %v2059, 16
    %v2063 = vrot.slane %v2061, 2
    %2064 = vrot.lane.b32.xlu0 %v2063, 64
    %v2065 = vpop.permute.xlu0 %2064
    %v2067 = vsel %vm115, %v2065, 0
    %2069 = vmatprep.subr.bf16.mxu0 0
    %2070 = vmatpush1.bf16.msra.mxu0 %v1580
    %2071 = vmatprep.subr.bf16.mxu0 0
    %2072 = vmatpush1.bf16.msra.mxu0 %v1581
    %2073 = vmatprep.subr.bf16.mxu0 0
    %2074 = vmatpush1.bf16.msra.mxu0 0
    %2075 = vmatprep.subr.bf16.mxu0 0
    %2076 = vmatpush1.bf16.msra.mxu0 0
    %2077 = vmatprep.subr.bf16.mxu0 0
    %2078 = vmatpush1.bf16.msra.mxu0 0
    %2079 = vmatprep.subr.bf16.mxu0 0
    %2080 = vmatpush1.bf16.msra.mxu0 0
    %2081 = vmatprep.subr.bf16.mxu0 0
    %2082 = vmatpush1.bf16.msra.mxu0 0
    %2083 = vmatprep.subr.bf16.mxu0 0
    %2084 = vmatpush1.bf16.msra.mxu0 0
    %2085 = vmatprep.subr.bf16.mxu0 0
    %2086 = vmatpush1.bf16.msra.mxu0 0
    %2087 = vmatprep.subr.bf16.mxu0 0
    %2088 = vmatpush1.bf16.msra.mxu0 0
    %2089 = vmatprep.subr.bf16.mxu0 0
    %2090 = vmatpush1.bf16.msra.mxu0 0
    %2091 = vmatprep.subr.bf16.mxu0 0
    %2092 = vmatpush1.bf16.msra.mxu0 0
    %2093 = vmatprep.subr.bf16.mxu0 0
    %2094 = vmatpush1.bf16.msra.mxu0 0
    %2095 = vmatprep.subr.bf16.mxu0 0
    %2096 = vmatpush1.bf16.msra.mxu0 0
    %2097 = vmatprep.subr.bf16.mxu0 0
    %2098 = vmatpush1.bf16.msra.mxu0 0
    %2099 = vmatprep.subr.bf16.mxu0 0
    %2100 = vmatpush1.bf16.msra.mxu0 0
    %2101 = vmatprep.mubr.bf16.mxu0 0
    %2102 = vmatmul.mubr.bf16.gmra.mrb[0].mxu0 %v2067
    %v2103 = vpop.f32.mrb[0].mxu0
    %v2104 = vadd.f32 0.0, %v2103
    %v2105 = vpop.f32.mrb[0].mxu0
    %v2106 = vpop.f32.mrb[0].mxu0
    %v2107 = vpop.f32.mrb[0].mxu0
    %2108 = vdwg.mxu0
    %v2110 = vrot.slane %v2104, 2
    %v2112 = vadd.f32 %v1559, %v2110
    %v2113 = vtanh.pop %v2112
    %v2114 = vmul.f32 %v2113, 0.5
    %v2115 = vadd.f32 %v2114, 0.5
    %v2117 = vrot.slane %v2047, 7
    %v2119 = vmul.f32 %v2115, %v2117
    %2121 = vrot.lane.b32.xlu0 %v2113, 32
    %v2122 = vpop.permute.xlu0 %2121
    %v2124 = vmul.f32 %v2115, %v2122
    %2126 = vrot.lane.b32.xlu0 %v2124, 32
    %v2127 = vpop.permute.xlu0 %2126
    %v2129 = vadd.f32 %v2119, %v2127
    %v2130 = vtanh.pop %v2129
    %2132 = vrot.lane.b32.xlu0 %v2130, 32
    %v2133 = vpop.permute.xlu0 %2132
    %v2135 = vmul.f32 %v2115, %v2133
    %2137 = vrot.lane.b32.xlu0 %v2135, 64
    %v2138 = vpop.permute.xlu0 %2137
    %2140 = vst.msk [vmem:[#allocation2] sm:$0x40] %vm678, %v2138
    %v2141 = vpack.c.bf16 %v2135, %v2135
    %v2143 = vrot.slane %v2141, 3
    %2144 = vrot.lane.b32.xlu0 %v2143, 64
    %v2145 = vpop.permute.xlu0 %2144
    %v2147 = vsel %vm115, %v2145, 0
    %2149 = vmatprep.subr.bf16.mxu0 0
    %2150 = vmatpush1.bf16.msra.mxu0 %v1580
    %2151 = vmatprep.subr.bf16.mxu0 0
    %2152 = vmatpush1.bf16.msra.mxu0 %v1581
    %2153 = vmatprep.subr.bf16.mxu0 0
    %2154 = vmatpush1.bf16.msra.mxu0 0
    %2155 = vmatprep.subr.bf16.mxu0 0
    %2156 = vmatpush1.bf16.msra.mxu0 0
    %2157 = vmatprep.subr.bf16.mxu0 0
    %2158 = vmatpush1.bf16.msra.mxu0 0
    %2159 = vmatprep.subr.bf16.mxu0 0
    %2160 = vmatpush1.bf16.msra.mxu0 0
    %2161 = vmatprep.subr.bf16.mxu0 0
    %2162 = vmatpush1.bf16.msra.mxu0 0
    %2163 = vmatprep.subr.bf16.mxu0 0
    %2164 = vmatpush1.bf16.msra.mxu0 0
    %2165 = vmatprep.subr.bf16.mxu0 0
    %2166 = vmatpush1.bf16.msra.mxu0 0
    %2167 = vmatprep.subr.bf16.mxu0 0
    %2168 = vmatpush1.bf16.msra.mxu0 0
    %2169 = vmatprep.subr.bf16.mxu0 0
    %2170 = vmatpush1.bf16.msra.mxu0 0
    %2171 = vmatprep.subr.bf16.mxu0 0
    %2172 = vmatpush1.bf16.msra.mxu0 0
    %2173 = vmatprep.subr.bf16.mxu0 0
    %2174 = vmatpush1.bf16.msra.mxu0 0
    %2175 = vmatprep.subr.bf16.mxu0 0
    %2176 = vmatpush1.bf16.msra.mxu0 0
    %2177 = vmatprep.subr.bf16.mxu0 0
    %2178 = vmatpush1.bf16.msra.mxu0 0
    %2179 = vmatprep.subr.bf16.mxu0 0
    %2180 = vmatpush1.bf16.msra.mxu0 0
    %2181 = vmatprep.mubr.bf16.mxu0 0
    %2182 = vmatmul.mubr.bf16.gmra.mrb[0].mxu0 %v2147
    %v2183 = vpop.f32.mrb[0].mxu0
    %v2184 = vadd.f32 0.0, %v2183
    %v2185 = vpop.f32.mrb[0].mxu0
    %v2186 = vpop.f32.mrb[0].mxu0
    %v2187 = vpop.f32.mrb[0].mxu0
    %2188 = vdwg.mxu0
    %v2190 = vrot.slane %v2184, 1
    %v2192 = vadd.f32 %v1559, %v2190
    %v2193 = vtanh.pop %v2192
    %v2194 = vmul.f32 %v2193, 0.5
    %v2195 = vadd.f32 %v2194, 0.5
    %v2197 = vrot.slane %v2129, 7
    %v2199 = vmul.f32 %v2195, %v2197
    %2201 = vrot.lane.b32.xlu0 %v2193, 32
    %v2202 = vpop.permute.xlu0 %2201
    %v2204 = vmul.f32 %v2195, %v2202
    %2206 = vrot.lane.b32.xlu0 %v2204, 32
    %v2207 = vpop.permute.xlu0 %2206
    %v2209 = vadd.f32 %v2199, %v2207
    %v2210 = vtanh.pop %v2209
    %2212 = vrot.lane.b32.xlu0 %v2210, 32
    %v2213 = vpop.permute.xlu0 %2212
    %v2215 = vmul.f32 %v2195, %v2213
    %2217 = vrot.lane.b32.xlu0 %v2215, 64
    %v2218 = vpop.permute.xlu0 %2217
    %2220 = vst.msk [vmem:[#allocation2] sm:$0x80] %vm759, %v2218
    %2221 = vst.msk [vmem:[%s6 - $0x5] sm:$0x80] %vm759, %v2218
    %2223 = vrot.lane.b32.xlu0 %v2209, 96
    %v2224 = vpop.permute.xlu0 %2223
    %2226 = vst.msk [vmem:[%s6 - $0x2] sm:$0x80] %vm759, %v2224
    %v2227 = vld [vmem:[#allocation2] sm:$0xff]
    %2228 = vst.msk [vmem:[#allocation6] sm:$0xff] %vm48, %v2227
    // Predicated region
    $region26: #{model_forward_pallas.1} parent=1 // pred_check
      _
    $region27: #{model_forward_pallas.1} parent=1 // pred_check_branch
      %2230 = sbr.rel (0) target = $region29
    $region28: #{model_forward_pallas.1} parent=1 // pred_region
      %s2232 = ssub.s32 128, 128
      %2233 = vsyncadd [#allocation5], %s2232
      %s2235 = sshll.u32 [#allocation6], 4
      %s2236 = int_to_ptr.vmem [resolvable:$true] %s2235
      %2238 = dma.vmem_to_hbm [thread:$0]  %s2236, 128, %s5, [#allocation5]
    $region29: #{model_forward_pallas.1} parent=1 // pred_fallthru
      _
    // Predicated region
    $region30: #{model_forward_pallas.1} parent=1 // pred_check
      _
    $region31: #{model_forward_pallas.1} parent=1 // pred_check_branch
      %2240 = sbr.rel (0) target = $region33
    $region32: #{model_forward_pallas.1} parent=1 // pred_region
      _
    $region33: #{model_forward_pallas.1} parent=1 // pred_fallthru
      _
    // Predicated region
    $region34: #{model_forward_pallas.1} parent=1 // pred_check
      _
    $region35: #{model_forward_pallas.1} parent=1 // pred_check_branch
      %2242 = sbr.rel (0) target = $region37
    $region36: #{model_forward_pallas.1} parent=1 // pred_region
      %2243 = dma.done [#allocation5], 128
    $region37: #{model_forward_pallas.1} parent=1 // pred_fallthru
      _
    // Predicated region
    $region38: #{model_forward_pallas.1} parent=1 // pred_check
      _
    $region39: #{model_forward_pallas.1} parent=1 // pred_check_branch
      %2245 = sbr.rel (0) target = $region41
    $region40: #{model_forward_pallas.1} parent=1 // pred_region
      _
    $region41: #{model_forward_pallas.1} parent=1 // pred_fallthru
      _
    %2246 = vsyncpa [#allocation4], 1
    %2247 = vsyncpa [#allocation5], 1

</llo_original>
